<compile_context>
chip_gen: v7x
topology: tpu7x:2x2x1
jax: 0.10.0
libtpu: 0.0.40
codegen_flags: <defaults>
</compile_context>

<pallas_src>
import math

import jax
import jax.numpy as jnp
from jax.experimental import pallas as pl
from jax.experimental.pallas import tpu as pltpu

B = 2               # batch
S = 8               # sequence length
H = 32              # hidden size
NUM_HEADS = 2
HD = H // NUM_HEADS  # head dim = 16
FFN = 64            # intermediate size
VOCAB = 100
VOCAB_PAD = 128     # vocab table padded to a full lane tile for the one-hot matmul

G = 2 * B           # (tower = {query, context}) * batch groups
N = G * S           # total token rows across both towers

OUT_ROWS, OUT_LANES = 8, 128

# ---- packed weight slab layout: [SLAB_ROWS, 128] f32, everything at lane 0 ----
_R_WEMB = 0                          # [VOCAB_PAD, H]   padded vocab table
_R_POS = _R_WEMB + VOCAB_PAD         # [N, H]           pos-emb pre-tiled over G groups
_R_WQ = _R_POS + N                   # per head h: rows [_R_WQ+h*H, +H), lanes 0:HD
_R_WK = _R_WQ + NUM_HEADS * H
_R_WV = _R_WK + NUM_HEADS * H
_R_WO = _R_WV + NUM_HEADS * H        # per head h: rows [_R_WO+h*HD, +HD), lanes 0:H
_R_W1 = _R_WO + NUM_HEADS * HD       # [H, FFN]
_R_W2 = _R_W1 + H                    # [FFN, H]  (row-major, NOT transposed)
_RV_ELN_G = _R_W2 + FFN              # single-row vector params, lanes 0:width
_RV_ELN_B = _RV_ELN_G + 1
_RV_LN1_G = _RV_ELN_B + 1
_RV_LN1_B = _RV_LN1_G + 1
_RV_LN2_G = _RV_LN1_B + 1
_RV_LN2_B = _RV_LN2_G + 1
_RV_BO = _RV_LN2_B + 1
_RV_B2 = _RV_BO + 1
_RV_B1 = _RV_B2 + 1
_RV_BQ = _RV_B1 + 1                  # + h
_RV_BK = _RV_BQ + NUM_HEADS          # + h
_RV_BV = _RV_BK + NUM_HEADS          # + h
_ROWS_USED = _RV_BV + NUM_HEADS      # 495
SLAB_ROWS = 496                      # padded to a multiple of 8 sublanes


def _layer_norm(x, g, b, eps=1e-12):
    # two-moment form: mean(x) and mean(x*x) are independent reductions
    mu = jnp.mean(x, axis=-1, keepdims=True)
    msq = jnp.mean(x * x, axis=-1, keepdims=True)
    var = jnp.maximum(msq - mu * mu, 0.0)
    return (x - mu) * jax.lax.rsqrt(var + eps) * g + b


# ---------------------------------------------------------------------------
# Fused kernel: embed + encode both towers (1-layer BERT encoder + mean pool),
# then pairwise dot score + CosineEmbeddingLoss(margin=0.5).
# ---------------------------------------------------------------------------
def fused_bert_dot_kernel(ids_ref, mask_ref, lab_ref, w_ref, out_ref):
    # ---- embedding: one-hot gather on the MXU + pre-tiled positional add ---
    ids = ids_ref[...]                                            # [N, 1] int32
    vocab_iota = jax.lax.broadcasted_iota(jnp.int32, (N, VOCAB_PAD), 1)
    onehot = jnp.where(ids == vocab_iota, 1.0, 0.0)               # [N, VOCAB_PAD]
    x = jnp.dot(onehot, w_ref[_R_WEMB:_R_WEMB + VOCAB_PAD, 0:H],
                preferred_element_type=jnp.float32)               # [N, H]
    x = x + w_ref[_R_POS:_R_POS + N, 0:H]                         # positions

    # embedding layernorm
    x = _layer_norm(x, w_ref[_RV_ELN_G:_RV_ELN_G + 1, 0:H],
                    w_ref[_RV_ELN_B:_RV_ELN_B + 1, 0:H])

    # additive attention mask bias (shared by every head)
    mask = mask_ref[...]                                          # [G, S]
    bias = ((1.0 - mask) * -10000.0).reshape(G, 1, S)             # [G, 1, S]

    # ---- multi-head self-attention, per-head weights (no lane slicing) -----
    scale = 1.0 / math.sqrt(HD)
    attn_out = jnp.zeros((N, H), jnp.float32)
    for h in range(NUM_HEADS):                                    # unrolled (2)
        wq_h = w_ref[_R_WQ + h * H:_R_WQ + (h + 1) * H, 0:HD]     # [H, HD]
        bq_h = w_ref[_RV_BQ + h:_RV_BQ + h + 1, 0:HD]             # [1, HD]
        q_h = (jnp.dot(x, wq_h, preferred_element_type=jnp.float32)
               + bq_h).reshape(G, S, HD)

        wk_h = w_ref[_R_WK + h * H:_R_WK + (h + 1) * H, 0:HD]
        bk_h = w_ref[_RV_BK + h:_RV_BK + h + 1, 0:HD]
        k_h = (jnp.dot(x, wk_h, preferred_element_type=jnp.float32)
               + bk_h).reshape(G, S, HD)

        wv_h = w_ref[_R_WV + h * H:_R_WV + (h + 1) * H, 0:HD]
        bv_h = w_ref[_RV_BV + h:_RV_BV + h + 1, 0:HD]
        v_h = (jnp.dot(x, wv_h, preferred_element_type=jnp.float32)
               + bv_h).reshape(G, S, HD)

        s = jnp.einsum('gqd,gkd->gqk', q_h, k_h,
                       preferred_element_type=jnp.float32) * scale + bias
        s = s - jnp.max(s, axis=-1, keepdims=True)                # kept for safety
        p = jnp.exp(s)
        p = p * pl.reciprocal(jnp.sum(p, axis=-1, keepdims=True), approx=True)
        ctx_h = jnp.einsum('gqk,gkd->gqd', p, v_h,
                           preferred_element_type=jnp.float32)    # [G, S, HD]

        wo_h = w_ref[_R_WO + h * HD:_R_WO + (h + 1) * HD, 0:H]    # [HD, H]
        attn_out = attn_out + jnp.dot(ctx_h.reshape(N, HD), wo_h,
                                      preferred_element_type=jnp.float32)

    attn_out = attn_out + w_ref[_RV_BO:_RV_BO + 1, 0:H]
    x1 = _layer_norm(x + attn_out, w_ref[_RV_LN1_G:_RV_LN1_G + 1, 0:H],
                     w_ref[_RV_LN1_B:_RV_LN1_B + 1, 0:H])

    # ---- FFN -----------------------------------------------------------------
    # TODO(synk): HF BERT uses exact (erf) GELU; tanh approximation used here.
    hmid = jax.nn.gelu(
        jnp.dot(x1, w_ref[_R_W1:_R_W1 + H, 0:FFN],
                preferred_element_type=jnp.float32)
        + w_ref[_RV_B1:_RV_B1 + 1, 0:FFN],
        approximate=True)
    ffn_out = jnp.dot(hmid, w_ref[_R_W2:_R_W2 + FFN, 0:H],
                      preferred_element_type=jnp.float32) \
        + w_ref[_RV_B2:_RV_B2 + 1, 0:H]
    x2 = _layer_norm(x1 + ffn_out, w_ref[_RV_LN2_G:_RV_LN2_G + 1, 0:H],
                     w_ref[_RV_LN2_B:_RV_LN2_B + 1, 0:H])

    # ---- mean pool + pairwise dot + CosineEmbeddingLoss(margin=0.5) ---------
    # torch.mean(last_hidden_state, 1): unmasked mean over the sequence axis
    pooled = jnp.mean(x2.reshape(G, S, H), axis=1)                # [G, H]
    q_emb = pooled[0:B]                                           # query tower
    c_emb = pooled[B:2 * B]                                       # context tower

    # bmm(ctx.unsqueeze(1), query.unsqueeze(2)).squeeze() == row-wise dot
    dots = jnp.sum(c_emb * q_emb, axis=-1, keepdims=True)         # [B, 1]

    qn = jnp.sqrt(jnp.sum(q_emb * q_emb, axis=-1, keepdims=True))
    cn = jnp.sqrt(jnp.sum(c_emb * c_emb, axis=-1, keepdims=True))
    cos = dots * pl.reciprocal(jnp.maximum(qn * cn, 1e-8), approx=True)

    # labels live in SMEM; build a [B,1] vector from the scalar reads
    row_ids = jax.lax.broadcasted_iota(jnp.int32, (B, 1), 0)
    lab_vec = jnp.full((B, 1), -1, jnp.int32)
    for i in range(B):
        li = lab_ref[i]
        li = jnp.where(li != 0, li, -1)     # torch.where(labels != 0, labels, -1)
        lab_vec = jnp.where(row_ids == i, li, lab_vec)

    per = jnp.where(lab_vec == 1, 1.0 - cos, jnp.maximum(cos - 0.5, 0.0))
    loss = jnp.mean(per, axis=(0, 1), keepdims=True)              # 'mean' reduction

    # lane-dense [8, 128] output slab: rows 0..B-1 = distance, row B = loss
    col = jnp.concatenate(
        [dots, loss, jnp.zeros((OUT_ROWS - B - 1, 1), jnp.float32)], axis=0)
    out_ref[...] = jnp.broadcast_to(col, (OUT_ROWS, OUT_LANES))


# ---------------------------------------------------------------------------
# JAX glue
# ---------------------------------------------------------------------------
def _pack_weight_slab(p):
    """Pack all weights sublane-stacked at lane 0 into one [SLAB_ROWS, 128] slab."""
    def pad_lanes(a):
        a = jnp.asarray(a, jnp.float32)
        return jnp.pad(a, ((0, 0), (0, 128 - a.shape[1])))

    rows = []
    rows.append(pad_lanes(jnp.pad(p['word_emb'],
                                  ((0, VOCAB_PAD - VOCAB), (0, 0)))))   # [128,128]
    rows.append(pad_lanes(jnp.tile(p['pos_emb'], (G, 1))))              # [N, 128]
    for name in ('wq', 'wk', 'wv'):                                     # per-head [H,HD]
        for h in range(NUM_HEADS):
            rows.append(pad_lanes(p[name][:, h * HD:(h + 1) * HD]))
    for h in range(NUM_HEADS):                                          # per-head [HD,H]
        rows.append(pad_lanes(p['wo'][h * HD:(h + 1) * HD, :]))
    rows.append(pad_lanes(p['w1']))                                     # [H, FFN]
    rows.append(pad_lanes(p['w2']))                                     # [FFN, H] row-major
    for name in ('eln_g', 'eln_b', 'ln1_g', 'ln1_b', 'ln2_g', 'ln2_b',
                 'bo', 'b2', 'b1'):
        rows.append(pad_lanes(p[name]))
    for name in ('bq', 'bk', 'bv'):                                     # per-head [1,HD]
        for h in range(NUM_HEADS):
            rows.append(pad_lanes(p[name][:, h * HD:(h + 1) * HD]))

    slab = jnp.concatenate(rows, axis=0)                                # [_ROWS_USED,128]
    pad = jnp.zeros((SLAB_ROWS - slab.shape[0], 128), jnp.float32)
    return jnp.concatenate([slab, pad], axis=0)                         # [SLAB_ROWS,128]


def bert_dot_forward(params, context_input_ids, query_input_ids,
                     context_attention_mask, query_attention_mask, labels):
    # token ids / masks flattened to the in-kernel (tower*batch) layout
    ids = jnp.stack([query_input_ids, context_input_ids], axis=0)       # [2, B, S]
    ids = ids.astype(jnp.int32).reshape(N, 1)
    mask = jnp.stack([query_attention_mask, context_attention_mask], axis=0)
    mask = mask.astype(jnp.float32).reshape(G, S)

    out = pl.pallas_call(
        fused_bert_dot_kernel,
        out_shape=jax.ShapeDtypeStruct((OUT_ROWS, OUT_LANES), jnp.float32),
        in_specs=[
            pl.BlockSpec(memory_space=pltpu.MemorySpace.VMEM),   # ids
            pl.BlockSpec(memory_space=pltpu.MemorySpace.VMEM),   # mask
            pl.BlockSpec(memory_space=pltpu.MemorySpace.SMEM),   # labels (scalars)
            pl.BlockSpec(memory_space=pltpu.MemorySpace.VMEM),   # packed weight slab
        ],
        out_specs=pl.BlockSpec(memory_space=pltpu.MemorySpace.VMEM),
    )(ids, mask, labels.astype(jnp.int32).reshape(B), params['wslab'])

    logits = out[:B, 0]     # distance
    loss = out[B, 0]        # CosineEmbeddingLoss(margin=0.5), 'mean' reduction
    return logits, loss


def init_params(key):
    ks = jax.random.split(key, 8)
    std = 0.02
    n = jax.random.normal
    p = {
        'word_emb': n(ks[0], (VOCAB, H), jnp.float32) * std,
        'pos_emb':  n(ks[1], (S, H), jnp.float32) * std,
        'eln_g': jnp.ones((1, H), jnp.float32), 'eln_b': jnp.zeros((1, H), jnp.float32),
        'wq': n(ks[2], (H, H), jnp.float32) * std, 'bq': jnp.zeros((1, H), jnp.float32),
        'wk': n(ks[3], (H, H), jnp.float32) * std, 'bk': jnp.zeros((1, H), jnp.float32),
        'wv': n(ks[4], (H, H), jnp.float32) * std, 'bv': jnp.zeros((1, H), jnp.float32),
        'wo': n(ks[5], (H, H), jnp.float32) * std, 'bo': jnp.zeros((1, H), jnp.float32),
        'ln1_g': jnp.ones((1, H), jnp.float32), 'ln1_b': jnp.zeros((1, H), jnp.float32),
        'w1': n(ks[6], (H, FFN), jnp.float32) * std, 'b1': jnp.zeros((1, FFN), jnp.float32),
        'w2': n(ks[7], (FFN, H), jnp.float32) * std, 'b2': jnp.zeros((1, H), jnp.float32),
        'ln2_g': jnp.ones((1, H), jnp.float32), 'ln2_b': jnp.zeros((1, H), jnp.float32),
    }
    p['wslab'] = _pack_weight_slab(p)
    return p


if __name__ == "__main__":
    key = jax.random.PRNGKey(0)
    pkey, k1, k2 = jax.random.split(key, 3)
    params = init_params(pkey)

    context_input_ids = jax.random.randint(k1, (B, S), 0, VOCAB, jnp.int32)
    query_input_ids = jax.random.randint(k2, (B, S), 0, VOCAB, jnp.int32)
    context_attention_mask = jnp.ones((B, S), jnp.int32)
    query_attention_mask = jnp.ones((B, S), jnp.int32).at[:, S - 2:].set(0)
    labels = jnp.array([1, 0], jnp.int32)   # 0 -> mapped to -1 inside the kernel

    logits, loss = bert_dot_forward(params, context_input_ids, query_input_ids,
                                    context_attention_mask, query_attention_mask,
                                    labels)
    jax.block_until_ready((logits, loss))
    print("KERNEL_OK")
</pallas_src>

<mosaic_0001>
module attributes {stable_mosaic.version = 11 : i64} {
  func.func @fused_bert_dot_kernel(%arg0: memref<32x1xi32, #tpu.memory_space<vmem>>, %arg1: memref<4x8xf32, #tpu.memory_space<vmem>>, %arg2: memref<2xi32, #tpu.memory_space<smem>>, %arg3: memref<496x128xf32, #tpu.memory_space<vmem>>, %arg4: memref<8x128xf32, #tpu.memory_space<vmem>>) attributes {dimension_semantics = [], scalar_prefetch = 0 : i64, scratch_operands = 0 : i64, tpu.core_type = #tpu.core_type<tc>} {
    %c0 = arith.constant 0 : index
    %c0_0 = arith.constant 0 : index
    %0 = vector.load %arg0[%c0, %c0_0] : memref<32x1xi32, #tpu.memory_space<vmem>>, vector<32x1xi32>
    %1 = tpu.iota {dimensions = array<i32: 1>} : vector<32x128xi32>
    %2 = vector.broadcast %0 : vector<32x1xi32> to vector<32x128xi32>
    %3 = arith.cmpi eq, %2, %1 : vector<32x128xi32>
    %cst = arith.constant 1.000000e+00 : f32
    %cst_1 = arith.constant 0.000000e+00 : f32
    %4 = vector.broadcast %cst : f32 to vector<32x128xf32>
    %5 = vector.broadcast %cst_1 : f32 to vector<32x128xf32>
    %6 = arith.select %3, %4, %5 : vector<32x128xi1>, vector<32x128xf32>
    %c0_2 = arith.constant 0 : index
    %c0_3 = arith.constant 0 : index
    %7 = vector.load %arg3[%c0_2, %c0_3] : memref<496x128xf32, #tpu.memory_space<vmem>>, vector<128x32xf32>
    %cst_4 = arith.constant dense<0.000000e+00> : vector<32x32xf32>
    %8 = tpu.matmul %6, %7, %cst_4 {dimension_numbers = #tpu.dot_dimension_numbers<[1], [0], [0], [1], [0, 0, 1, 1], [], []>} : vector<32x128xf32>, vector<128x32xf32>, vector<32x32xf32> -> vector<32x32xf32>
    %c128 = arith.constant 128 : index
    %c0_5 = arith.constant 0 : index
    %9 = vector.load %arg3[%c128, %c0_5] : memref<496x128xf32, #tpu.memory_space<vmem>>, vector<32x32xf32>
    %10 = arith.addf %8, %9 : vector<32x32xf32>
    %c480 = arith.constant 480 : index
    %c0_6 = arith.constant 0 : index
    %11 = vector.load %arg3[%c480, %c0_6] : memref<496x128xf32, #tpu.memory_space<vmem>>, vector<1x32xf32>
    %c481 = arith.constant 481 : index
    %c0_7 = arith.constant 0 : index
    %12 = vector.load %arg3[%c481, %c0_7] : memref<496x128xf32, #tpu.memory_space<vmem>>, vector<1x32xf32>
    %cst_8 = arith.constant dense<0.000000e+00> : vector<32xf32>
    %13 = vector.multi_reduction <add>, %10, %cst_8 [1] : vector<32x32xf32> to vector<32xf32>
    %14 = vector.shape_cast %13 : vector<32xf32> to vector<32x1xf32>
    %cst_9 = arith.constant 3.200000e+01 : f32
    %15 = vector.broadcast %cst_9 : f32 to vector<32x1xf32>
    %16 = arith.divf %14, %15 : vector<32x1xf32>
    %17 = arith.mulf %10, %10 : vector<32x32xf32>
    %cst_10 = arith.constant dense<0.000000e+00> : vector<32xf32>
    %18 = vector.multi_reduction <add>, %17, %cst_10 [1] : vector<32x32xf32> to vector<32xf32>
    %19 = vector.shape_cast %18 : vector<32xf32> to vector<32x1xf32>
    %cst_11 = arith.constant 3.200000e+01 : f32
    %20 = vector.broadcast %cst_11 : f32 to vector<32x1xf32>
    %21 = arith.divf %19, %20 : vector<32x1xf32>
    %22 = arith.mulf %16, %16 : vector<32x1xf32>
    %23 = arith.subf %21, %22 : vector<32x1xf32>
    %cst_12 = arith.constant 0.000000e+00 : f32
    %24 = vector.broadcast %cst_12 : f32 to vector<32x1xf32>
    %25 = arith.maximumf %23, %24 : vector<32x1xf32>
    %26 = vector.broadcast %16 : vector<32x1xf32> to vector<32x32xf32>
    %27 = arith.subf %10, %26 : vector<32x32xf32>
    %cst_13 = arith.constant 9.99999996E-13 : f32
    %28 = vector.broadcast %cst_13 : f32 to vector<32x1xf32>
    %29 = arith.addf %25, %28 : vector<32x1xf32>
    %30 = math.rsqrt %29 : vector<32x1xf32>
    %31 = vector.broadcast %30 : vector<32x1xf32> to vector<32x32xf32>
    %32 = arith.mulf %27, %31 : vector<32x32xf32>
    %33 = vector.broadcast %11 : vector<1x32xf32> to vector<32x32xf32>
    %34 = arith.mulf %32, %33 : vector<32x32xf32>
    %35 = vector.broadcast %12 : vector<1x32xf32> to vector<32x32xf32>
    %36 = arith.addf %34, %35 : vector<32x32xf32>
    %c0_14 = arith.constant 0 : index
    %c0_15 = arith.constant 0 : index
    %37 = vector.load %arg1[%c0_14, %c0_15] : memref<4x8xf32, #tpu.memory_space<vmem>>, vector<4x8xf32>
    %cst_16 = arith.constant 1.000000e+00 : f32
    %38 = vector.broadcast %cst_16 : f32 to vector<4x8xf32>
    %39 = arith.subf %38, %37 : vector<4x8xf32>
    %cst_17 = arith.constant -1.000000e+04 : f32
    %40 = vector.broadcast %cst_17 : f32 to vector<4x8xf32>
    %41 = arith.mulf %39, %40 : vector<4x8xf32>
    %42 = vector.shape_cast %41 : vector<4x8xf32> to vector<4x1x8xf32>
    %cst_18 = arith.constant 0.000000e+00 : f32
    %43 = vector.broadcast %cst_18 : f32 to vector<32x32xf32>
    %c160 = arith.constant 160 : index
    %c0_19 = arith.constant 0 : index
    %44 = vector.load %arg3[%c160, %c0_19] : memref<496x128xf32, #tpu.memory_space<vmem>>, vector<32x16xf32>
    %c489 = arith.constant 489 : index
    %c0_20 = arith.constant 0 : index
    %45 = vector.load %arg3[%c489, %c0_20] : memref<496x128xf32, #tpu.memory_space<vmem>>, vector<1x16xf32>
    %cst_21 = arith.constant dense<0.000000e+00> : vector<32x16xf32>
    %46 = tpu.matmul %36, %44, %cst_21 {dimension_numbers = #tpu.dot_dimension_numbers<[1], [0], [0], [1], [0, 0, 1, 1], [], []>} : vector<32x32xf32>, vector<32x16xf32>, vector<32x16xf32> -> vector<32x16xf32>
    %47 = vector.broadcast %45 : vector<1x16xf32> to vector<32x16xf32>
    %48 = arith.addf %46, %47 : vector<32x16xf32>
    %49 = vector.shape_cast %48 : vector<32x16xf32> to vector<4x8x16xf32>
    %c224 = arith.constant 224 : index
    %c0_22 = arith.constant 0 : index
    %50 = vector.load %arg3[%c224, %c0_22] : memref<496x128xf32, #tpu.memory_space<vmem>>, vector<32x16xf32>
    %c491 = arith.constant 491 : index
    %c0_23 = arith.constant 0 : index
    %51 = vector.load %arg3[%c491, %c0_23] : memref<496x128xf32, #tpu.memory_space<vmem>>, vector<1x16xf32>
    %cst_24 = arith.constant dense<0.000000e+00> : vector<32x16xf32>
    %52 = tpu.matmul %36, %50, %cst_24 {dimension_numbers = #tpu.dot_dimension_numbers<[1], [0], [0], [1], [0, 0, 1, 1], [], []>} : vector<32x32xf32>, vector<32x16xf32>, vector<32x16xf32> -> vector<32x16xf32>
    %53 = vector.broadcast %51 : vector<1x16xf32> to vector<32x16xf32>
    %54 = arith.addf %52, %53 : vector<32x16xf32>
    %55 = vector.shape_cast %54 : vector<32x16xf32> to vector<4x8x16xf32>
    %c288 = arith.constant 288 : index
    %c0_25 = arith.constant 0 : index
    %56 = vector.load %arg3[%c288, %c0_25] : memref<496x128xf32, #tpu.memory_space<vmem>>, vector<32x16xf32>
    %c493 = arith.constant 493 : index
    %c0_26 = arith.constant 0 : index
    %57 = vector.load %arg3[%c493, %c0_26] : memref<496x128xf32, #tpu.memory_space<vmem>>, vector<1x16xf32>
    %cst_27 = arith.constant dense<0.000000e+00> : vector<32x16xf32>
    %58 = tpu.matmul %36, %56, %cst_27 {dimension_numbers = #tpu.dot_dimension_numbers<[1], [0], [0], [1], [0, 0, 1, 1], [], []>} : vector<32x32xf32>, vector<32x16xf32>, vector<32x16xf32> -> vector<32x16xf32>
    %59 = vector.broadcast %57 : vector<1x16xf32> to vector<32x16xf32>
    %60 = arith.addf %58, %59 : vector<32x16xf32>
    %61 = vector.shape_cast %60 : vector<32x16xf32> to vector<4x8x16xf32>
    "tpu.trace_start"() <{level = 10 : i32, message = "gqd,gkd->gqk"}> : () -> ()
    %cst_28 = arith.constant dense<0.000000e+00> : vector<4x8x8xf32>
    %62 = tpu.matmul %49, %55, %cst_28 {dimension_numbers = #tpu.dot_dimension_numbers<[2], [2], [1], [1], [0, 0, 0, 1, 1, 1], [0], [0]>} : vector<4x8x16xf32>, vector<4x8x16xf32>, vector<4x8x8xf32> -> vector<4x8x8xf32>
    "tpu.trace_stop"() : () -> ()
    %cst_29 = arith.constant 2.500000e-01 : f32
    %63 = vector.broadcast %cst_29 : f32 to vector<4x8x8xf32>
    %64 = arith.mulf %62, %63 : vector<4x8x8xf32>
    %65 = vector.broadcast %42 : vector<4x1x8xf32> to vector<4x8x8xf32>
    %66 = arith.addf %64, %65 : vector<4x8x8xf32>
    %cst_30 = arith.constant dense<0xFF800000> : vector<4x8xf32>
    %67 = vector.multi_reduction <maximumf>, %66, %cst_30 [2] : vector<4x8x8xf32> to vector<4x8xf32>
    %68 = vector.shape_cast %67 : vector<4x8xf32> to vector<4x8x1xf32>
    %69 = vector.broadcast %68 : vector<4x8x1xf32> to vector<4x8x8xf32>
    %70 = arith.subf %66, %69 : vector<4x8x8xf32>
    %71 = math.exp %70 : vector<4x8x8xf32>
    %cst_31 = arith.constant dense<0.000000e+00> : vector<4x8xf32>
    %72 = vector.multi_reduction <add>, %71, %cst_31 [2] : vector<4x8x8xf32> to vector<4x8xf32>
    %73 = vector.shape_cast %72 : vector<4x8xf32> to vector<4x8x1xf32>
    %74 = tpu.reciprocal %73 {approx = true} : vector<4x8x1xf32> -> vector<4x8x1xf32>
    %75 = vector.broadcast %74 : vector<4x8x1xf32> to vector<4x8x8xf32>
    %76 = arith.mulf %71, %75 : vector<4x8x8xf32>
    "tpu.trace_start"() <{level = 10 : i32, message = "gqk,gkd->gqd"}> : () -> ()
    %cst_32 = arith.constant dense<0.000000e+00> : vector<4x8x16xf32>
    %77 = tpu.matmul %76, %61, %cst_32 {dimension_numbers = #tpu.dot_dimension_numbers<[2], [1], [1], [2], [0, 0, 0, 1, 1, 2], [0], [0]>} : vector<4x8x8xf32>, vector<4x8x16xf32>, vector<4x8x16xf32> -> vector<4x8x16xf32>
    "tpu.trace_stop"() : () -> ()
    %c352 = arith.constant 352 : index
    %c0_33 = arith.constant 0 : index
    %78 = vector.load %arg3[%c352, %c0_33] : memref<496x128xf32, #tpu.memory_space<vmem>>, vector<16x32xf32>
    %79 = vector.shape_cast %77 : vector<4x8x16xf32> to vector<32x16xf32>
    %cst_34 = arith.constant dense<0.000000e+00> : vector<32x32xf32>
    %80 = tpu.matmul %79, %78, %cst_34 {dimension_numbers = #tpu.dot_dimension_numbers<[1], [0], [0], [1], [0, 0, 1, 1], [], []>} : vector<32x16xf32>, vector<16x32xf32>, vector<32x32xf32> -> vector<32x32xf32>
    %81 = arith.addf %43, %80 : vector<32x32xf32>
    %c192 = arith.constant 192 : index
    %c0_35 = arith.constant 0 : index
    %82 = vector.load %arg3[%c192, %c0_35] : memref<496x128xf32, #tpu.memory_space<vmem>>, vector<32x16xf32>
    %c490 = arith.constant 490 : index
    %c0_36 = arith.constant 0 : index
    %83 = vector.load %arg3[%c490, %c0_36] : memref<496x128xf32, #tpu.memory_space<vmem>>, vector<1x16xf32>
    %cst_37 = arith.constant dense<0.000000e+00> : vector<32x16xf32>
    %84 = tpu.matmul %36, %82, %cst_37 {dimension_numbers = #tpu.dot_dimension_numbers<[1], [0], [0], [1], [0, 0, 1, 1], [], []>} : vector<32x32xf32>, vector<32x16xf32>, vector<32x16xf32> -> vector<32x16xf32>
    %85 = vector.broadcast %83 : vector<1x16xf32> to vector<32x16xf32>
    %86 = arith.addf %84, %85 : vector<32x16xf32>
    %87 = vector.shape_cast %86 : vector<32x16xf32> to vector<4x8x16xf32>
    %c256 = arith.constant 256 : index
    %c0_38 = arith.constant 0 : index
    %88 = vector.load %arg3[%c256, %c0_38] : memref<496x128xf32, #tpu.memory_space<vmem>>, vector<32x16xf32>
    %c492 = arith.constant 492 : index
    %c0_39 = arith.constant 0 : index
    %89 = vector.load %arg3[%c492, %c0_39] : memref<496x128xf32, #tpu.memory_space<vmem>>, vector<1x16xf32>
    %cst_40 = arith.constant dense<0.000000e+00> : vector<32x16xf32>
    %90 = tpu.matmul %36, %88, %cst_40 {dimension_numbers = #tpu.dot_dimension_numbers<[1], [0], [0], [1], [0, 0, 1, 1], [], []>} : vector<32x32xf32>, vector<32x16xf32>, vector<32x16xf32> -> vector<32x16xf32>
    %91 = vector.broadcast %89 : vector<1x16xf32> to vector<32x16xf32>
    %92 = arith.addf %90, %91 : vector<32x16xf32>
    %93 = vector.shape_cast %92 : vector<32x16xf32> to vector<4x8x16xf32>
    %c320 = arith.constant 320 : index
    %c0_41 = arith.constant 0 : index
    %94 = vector.load %arg3[%c320, %c0_41] : memref<496x128xf32, #tpu.memory_space<vmem>>, vector<32x16xf32>
    %c494 = arith.constant 494 : index
    %c0_42 = arith.constant 0 : index
    %95 = vector.load %arg3[%c494, %c0_42] : memref<496x128xf32, #tpu.memory_space<vmem>>, vector<1x16xf32>
    %cst_43 = arith.constant dense<0.000000e+00> : vector<32x16xf32>
    %96 = tpu.matmul %36, %94, %cst_43 {dimension_numbers = #tpu.dot_dimension_numbers<[1], [0], [0], [1], [0, 0, 1, 1], [], []>} : vector<32x32xf32>, vector<32x16xf32>, vector<32x16xf32> -> vector<32x16xf32>
    %97 = vector.broadcast %95 : vector<1x16xf32> to vector<32x16xf32>
    %98 = arith.addf %96, %97 : vector<32x16xf32>
    %99 = vector.shape_cast %98 : vector<32x16xf32> to vector<4x8x16xf32>
    "tpu.trace_start"() <{level = 10 : i32, message = "gqd,gkd->gqk"}> : () -> ()
    %cst_44 = arith.constant dense<0.000000e+00> : vector<4x8x8xf32>
    %100 = tpu.matmul %87, %93, %cst_44 {dimension_numbers = #tpu.dot_dimension_numbers<[2], [2], [1], [1], [0, 0, 0, 1, 1, 1], [0], [0]>} : vector<4x8x16xf32>, vector<4x8x16xf32>, vector<4x8x8xf32> -> vector<4x8x8xf32>
    "tpu.trace_stop"() : () -> ()
    %cst_45 = arith.constant 2.500000e-01 : f32
    %101 = vector.broadcast %cst_45 : f32 to vector<4x8x8xf32>
    %102 = arith.mulf %100, %101 : vector<4x8x8xf32>
    %103 = vector.broadcast %42 : vector<4x1x8xf32> to vector<4x8x8xf32>
    %104 = arith.addf %102, %103 : vector<4x8x8xf32>
    %cst_46 = arith.constant dense<0xFF800000> : vector<4x8xf32>
    %105 = vector.multi_reduction <maximumf>, %104, %cst_46 [2] : vector<4x8x8xf32> to vector<4x8xf32>
    %106 = vector.shape_cast %105 : vector<4x8xf32> to vector<4x8x1xf32>
    %107 = vector.broadcast %106 : vector<4x8x1xf32> to vector<4x8x8xf32>
    %108 = arith.subf %104, %107 : vector<4x8x8xf32>
    %109 = math.exp %108 : vector<4x8x8xf32>
    %cst_47 = arith.constant dense<0.000000e+00> : vector<4x8xf32>
    %110 = vector.multi_reduction <add>, %109, %cst_47 [2] : vector<4x8x8xf32> to vector<4x8xf32>
    %111 = vector.shape_cast %110 : vector<4x8xf32> to vector<4x8x1xf32>
    %112 = tpu.reciprocal %111 {approx = true} : vector<4x8x1xf32> -> vector<4x8x1xf32>
    %113 = vector.broadcast %112 : vector<4x8x1xf32> to vector<4x8x8xf32>
    %114 = arith.mulf %109, %113 : vector<4x8x8xf32>
    "tpu.trace_start"() <{level = 10 : i32, message = "gqk,gkd->gqd"}> : () -> ()
    %cst_48 = arith.constant dense<0.000000e+00> : vector<4x8x16xf32>
    %115 = tpu.matmul %114, %99, %cst_48 {dimension_numbers = #tpu.dot_dimension_numbers<[2], [1], [1], [2], [0, 0, 0, 1, 1, 2], [0], [0]>} : vector<4x8x8xf32>, vector<4x8x16xf32>, vector<4x8x16xf32> -> vector<4x8x16xf32>
    "tpu.trace_stop"() : () -> ()
    %c368 = arith.constant 368 : index
    %c0_49 = arith.constant 0 : index
    %116 = vector.load %arg3[%c368, %c0_49] : memref<496x128xf32, #tpu.memory_space<vmem>>, vector<16x32xf32>
    %117 = vector.shape_cast %115 : vector<4x8x16xf32> to vector<32x16xf32>
    %cst_50 = arith.constant dense<0.000000e+00> : vector<32x32xf32>
    %118 = tpu.matmul %117, %116, %cst_50 {dimension_numbers = #tpu.dot_dimension_numbers<[1], [0], [0], [1], [0, 0, 1, 1], [], []>} : vector<32x16xf32>, vector<16x32xf32>, vector<32x32xf32> -> vector<32x32xf32>
    %119 = arith.addf %81, %118 : vector<32x32xf32>
    %c486 = arith.constant 486 : index
    %c0_51 = arith.constant 0 : index
    %120 = vector.load %arg3[%c486, %c0_51] : memref<496x128xf32, #tpu.memory_space<vmem>>, vector<1x32xf32>
    %121 = vector.broadcast %120 : vector<1x32xf32> to vector<32x32xf32>
    %122 = arith.addf %119, %121 : vector<32x32xf32>
    %123 = arith.addf %36, %122 : vector<32x32xf32>
    %c482 = arith.constant 482 : index
    %c0_52 = arith.constant 0 : index
    %124 = vector.load %arg3[%c482, %c0_52] : memref<496x128xf32, #tpu.memory_space<vmem>>, vector<1x32xf32>
    %c483 = arith.constant 483 : index
    %c0_53 = arith.constant 0 : index
    %125 = vector.load %arg3[%c483, %c0_53] : memref<496x128xf32, #tpu.memory_space<vmem>>, vector<1x32xf32>
    %cst_54 = arith.constant dense<0.000000e+00> : vector<32xf32>
    %126 = vector.multi_reduction <add>, %123, %cst_54 [1] : vector<32x32xf32> to vector<32xf32>
    %127 = vector.shape_cast %126 : vector<32xf32> to vector<32x1xf32>
    %cst_55 = arith.constant 3.200000e+01 : f32
    %128 = vector.broadcast %cst_55 : f32 to vector<32x1xf32>
    %129 = arith.divf %127, %128 : vector<32x1xf32>
    %130 = arith.mulf %123, %123 : vector<32x32xf32>
    %cst_56 = arith.constant dense<0.000000e+00> : vector<32xf32>
    %131 = vector.multi_reduction <add>, %130, %cst_56 [1] : vector<32x32xf32> to vector<32xf32>
    %132 = vector.shape_cast %131 : vector<32xf32> to vector<32x1xf32>
    %cst_57 = arith.constant 3.200000e+01 : f32
    %133 = vector.broadcast %cst_57 : f32 to vector<32x1xf32>
    %134 = arith.divf %132, %133 : vector<32x1xf32>
    %135 = arith.mulf %129, %129 : vector<32x1xf32>
    %136 = arith.subf %134, %135 : vector<32x1xf32>
    %cst_58 = arith.constant 0.000000e+00 : f32
    %137 = vector.broadcast %cst_58 : f32 to vector<32x1xf32>
    %138 = arith.maximumf %136, %137 : vector<32x1xf32>
    %139 = vector.broadcast %129 : vector<32x1xf32> to vector<32x32xf32>
    %140 = arith.subf %123, %139 : vector<32x32xf32>
    %cst_59 = arith.constant 9.99999996E-13 : f32
    %141 = vector.broadcast %cst_59 : f32 to vector<32x1xf32>
    %142 = arith.addf %138, %141 : vector<32x1xf32>
    %143 = math.rsqrt %142 : vector<32x1xf32>
    %144 = vector.broadcast %143 : vector<32x1xf32> to vector<32x32xf32>
    %145 = arith.mulf %140, %144 : vector<32x32xf32>
    %146 = vector.broadcast %124 : vector<1x32xf32> to vector<32x32xf32>
    %147 = arith.mulf %145, %146 : vector<32x32xf32>
    %148 = vector.broadcast %125 : vector<1x32xf32> to vector<32x32xf32>
    %149 = arith.addf %147, %148 : vector<32x32xf32>
    %c384 = arith.constant 384 : index
    %c0_60 = arith.constant 0 : index
    %150 = vector.load %arg3[%c384, %c0_60] : memref<496x128xf32, #tpu.memory_space<vmem>>, vector<32x64xf32>
    %cst_61 = arith.constant dense<0.000000e+00> : vector<32x64xf32>
    %151 = tpu.matmul %149, %150, %cst_61 {dimension_numbers = #tpu.dot_dimension_numbers<[1], [0], [0], [1], [0, 0, 1, 1], [], []>} : vector<32x32xf32>, vector<32x64xf32>, vector<32x64xf32> -> vector<32x64xf32>
    %c488 = arith.constant 488 : index
    %c0_62 = arith.constant 0 : index
    %152 = vector.load %arg3[%c488, %c0_62] : memref<496x128xf32, #tpu.memory_space<vmem>>, vector<1x64xf32>
    %153 = vector.broadcast %152 : vector<1x64xf32> to vector<32x64xf32>
    %154 = arith.addf %151, %153 : vector<32x64xf32>
    %155 = arith.mulf %154, %154 : vector<32x64xf32>
    %156 = arith.mulf %154, %155 : vector<32x64xf32>
    %cst_63 = arith.constant 4.471500e-02 : f32
    %157 = vector.broadcast %cst_63 : f32 to vector<32x64xf32>
    %158 = arith.mulf %157, %156 : vector<32x64xf32>
    %159 = arith.addf %154, %158 : vector<32x64xf32>
    %cst_64 = arith.constant 0.797884583 : f32
    %160 = vector.broadcast %cst_64 : f32 to vector<32x64xf32>
    %161 = arith.mulf %160, %159 : vector<32x64xf32>
    %162 = math.tanh %161 : vector<32x64xf32>
    %cst_65 = arith.constant 1.000000e+00 : f32
    %163 = vector.broadcast %cst_65 : f32 to vector<32x64xf32>
    %164 = arith.addf %163, %162 : vector<32x64xf32>
    %cst_66 = arith.constant 5.000000e-01 : f32
    %165 = vector.broadcast %cst_66 : f32 to vector<32x64xf32>
    %166 = arith.mulf %165, %164 : vector<32x64xf32>
    %167 = arith.mulf %154, %166 : vector<32x64xf32>
    %c416 = arith.constant 416 : index
    %c0_67 = arith.constant 0 : index
    %168 = vector.load %arg3[%c416, %c0_67] : memref<496x128xf32, #tpu.memory_space<vmem>>, vector<64x32xf32>
    %cst_68 = arith.constant dense<0.000000e+00> : vector<32x32xf32>
    %169 = tpu.matmul %167, %168, %cst_68 {dimension_numbers = #tpu.dot_dimension_numbers<[1], [0], [0], [1], [0, 0, 1, 1], [], []>} : vector<32x64xf32>, vector<64x32xf32>, vector<32x32xf32> -> vector<32x32xf32>
    %c487 = arith.constant 487 : index
    %c0_69 = arith.constant 0 : index
    %170 = vector.load %arg3[%c487, %c0_69] : memref<496x128xf32, #tpu.memory_space<vmem>>, vector<1x32xf32>
    %171 = vector.broadcast %170 : vector<1x32xf32> to vector<32x32xf32>
    %172 = arith.addf %169, %171 : vector<32x32xf32>
    %173 = arith.addf %149, %172 : vector<32x32xf32>
    %c484 = arith.constant 484 : index
    %c0_70 = arith.constant 0 : index
    %174 = vector.load %arg3[%c484, %c0_70] : memref<496x128xf32, #tpu.memory_space<vmem>>, vector<1x32xf32>
    %c485 = arith.constant 485 : index
    %c0_71 = arith.constant 0 : index
    %175 = vector.load %arg3[%c485, %c0_71] : memref<496x128xf32, #tpu.memory_space<vmem>>, vector<1x32xf32>
    %cst_72 = arith.constant dense<0.000000e+00> : vector<32xf32>
    %176 = vector.multi_reduction <add>, %173, %cst_72 [1] : vector<32x32xf32> to vector<32xf32>
    %177 = vector.shape_cast %176 : vector<32xf32> to vector<32x1xf32>
    %cst_73 = arith.constant 3.200000e+01 : f32
    %178 = vector.broadcast %cst_73 : f32 to vector<32x1xf32>
    %179 = arith.divf %177, %178 : vector<32x1xf32>
    %180 = arith.mulf %173, %173 : vector<32x32xf32>
    %cst_74 = arith.constant dense<0.000000e+00> : vector<32xf32>
    %181 = vector.multi_reduction <add>, %180, %cst_74 [1] : vector<32x32xf32> to vector<32xf32>
    %182 = vector.shape_cast %181 : vector<32xf32> to vector<32x1xf32>
    %cst_75 = arith.constant 3.200000e+01 : f32
    %183 = vector.broadcast %cst_75 : f32 to vector<32x1xf32>
    %184 = arith.divf %182, %183 : vector<32x1xf32>
    %185 = arith.mulf %179, %179 : vector<32x1xf32>
    %186 = arith.subf %184, %185 : vector<32x1xf32>
    %cst_76 = arith.constant 0.000000e+00 : f32
    %187 = vector.broadcast %cst_76 : f32 to vector<32x1xf32>
    %188 = arith.maximumf %186, %187 : vector<32x1xf32>
    %189 = vector.broadcast %179 : vector<32x1xf32> to vector<32x32xf32>
    %190 = arith.subf %173, %189 : vector<32x32xf32>
    %cst_77 = arith.constant 9.99999996E-13 : f32
    %191 = vector.broadcast %cst_77 : f32 to vector<32x1xf32>
    %192 = arith.addf %188, %191 : vector<32x1xf32>
    %193 = math.rsqrt %192 : vector<32x1xf32>
    %194 = vector.broadcast %193 : vector<32x1xf32> to vector<32x32xf32>
    %195 = arith.mulf %190, %194 : vector<32x32xf32>
    %196 = vector.broadcast %174 : vector<1x32xf32> to vector<32x32xf32>
    %197 = arith.mulf %195, %196 : vector<32x32xf32>
    %198 = vector.broadcast %175 : vector<1x32xf32> to vector<32x32xf32>
    %199 = arith.addf %197, %198 : vector<32x32xf32>
    %200 = vector.shape_cast %199 : vector<32x32xf32> to vector<4x8x32xf32>
    %cst_78 = arith.constant dense<0.000000e+00> : vector<4x32xf32>
    %201 = vector.multi_reduction <add>, %200, %cst_78 [1] : vector<4x8x32xf32> to vector<4x32xf32>
    %cst_79 = arith.constant 8.000000e+00 : f32
    %202 = vector.broadcast %cst_79 : f32 to vector<4x32xf32>
    %203 = arith.divf %201, %202 : vector<4x32xf32>
    %204 = vector.extract_strided_slice %203 {offsets = [0, 0], sizes = [2, 32], strides = [1, 1]} : vector<4x32xf32> to vector<2x32xf32>
    %205 = vector.extract_strided_slice %203 {offsets = [2, 0], sizes = [2, 32], strides = [1, 1]} : vector<4x32xf32> to vector<2x32xf32>
    %206 = arith.mulf %205, %204 : vector<2x32xf32>
    %cst_80 = arith.constant dense<0.000000e+00> : vector<2xf32>
    %207 = vector.multi_reduction <add>, %206, %cst_80 [1] : vector<2x32xf32> to vector<2xf32>
    %208 = vector.shape_cast %207 : vector<2xf32> to vector<2x1xf32>
    %209 = arith.mulf %204, %204 : vector<2x32xf32>
    %cst_81 = arith.constant dense<0.000000e+00> : vector<2xf32>
    %210 = vector.multi_reduction <add>, %209, %cst_81 [1] : vector<2x32xf32> to vector<2xf32>
    %211 = vector.shape_cast %210 : vector<2xf32> to vector<2x1xf32>
    %212 = math.sqrt %211 : vector<2x1xf32>
    %213 = arith.mulf %205, %205 : vector<2x32xf32>
    %cst_82 = arith.constant dense<0.000000e+00> : vector<2xf32>
    %214 = vector.multi_reduction <add>, %213, %cst_82 [1] : vector<2x32xf32> to vector<2xf32>
    %215 = vector.shape_cast %214 : vector<2xf32> to vector<2x1xf32>
    %216 = math.sqrt %215 : vector<2x1xf32>
    %217 = arith.mulf %212, %216 : vector<2x1xf32>
    %cst_83 = arith.constant 9.99999993E-9 : f32
    %218 = vector.broadcast %cst_83 : f32 to vector<2x1xf32>
    %219 = arith.maximumf %217, %218 : vector<2x1xf32>
    %220 = tpu.reciprocal %219 {approx = true} : vector<2x1xf32> -> vector<2x1xf32>
    %221 = arith.mulf %208, %220 : vector<2x1xf32>
    %222 = tpu.iota {dimensions = array<i32: 0>} : vector<2x1xi32>
    %c-1_i32 = arith.constant -1 : i32
    %223 = vector.broadcast %c-1_i32 : i32 to vector<2x1xi32>
    %c0_84 = arith.constant 0 : index
    %224 = memref.load %arg2[%c0_84] : memref<2xi32, #tpu.memory_space<smem>>
    %c0_i32 = arith.constant 0 : i32
    %225 = arith.cmpi ne, %224, %c0_i32 : i32
    %c-1_i32_85 = arith.constant -1 : i32
    %226 = arith.select %225, %224, %c-1_i32_85 : i32
    %c0_i32_86 = arith.constant 0 : i32
    %227 = vector.broadcast %c0_i32_86 : i32 to vector<2x1xi32>
    %228 = arith.cmpi eq, %222, %227 : vector<2x1xi32>
    %229 = vector.broadcast %226 : i32 to vector<2x1xi32>
    %230 = arith.select %228, %229, %223 : vector<2x1xi1>, vector<2x1xi32>
    %c1 = arith.constant 1 : index
    %231 = memref.load %arg2[%c1] : memref<2xi32, #tpu.memory_space<smem>>
    %c0_i32_87 = arith.constant 0 : i32
    %232 = arith.cmpi ne, %231, %c0_i32_87 : i32
    %c-1_i32_88 = arith.constant -1 : i32
    %233 = arith.select %232, %231, %c-1_i32_88 : i32
    %c1_i32 = arith.constant 1 : i32
    %234 = vector.broadcast %c1_i32 : i32 to vector<2x1xi32>
    %235 = arith.cmpi eq, %222, %234 : vector<2x1xi32>
    %236 = vector.broadcast %233 : i32 to vector<2x1xi32>
    %237 = arith.select %235, %236, %230 : vector<2x1xi1>, vector<2x1xi32>
    %c1_i32_89 = arith.constant 1 : i32
    %238 = vector.broadcast %c1_i32_89 : i32 to vector<2x1xi32>
    %239 = arith.cmpi eq, %237, %238 : vector<2x1xi32>
    %cst_90 = arith.constant 1.000000e+00 : f32
    %240 = vector.broadcast %cst_90 : f32 to vector<2x1xf32>
    %241 = arith.subf %240, %221 : vector<2x1xf32>
    %cst_91 = arith.constant 5.000000e-01 : f32
    %242 = vector.broadcast %cst_91 : f32 to vector<2x1xf32>
    %243 = arith.subf %221, %242 : vector<2x1xf32>
    %cst_92 = arith.constant 0.000000e+00 : f32
    %244 = vector.broadcast %cst_92 : f32 to vector<2x1xf32>
    %245 = arith.maximumf %243, %244 : vector<2x1xf32>
    %246 = arith.select %239, %241, %245 : vector<2x1xi1>, vector<2x1xf32>
    %247 = vector.shape_cast %246 : vector<2x1xf32> to vector<1x2x1xf32>
    %cst_93 = arith.constant dense<0.000000e+00> : vector<1xf32>
    %248 = vector.multi_reduction <add>, %247, %cst_93 [1, 2] : vector<1x2x1xf32> to vector<1xf32>
    %249 = vector.shape_cast %248 : vector<1xf32> to vector<1x1x1xf32>
    %250 = vector.extract %249[0, 0, 0] : f32 from vector<1x1x1xf32>
    %251 = vector.broadcast %250 : f32 to vector<1x1xf32>
    %cst_94 = arith.constant 2.000000e+00 : f32
    %252 = vector.broadcast %cst_94 : f32 to vector<1x1xf32>
    %253 = arith.divf %251, %252 : vector<1x1xf32>
    %cst_95 = arith.constant 0.000000e+00 : f32
    %254 = vector.broadcast %cst_95 : f32 to vector<5x1xf32>
    %255 = tpu.concatenate %208, %253, %254 in 0 : vector<2x1xf32>, vector<1x1xf32>, vector<5x1xf32> -> vector<8x1xf32>
    %256 = vector.shape_cast %255 : vector<8x1xf32> to vector<8x1xf32>
    %257 = vector.broadcast %256 : vector<8x1xf32> to vector<8x128xf32>
    %c0_96 = arith.constant 0 : index
    %c0_97 = arith.constant 0 : index
    %258 = vector.load %arg4[%c0_96, %c0_97] : memref<8x128xf32, #tpu.memory_space<vmem>>, vector<8x128xf32>
    tpu.vector_store %arg4[%c0_96, %c0_97], %257 {strides = array<i32>} : memref<8x128xf32, #tpu.memory_space<vmem>>, vector<8x128xf32>,
    return
  }
}

</mosaic_0001>

<llo_original>
// kernel: tpu_custom_call.1
$region0: #{tpu_custom_call.1}
  #allocation0 [shape = 'u32[]', space=smem, size = 0x4, offset = 0x4, fixed_abs, tag = 'smem constant byte address 0x4 - core index']
  #allocation1 [shape = 'u32[144,128]{1,0:T(1,128)}', space=vmem, size = 0x12000, scoped, tag = 'internal scratch']
  %s0 = inlined_call_operand.vmem [shape: s32[32,1], index: 0, kind: input, shape index: {}]
  %s1 = inlined_call_operand.vmem [shape: f32[4,8], index: 1, kind: input, shape index: {}]
  %s2 = inlined_call_operand.vmem [shape: s32[2], index: 2, kind: input, shape index: {}]
  %s3 = inlined_call_operand.hbm [shape: f32[496,128], index: 3, kind: input, shape index: {}]
  %s4 = inlined_call_operand.hbm [shape: f32[8,128], index: 4, kind: output, shape index: {}]
  %s5 = sld [smem:[#allocation0]]
  $region34: #{tpu_custom_call.1} parent=0
    _
  %s7 = ssub.s32 1, %s5
  %s8 = scalar_select 0, %s7, %s5
  $region1: #{tpu_custom_call.1} parent=0
    #allocation2 [shape = 'u8[512]{0}', space=smem, size = 0x200, scoped, tag = 'input window, operand 2, single buffered']
    #allocation3 [shape = 's32[1]{0}', space=sflag, size = 0x4, scoped, tag = 'scoped memory for tpu_custom_call.1']
    #allocation4 [shape = 's32[1]{0}', space=sflag, size = 0x4, scoped, tag = 'scoped memory for tpu_custom_call.1']
    #allocation5 [shape = 's32[1]{0}', space=sflag, size = 0x4, scoped, tag = 'scoped memory for tpu_custom_call.1']
    #allocation6 [shape = 'u8[253952]{0}', space=vmem, size = 0x3e000, scoped, tag = 'input window, operand 3, single buffered']
    #allocation7 [shape = 'u8[4096]{0}', space=vmem, size = 0x1000, scoped, tag = 'output window, operand 0, single buffered']
    %9 = vsyncpa [#allocation5], 0
    %10 = vsyncpa [#allocation3], 0
    %11 = vsyncpa [#allocation4], 0
    // Predicated region
    $region2: #{tpu_custom_call.1} parent=1 // pred_check
      _
    $region3: #{tpu_custom_call.1} parent=1 // pred_check_branch
      %13 = sbr.rel (0) target = $region5
    $region4: #{tpu_custom_call.1} parent=1 // pred_region
      _
    $region5: #{tpu_custom_call.1} parent=1 // pred_fallthru
      _
    // Predicated region
    $region6: #{tpu_custom_call.1} parent=1 // pred_check
      _
    $region7: #{tpu_custom_call.1} parent=1 // pred_check_branch
      %15 = sbr.rel (0) target = $region9
    $region8: #{tpu_custom_call.1} parent=1 // pred_region
      _
    $region9: #{tpu_custom_call.1} parent=1 // pred_fallthru
      _
    // Predicated region
    $region10: #{tpu_custom_call.1} parent=1 // pred_check
      _
    $region11: #{tpu_custom_call.1} parent=1 // pred_check_branch
      %17 = sbr.rel (0) target = $region13
    $region12: #{tpu_custom_call.1} parent=1 // pred_region
      %s19 = ssub.s32 16, 16
      %20 = vsyncadd [#allocation5], %s19
      %s22 = sshll.u32 %s2, 4
      %s23 = int_to_ptr.vmem [resolvable:$true] %s22
      %25 = dma.vmem_to_smem %s23, 16, [#allocation2], [#allocation5]
    $region13: #{tpu_custom_call.1} parent=1 // pred_fallthru
      _
    // Predicated region
    $region14: #{tpu_custom_call.1} parent=1 // pred_check
      _
    $region15: #{tpu_custom_call.1} parent=1 // pred_check_branch
      %27 = sbr.rel (0) target = $region17
    $region16: #{tpu_custom_call.1} parent=1 // pred_region
      %s29 = ssub.s32 7936, 7936
      %30 = vsyncadd [#allocation3], %s29
      %s31 = sshll.u32 [#allocation6], 4
      %s32 = int_to_ptr.vmem [resolvable:$true] %s31
      %37 = dma.hbm_to_vmem [thread:$0]  %s3, 7936, %s32, [#allocation3], 128, 128, 8
    $region17: #{tpu_custom_call.1} parent=1 // pred_fallthru
      _
    // Predicated region
    $region18: #{tpu_custom_call.1} parent=1 // pred_check
      _
    $region19: #{tpu_custom_call.1} parent=1 // pred_check_branch
      %39 = sbr.rel (0) target = $region21
    $region20: #{tpu_custom_call.1} parent=1 // pred_region
      %40 = dma.done [#allocation5], 16
    $region21: #{tpu_custom_call.1} parent=1 // pred_fallthru
      _
    // Predicated region
    $region22: #{tpu_custom_call.1} parent=1 // pred_check
      _
    $region23: #{tpu_custom_call.1} parent=1 // pred_check_branch
      %42 = sbr.rel (0) target = $region25
    $region24: #{tpu_custom_call.1} parent=1 // pred_region
      %43 = dma.done [#allocation3], 7936
    $region25: #{tpu_custom_call.1} parent=1 // pred_fallthru
      _
    %44 = sfence
    %v45 = vld [vmem:[%s0] sm:$0xff]
    %v46 = vld [vmem:[%s0 + $0x8] sm:$0xff]
    %v47 = vld [vmem:[%s0 + $0x10] sm:$0xff]
    %v48 = vld [vmem:[%s0 + $0x18] sm:$0xff]
    %v49 = vlaneseq
    %v50 = vand.u32 %v49, 127
    %51 = vset.pattern.permute.xlu0 0
    %52 = vperm.xlu0 %51, %v45
    %v53 = vpop.permute.xlu0 %52
    %54 = vset.pattern.permute.xlu0 0
    %55 = vperm.xlu0 %54, %v46
    %v56 = vpop.permute.xlu0 %55
    %57 = vset.pattern.permute.xlu0 0
    %58 = vperm.xlu0 %57, %v47
    %v59 = vpop.permute.xlu0 %58
    %60 = vset.pattern.permute.xlu0 0
    %61 = vperm.xlu0 %60, %v48
    %v62 = vpop.permute.xlu0 %61
    %vm63 = vcmp.eq.s32.totalorder %v53, %v50
    %vm64 = vcmp.eq.s32.totalorder %v56, %v50
    %vm65 = vcmp.eq.s32.totalorder %v59, %v50
    %vm66 = vcmp.eq.s32.totalorder %v62, %v50
    %v67 = vsel %vm63, 1.0, 0.0
    %v68 = vsel %vm64, 1.0, 0.0
    %v69 = vsel %vm65, 1.0, 0.0
    %v70 = vsel %vm66, 1.0, 0.0
    %v71 = vld [vmem:[#allocation6] sm:$0xff]
    %v72 = vld [vmem:[#allocation6 + $0x8] sm:$0xff]
    %v73 = vld [vmem:[#allocation6 + $0x10] sm:$0xff]
    %v74 = vld [vmem:[#allocation6 + $0x18] sm:$0xff]
    %v75 = vld [vmem:[#allocation6 + $0x20] sm:$0xff]
    %v76 = vld [vmem:[#allocation6 + $0x28] sm:$0xff]
    %v77 = vld [vmem:[#allocation6 + $0x30] sm:$0xff]
    %v78 = vld [vmem:[#allocation6 + $0x38] sm:$0xff]
    %v79 = vld [vmem:[#allocation6 + $0x40] sm:$0xff]
    %v80 = vld [vmem:[#allocation6 + $0x48] sm:$0xff]
    %v81 = vld [vmem:[#allocation6 + $0x50] sm:$0xff]
    %v82 = vld [vmem:[#allocation6 + $0x58] sm:$0xff]
    %v83 = vld [vmem:[#allocation6 + $0x60] sm:$0xff]
    %v84 = vld [vmem:[#allocation6 + $0x68] sm:$0xff]
    %v85 = vld [vmem:[#allocation6 + $0x70] sm:$0xff]
    %v86 = vld [vmem:[#allocation6 + $0x78] sm:$0xff]
    %v87 = vld [vmem:[#allocation6 + $0x80] sm:$0xff]
    %v88 = vld [vmem:[#allocation6 + $0x88] sm:$0xff]
    %v89 = vld [vmem:[#allocation6 + $0x90] sm:$0xff]
    %v90 = vld [vmem:[#allocation6 + $0x98] sm:$0xff]
    %91 = vmatprep.subr.mxu0 0.0
    %92 = vmatpush1.msra.mxu0 %v71
    %93 = vmatprep.subr.mxu0 0.0
    %94 = vmatpush1.msra.mxu0 %v72
    %95 = vmatprep.subr.mxu0 0.0
    %96 = vmatpush1.msra.mxu0 %v73
    %97 = vmatprep.subr.mxu0 0.0
    %98 = vmatpush1.msra.mxu0 %v74
    %99 = vmatprep.subr.mxu0 0.0
    %100 = vmatpush1.msra.mxu0 %v75
    %101 = vmatprep.subr.mxu0 0.0
    %102 = vmatpush1.msra.mxu0 %v76
    %103 = vmatprep.subr.mxu0 0.0
    %104 = vmatpush1.msra.mxu0 %v77
    %105 = vmatprep.subr.mxu0 0.0
    %106 = vmatpush1.msra.mxu0 %v78
    %107 = vmatprep.subr.mxu0 0.0
    %108 = vmatpush1.msra.mxu0 %v79
    %109 = vmatprep.subr.mxu0 0.0
    %110 = vmatpush1.msra.mxu0 %v80
    %111 = vmatprep.subr.mxu0 0.0
    %112 = vmatpush1.msra.mxu0 %v81
    %113 = vmatprep.subr.mxu0 0.0
    %114 = vmatpush1.msra.mxu0 %v82
    %115 = vmatprep.subr.mxu0 0.0
    %116 = vmatpush1.msra.mxu0 %v83
    %117 = vmatprep.subr.mxu0 0.0
    %118 = vmatpush1.msra.mxu0 %v84
    %119 = vmatprep.subr.mxu0 0.0
    %120 = vmatpush1.msra.mxu0 %v85
    %121 = vmatprep.subr.mxu0 0.0
    %122 = vmatpush1.msra.mxu0 %v86
    %123 = vmatprep.subr.mxu0 0.0
    %124 = vmatpush1.msra.mxu0 0.0
    %125 = vmatprep.subr.mxu0 0.0
    %126 = vmatpush1.msra.mxu0 0.0
    %127 = vmatprep.subr.mxu0 0.0
    %128 = vmatpush1.msra.mxu0 0.0
    %129 = vmatprep.subr.mxu0 0.0
    %130 = vmatpush1.msra.mxu0 0.0
    %131 = vmatprep.subr.mxu0 0.0
    %132 = vmatpush1.msra.mxu0 0.0
    %133 = vmatprep.subr.mxu0 0.0
    %134 = vmatpush1.msra.mxu0 0.0
    %135 = vmatprep.subr.mxu0 0.0
    %136 = vmatpush1.msra.mxu0 0.0
    %137 = vmatprep.subr.mxu0 0.0
    %138 = vmatpush1.msra.mxu0 0.0
    %139 = vmatprep.subr.mxu0 0.0
    %140 = vmatpush1.msra.mxu0 0.0
    %141 = vmatprep.subr.mxu0 0.0
    %142 = vmatpush1.msra.mxu0 0.0
    %143 = vmatprep.subr.mxu0 0.0
    %144 = vmatpush1.msra.mxu0 0.0
    %145 = vmatprep.subr.mxu0 0.0
    %146 = vmatpush1.msra.mxu0 0.0
    %147 = vmatprep.subr.mxu0 0.0
    %148 = vmatpush1.msra.mxu0 0.0
    %149 = vmatprep.subr.mxu0 0.0
    %150 = vmatpush1.msra.mxu0 0.0
    %151 = vmatprep.subr.mxu0 0.0
    %152 = vmatpush1.msra.mxu0 0.0
    %153 = vmatprep.subr.mxu0 0.0
    %154 = vmatpush1.msra.mxu0 0.0
    %155 = vmatprep.mubr.f32.mxu0 0.0
    %156 = vmatmul.mubr.f32.gmra.mrb[0].mxu0 %v67
    %v157 = vpop.f32.mrb[0].mxu0
    %v158 = vadd.f32 %v87, %v157
    %v159 = vpop.f32.mrb[0].mxu0
    %160 = vmatprep.mubr.f32.mxu0 0.0
    %161 = vmatmul.mubr.f32.gmra.mrb[0].mxu0 %v68
    %v162 = vpop.f32.mrb[0].mxu0
    %v163 = vadd.f32 %v88, %v162
    %v164 = vpop.f32.mrb[0].mxu0
    %165 = vmatprep.mubr.f32.mxu0 0.0
    %166 = vmatmul.mubr.f32.gmra.mrb[0].mxu0 %v69
    %v167 = vpop.f32.mrb[0].mxu0
    %v168 = vadd.f32 %v89, %v167
    %v169 = vpop.f32.mrb[0].mxu0
    %170 = vmatprep.mubr.f32.mxu0 0.0
    %171 = vmatmul.mubr.f32.gmra.mrb[0].mxu0 %v70
    %v172 = vpop.f32.mrb[0].mxu0
    %v173 = vadd.f32 %v90, %v172
    %v174 = vpop.f32.mrb[0].mxu0
    %175 = vdwg.mxu0
    %v176 = vld [vmem:[#allocation6 + $0x1e0] sm:$0x1]
    %v177 = vld [vmem:[#allocation6 + $0x1e1] sm:$0x1]
    %vm178 = vcmask 261120
    %v179 = vsel %vm178, %v158, 0.0
    %180 = vadd.xlane.f32.xlu0 %v179
    %v181 = vpop.xlane.xlu0 %180
    %v182 = vsel %vm178, %v163, 0.0
    %183 = vadd.xlane.f32.xlu0 %v182
    %v184 = vpop.xlane.xlu0 %183
    %v185 = vsel %vm178, %v168, 0.0
    %186 = vadd.xlane.f32.xlu0 %v185
    %v187 = vpop.xlane.xlu0 %186
    %v188 = vsel %vm178, %v173, 0.0
    %189 = vadd.xlane.f32.xlu0 %v188
    %v190 = vpop.xlane.xlu0 %189
    %v191 = vrcp.pop 32.0
    %v192 = vmul.f32 %v181, %v191
    %v193 = vmul.f32 %v184, %v191
    %v194 = vmul.f32 %v187, %v191
    %v195 = vmul.f32 %v190, %v191
    %v196 = vmul.f32 %v158, %v158
    %v197 = vmul.f32 %v163, %v163
    %v198 = vmul.f32 %v168, %v168
    %v199 = vmul.f32 %v173, %v173
    %v200 = vsel %vm178, %v196, 0.0
    %201 = vadd.xlane.f32.xlu0 %v200
    %v202 = vpop.xlane.xlu0 %201
    %v203 = vsel %vm178, %v197, 0.0
    %204 = vadd.xlane.f32.xlu0 %v203
    %v205 = vpop.xlane.xlu0 %204
    %v206 = vsel %vm178, %v198, 0.0
    %207 = vadd.xlane.f32.xlu0 %v206
    %v208 = vpop.xlane.xlu0 %207
    %v209 = vsel %vm178, %v199, 0.0
    %210 = vadd.xlane.f32.xlu0 %v209
    %v211 = vpop.xlane.xlu0 %210
    %v212 = vmul.f32 %v202, %v191
    %v213 = vmul.f32 %v205, %v191
    %v214 = vmul.f32 %v208, %v191
    %v215 = vmul.f32 %v211, %v191
    %v216 = vmul.f32 %v192, %v192
    %v217 = vmul.f32 %v193, %v193
    %v218 = vmul.f32 %v194, %v194
    %v219 = vmul.f32 %v195, %v195
    %v220 = vsub.f32 %v212, %v216
    %v221 = vsub.f32 %v213, %v217
    %v222 = vsub.f32 %v214, %v218
    %v223 = vsub.f32 %v215, %v219
    %v224 = vmax.f32 %v220, 0.0
    %v225 = vmax.f32 %v221, 0.0
    %v226 = vmax.f32 %v222, 0.0
    %v227 = vmax.f32 %v223, 0.0
    %v228 = vsub.f32 %v158, %v192
    %v229 = vsub.f32 %v163, %v193
    %v230 = vsub.f32 %v168, %v194
    %v231 = vsub.f32 %v173, %v195
    %v232 = vadd.f32 %v224, 1e-12
    %v233 = vadd.f32 %v225, 1e-12
    %v234 = vadd.f32 %v226, 1e-12
    %v235 = vadd.f32 %v227, 1e-12
    %v236 = vrsqrt.pop %v232
    %v237 = vrsqrt.pop %v233
    %v238 = vrsqrt.pop %v234
    %v239 = vrsqrt.pop %v235
    %v240 = vmul.f32 %v228, %v236
    %v241 = vmul.f32 %v229, %v237
    %v242 = vmul.f32 %v230, %v238
    %v243 = vmul.f32 %v231, %v239
    %v244 = vlaneseq
    %v245 = vshrl.u32 %v244, 7
    %v246 = vsub.s32 0, %v245
    %v247 = vrot.slane %v176, %v246
    %v248 = vmul.f32 %v240, %v247
    %v249 = vmul.f32 %v241, %v247
    %v250 = vmul.f32 %v242, %v247
    %v251 = vmul.f32 %v243, %v247
    %v252 = vlaneseq
    %v253 = vshrl.u32 %v252, 7
    %v254 = vsub.s32 0, %v253
    %v255 = vrot.slane %v177, %v254
    %v256 = vadd.f32 %v248, %v255
    %v257 = vadd.f32 %v249, %v255
    %v258 = vadd.f32 %v250, %v255
    %v259 = vadd.f32 %v251, %v255
    %v260 = vld [vmem:[%s1] sm:$0xf]
    %v261 = vsub.f32 1.0, %v260
    %v262 = vmul.f32 %v261, -10000.0
    %v265 = vunpack.c.l.s4 1966171168
    %v266 = vunpack.c.0.s8 %v265
    %v267 = vlaneseq
    %v268 = vshrl.u32 %v267, 7
    %v269 = vsub.s32 %v266, %v268
    %v270 = vrot.slane %v262, %v269
    %v271 = vcombine.high %v270, %v270
    %v273 = vunpack.c.l.s4 1966171168
    %v274 = vunpack.c.0.s8 %v273
    %v275 = vlaneseq
    %v276 = vshrl.u32 %v275, 7
    %v277 = vsub.s32 %v274, %v276
    %v278 = vrot.slane %v270, %v277
    %v280 = vunpack.c.l.s4 1966171168
    %v281 = vunpack.c.0.s8 %v280
    %v282 = vlaneseq
    %v283 = vshrl.u32 %v282, 7
    %v284 = vsub.s32 %v281, %v283
    %v285 = vrot.slane %v271, %v284
    %v286 = vcombine.high %v278, %v278
    %v287 = vcombine.high %v285, %v285
    %v288 = vld [vmem:[#allocation6 + $0xa0] sm:$0xff]
    %v289 = vld [vmem:[#allocation6 + $0xa8] sm:$0xff]
    %v290 = vld [vmem:[#allocation6 + $0xb0] sm:$0xff]
    %v291 = vld [vmem:[#allocation6 + $0xb8] sm:$0xff]
    %v292 = vld [vmem:[#allocation6 + $0x1e9] sm:$0x1]
    %v293 = vlaneseq
    %v294 = vshrl.u32 %v293, 7
    %v295 = vsub.s32 0, %v294
    %v296 = vrot.slane %v292, %v295
    %v298 = vsel %vm178, %v256, 0
    %v301 = vsel %vm178, %v257, 0
    %v304 = vsel %vm178, %v258, 0
    %v307 = vsel %vm178, %v259, 0
    %309 = vmatprep.subr.mxu0 0.0
    %310 = vmatpush1.msra.mxu0 %v288
    %311 = vmatprep.subr.mxu0 0.0
    %312 = vmatpush1.msra.mxu0 %v289
    %313 = vmatprep.subr.mxu0 0.0
    %314 = vmatpush1.msra.mxu0 %v290
    %315 = vmatprep.subr.mxu0 0.0
    %316 = vmatpush1.msra.mxu0 %v291
    %317 = vmatprep.subr.mxu0 0.0
    %318 = vmatpush1.msra.mxu0 0.0
    %319 = vmatprep.subr.mxu0 0.0
    %320 = vmatpush1.msra.mxu0 0.0
    %321 = vmatprep.subr.mxu0 0.0
    %322 = vmatpush1.msra.mxu0 0.0
    %323 = vmatprep.subr.mxu0 0.0
    %324 = vmatpush1.msra.mxu0 0.0
    %325 = vmatprep.subr.mxu0 0.0
    %326 = vmatpush1.msra.mxu0 0.0
    %327 = vmatprep.subr.mxu0 0.0
    %328 = vmatpush1.msra.mxu0 0.0
    %329 = vmatprep.subr.mxu0 0.0
    %330 = vmatpush1.msra.mxu0 0.0
    %331 = vmatprep.subr.mxu0 0.0
    %332 = vmatpush1.msra.mxu0 0.0
    %333 = vmatprep.subr.mxu0 0.0
    %334 = vmatpush1.msra.mxu0 0.0
    %335 = vmatprep.subr.mxu0 0.0
    %336 = vmatpush1.msra.mxu0 0.0
    %337 = vmatprep.subr.mxu0 0.0
    %338 = vmatpush1.msra.mxu0 0.0
    %339 = vmatprep.subr.mxu0 0.0
    %340 = vmatpush1.msra.mxu0 0.0
    %341 = vmatprep.subr.mxu0 0.0
    %342 = vmatpush1.msra.mxu0 0.0
    %343 = vmatprep.subr.mxu0 0.0
    %344 = vmatpush1.msra.mxu0 0.0
    %345 = vmatprep.subr.mxu0 0.0
    %346 = vmatpush1.msra.mxu0 0.0
    %347 = vmatprep.subr.mxu0 0.0
    %348 = vmatpush1.msra.mxu0 0.0
    %349 = vmatprep.subr.mxu0 0.0
    %350 = vmatpush1.msra.mxu0 0.0
    %351 = vmatprep.subr.mxu0 0.0
    %352 = vmatpush1.msra.mxu0 0.0
    %353 = vmatprep.subr.mxu0 0.0
    %354 = vmatpush1.msra.mxu0 0.0
    %355 = vmatprep.subr.mxu0 0.0
    %356 = vmatpush1.msra.mxu0 0.0
    %357 = vmatprep.subr.mxu0 0.0
    %358 = vmatpush1.msra.mxu0 0.0
    %359 = vmatprep.subr.mxu0 0.0
    %360 = vmatpush1.msra.mxu0 0.0
    %361 = vmatprep.subr.mxu0 0.0
    %362 = vmatpush1.msra.mxu0 0.0
    %363 = vmatprep.subr.mxu0 0.0
    %364 = vmatpush1.msra.mxu0 0.0
    %365 = vmatprep.subr.mxu0 0.0
    %366 = vmatpush1.msra.mxu0 0.0
    %367 = vmatprep.subr.mxu0 0.0
    %368 = vmatpush1.msra.mxu0 0.0
    %369 = vmatprep.subr.mxu0 0.0
    %370 = vmatpush1.msra.mxu0 0.0
    %371 = vmatprep.subr.mxu0 0.0
    %372 = vmatpush1.msra.mxu0 0.0
    %373 = vmatprep.mubr.f32.mxu0 0.0
    %374 = vmatmul.mubr.f32.gmra.mrb[0].mxu0 %v298
    %v375 = vpop.f32.mrb[0].mxu0
    %v376 = vadd.f32 %v296, %v375
    %v377 = vpop.f32.mrb[0].mxu0
    %378 = vmatprep.mubr.f32.mxu0 0.0
    %379 = vmatmul.mubr.f32.gmra.mrb[0].mxu0 %v301
    %v380 = vpop.f32.mrb[0].mxu0
    %v381 = vadd.f32 %v296, %v380
    %v382 = vpop.f32.mrb[0].mxu0
    %383 = vmatprep.mubr.f32.mxu0 0.0
    %384 = vmatmul.mubr.f32.gmra.mrb[0].mxu0 %v304
    %v385 = vpop.f32.mrb[0].mxu0
    %v386 = vadd.f32 %v296, %v385
    %v387 = vpop.f32.mrb[0].mxu0
    %388 = vmatprep.mubr.f32.mxu0 0.0
    %389 = vmatmul.mubr.f32.gmra.mrb[0].mxu0 %v307
    %v390 = vpop.f32.mrb[0].mxu0
    %v391 = vadd.f32 %v296, %v390
    %v392 = vpop.f32.mrb[0].mxu0
    %393 = vdwg.mxu0
    %v394 = vld [vmem:[#allocation6 + $0xe0] sm:$0xff]
    %v395 = vld [vmem:[#allocation6 + $0xe8] sm:$0xff]
    %v396 = vld [vmem:[#allocation6 + $0xf0] sm:$0xff]
    %v397 = vld [vmem:[#allocation6 + $0xf8] sm:$0xff]
    %v398 = vld [vmem:[#allocation6 + $0x1eb] sm:$0x1]
    %v399 = vlaneseq
    %v400 = vshrl.u32 %v399, 7
    %v401 = vsub.s32 0, %v400
    %v402 = vrot.slane %v398, %v401
    %403 = vmatprep.subr.mxu0 0.0
    %404 = vmatpush1.msra.mxu0 %v394
    %405 = vmatprep.subr.mxu0 0.0
    %406 = vmatpush1.msra.mxu0 %v395
    %407 = vmatprep.subr.mxu0 0.0
    %408 = vmatpush1.msra.mxu0 %v396
    %409 = vmatprep.subr.mxu0 0.0
    %410 = vmatpush1.msra.mxu0 %v397
    %411 = vmatprep.subr.mxu0 0.0
    %412 = vmatpush1.msra.mxu0 0.0
    %413 = vmatprep.subr.mxu0 0.0
    %414 = vmatpush1.msra.mxu0 0.0
    %415 = vmatprep.subr.mxu0 0.0
    %416 = vmatpush1.msra.mxu0 0.0
    %417 = vmatprep.subr.mxu0 0.0
    %418 = vmatpush1.msra.mxu0 0.0
    %419 = vmatprep.subr.mxu0 0.0
    %420 = vmatpush1.msra.mxu0 0.0
    %421 = vmatprep.subr.mxu0 0.0
    %422 = vmatpush1.msra.mxu0 0.0
    %423 = vmatprep.subr.mxu0 0.0
    %424 = vmatpush1.msra.mxu0 0.0
    %425 = vmatprep.subr.mxu0 0.0
    %426 = vmatpush1.msra.mxu0 0.0
    %427 = vmatprep.subr.mxu0 0.0
    %428 = vmatpush1.msra.mxu0 0.0
    %429 = vmatprep.subr.mxu0 0.0
    %430 = vmatpush1.msra.mxu0 0.0
    %431 = vmatprep.subr.mxu0 0.0
    %432 = vmatpush1.msra.mxu0 0.0
    %433 = vmatprep.subr.mxu0 0.0
    %434 = vmatpush1.msra.mxu0 0.0
    %435 = vmatprep.subr.mxu0 0.0
    %436 = vmatpush1.msra.mxu0 0.0
    %437 = vmatprep.subr.mxu0 0.0
    %438 = vmatpush1.msra.mxu0 0.0
    %439 = vmatprep.subr.mxu0 0.0
    %440 = vmatpush1.msra.mxu0 0.0
    %441 = vmatprep.subr.mxu0 0.0
    %442 = vmatpush1.msra.mxu0 0.0
    %443 = vmatprep.subr.mxu0 0.0
    %444 = vmatpush1.msra.mxu0 0.0
    %445 = vmatprep.subr.mxu0 0.0
    %446 = vmatpush1.msra.mxu0 0.0
    %447 = vmatprep.subr.mxu0 0.0
    %448 = vmatpush1.msra.mxu0 0.0
    %449 = vmatprep.subr.mxu0 0.0
    %450 = vmatpush1.msra.mxu0 0.0
    %451 = vmatprep.subr.mxu0 0.0
    %452 = vmatpush1.msra.mxu0 0.0
    %453 = vmatprep.subr.mxu0 0.0
    %454 = vmatpush1.msra.mxu0 0.0
    %455 = vmatprep.subr.mxu0 0.0
    %456 = vmatpush1.msra.mxu0 0.0
    %457 = vmatprep.subr.mxu0 0.0
    %458 = vmatpush1.msra.mxu0 0.0
    %459 = vmatprep.subr.mxu0 0.0
    %460 = vmatpush1.msra.mxu0 0.0
    %461 = vmatprep.subr.mxu0 0.0
    %462 = vmatpush1.msra.mxu0 0.0
    %463 = vmatprep.subr.mxu0 0.0
    %464 = vmatpush1.msra.mxu0 0.0
    %465 = vmatprep.subr.mxu0 0.0
    %466 = vmatpush1.msra.mxu0 0.0
    %467 = vmatprep.mubr.f32.mxu0 0.0
    %468 = vmatmul.mubr.f32.gmra.mrb[0].mxu0 %v298
    %v469 = vpop.f32.mrb[0].mxu0
    %v470 = vadd.f32 %v402, %v469
    %v471 = vpop.f32.mrb[0].mxu0
    %472 = vmatprep.mubr.f32.mxu0 0.0
    %473 = vmatmul.mubr.f32.gmra.mrb[0].mxu0 %v301
    %v474 = vpop.f32.mrb[0].mxu0
    %v475 = vadd.f32 %v402, %v474
    %v476 = vpop.f32.mrb[0].mxu0
    %477 = vmatprep.mubr.f32.mxu0 0.0
    %478 = vmatmul.mubr.f32.gmra.mrb[0].mxu0 %v304
    %v479 = vpop.f32.mrb[0].mxu0
    %v480 = vadd.f32 %v402, %v479
    %v481 = vpop.f32.mrb[0].mxu0
    %482 = vmatprep.mubr.f32.mxu0 0.0
    %483 = vmatmul.mubr.f32.gmra.mrb[0].mxu0 %v307
    %v484 = vpop.f32.mrb[0].mxu0
    %v485 = vadd.f32 %v402, %v484
    %v486 = vpop.f32.mrb[0].mxu0
    %487 = vdwg.mxu0
    %v488 = vld [vmem:[#allocation6 + $0x120] sm:$0xff]
    %v489 = vld [vmem:[#allocation6 + $0x128] sm:$0xff]
    %v490 = vld [vmem:[#allocation6 + $0x130] sm:$0xff]
    %v491 = vld [vmem:[#allocation6 + $0x138] sm:$0xff]
    %v492 = vld [vmem:[#allocation6 + $0x1ed] sm:$0x1]
    %v493 = vlaneseq
    %v494 = vshrl.u32 %v493, 7
    %v495 = vsub.s32 0, %v494
    %v496 = vrot.slane %v492, %v495
    %497 = vmatprep.subr.mxu0 0.0
    %498 = vmatpush1.msra.mxu0 %v488
    %499 = vmatprep.subr.mxu0 0.0
    %500 = vmatpush1.msra.mxu0 %v489
    %501 = vmatprep.subr.mxu0 0.0
    %502 = vmatpush1.msra.mxu0 %v490
    %503 = vmatprep.subr.mxu0 0.0
    %504 = vmatpush1.msra.mxu0 %v491
    %505 = vmatprep.subr.mxu0 0.0
    %506 = vmatpush1.msra.mxu0 0.0
    %507 = vmatprep.subr.mxu0 0.0
    %508 = vmatpush1.msra.mxu0 0.0
    %509 = vmatprep.subr.mxu0 0.0
    %510 = vmatpush1.msra.mxu0 0.0
    %511 = vmatprep.subr.mxu0 0.0
    %512 = vmatpush1.msra.mxu0 0.0
    %513 = vmatprep.subr.mxu0 0.0
    %514 = vmatpush1.msra.mxu0 0.0
    %515 = vmatprep.subr.mxu0 0.0
    %516 = vmatpush1.msra.mxu0 0.0
    %517 = vmatprep.subr.mxu0 0.0
    %518 = vmatpush1.msra.mxu0 0.0
    %519 = vmatprep.subr.mxu0 0.0
    %520 = vmatpush1.msra.mxu0 0.0
    %521 = vmatprep.subr.mxu0 0.0
    %522 = vmatpush1.msra.mxu0 0.0
    %523 = vmatprep.subr.mxu0 0.0
    %524 = vmatpush1.msra.mxu0 0.0
    %525 = vmatprep.subr.mxu0 0.0
    %526 = vmatpush1.msra.mxu0 0.0
    %527 = vmatprep.subr.mxu0 0.0
    %528 = vmatpush1.msra.mxu0 0.0
    %529 = vmatprep.subr.mxu0 0.0
    %530 = vmatpush1.msra.mxu0 0.0
    %531 = vmatprep.subr.mxu0 0.0
    %532 = vmatpush1.msra.mxu0 0.0
    %533 = vmatprep.subr.mxu0 0.0
    %534 = vmatpush1.msra.mxu0 0.0
    %535 = vmatprep.subr.mxu0 0.0
    %536 = vmatpush1.msra.mxu0 0.0
    %537 = vmatprep.subr.mxu0 0.0
    %538 = vmatpush1.msra.mxu0 0.0
    %539 = vmatprep.subr.mxu0 0.0
    %540 = vmatpush1.msra.mxu0 0.0
    %541 = vmatprep.subr.mxu0 0.0
    %542 = vmatpush1.msra.mxu0 0.0
    %543 = vmatprep.subr.mxu0 0.0
    %544 = vmatpush1.msra.mxu0 0.0
    %545 = vmatprep.subr.mxu0 0.0
    %546 = vmatpush1.msra.mxu0 0.0
    %547 = vmatprep.subr.mxu0 0.0
    %548 = vmatpush1.msra.mxu0 0.0
    %549 = vmatprep.subr.mxu0 0.0
    %550 = vmatpush1.msra.mxu0 0.0
    %551 = vmatprep.subr.mxu0 0.0
    %552 = vmatpush1.msra.mxu0 0.0
    %553 = vmatprep.subr.mxu0 0.0
    %554 = vmatpush1.msra.mxu0 0.0
    %555 = vmatprep.subr.mxu0 0.0
    %556 = vmatpush1.msra.mxu0 0.0
    %557 = vmatprep.subr.mxu0 0.0
    %558 = vmatpush1.msra.mxu0 0.0
    %559 = vmatprep.subr.mxu0 0.0
    %560 = vmatpush1.msra.mxu0 0.0
    %561 = vmatprep.mubr.f32.mxu0 0.0
    %562 = vmatmul.mubr.f32.gmra.mrb[0].mxu0 %v298
    %v563 = vpop.f32.mrb[0].mxu0
    %v564 = vadd.f32 %v496, %v563
    %v565 = vpop.f32.mrb[0].mxu0
    %566 = vmatprep.mubr.f32.mxu0 0.0
    %567 = vmatmul.mubr.f32.gmra.mrb[0].mxu0 %v301
    %v568 = vpop.f32.mrb[0].mxu0
    %v569 = vadd.f32 %v496, %v568
    %v570 = vpop.f32.mrb[0].mxu0
    %571 = vmatprep.mubr.f32.mxu0 0.0
    %572 = vmatmul.mubr.f32.gmra.mrb[0].mxu0 %v304
    %v573 = vpop.f32.mrb[0].mxu0
    %v574 = vadd.f32 %v496, %v573
    %v575 = vpop.f32.mrb[0].mxu0
    %576 = vmatprep.mubr.f32.mxu0 0.0
    %577 = vmatmul.mubr.f32.gmra.mrb[0].mxu0 %v307
    %v578 = vpop.f32.mrb[0].mxu0
    %v579 = vadd.f32 %v496, %v578
    %v580 = vpop.f32.mrb[0].mxu0
    %581 = vdwg.mxu0
    %vm582 = vcmask 130048
    %v584 = vsel %vm582, %v376, 0
    %v587 = vsel %vm582, %v470, 0
    %589 = vmatprep.subr.mxu0 0.0
    %590 = vmatpush1.xpose.msra.mxu0 %v587
    %591 = vmatprep.subr.mxu0 0.0
    %592 = vmatpush1.xpose.msra.mxu0 0.0
    %593 = vmatprep.subr.mxu0 0.0
    %594 = vmatpush1.xpose.msra.mxu0 0.0
    %595 = vmatprep.subr.mxu0 0.0
    %596 = vmatpush1.xpose.msra.mxu0 0.0
    %597 = vmatprep.subr.mxu0 0.0
    %598 = vmatpush1.xpose.msra.mxu0 0.0
    %599 = vmatprep.subr.mxu0 0.0
    %600 = vmatpush1.xpose.msra.mxu0 0.0
    %601 = vmatprep.subr.mxu0 0.0
    %602 = vmatpush1.xpose.msra.mxu0 0.0
    %603 = vmatprep.subr.mxu0 0.0
    %604 = vmatpush1.xpose.msra.mxu0 0.0
    %605 = vmatprep.subr.mxu0 0.0
    %606 = vmatpush1.xpose.msra.mxu0 0.0
    %607 = vmatprep.subr.mxu0 0.0
    %608 = vmatpush1.xpose.msra.mxu0 0.0
    %609 = vmatprep.subr.mxu0 0.0
    %610 = vmatpush1.xpose.msra.mxu0 0.0
    %611 = vmatprep.subr.mxu0 0.0
    %612 = vmatpush1.xpose.msra.mxu0 0.0
    %613 = vmatprep.subr.mxu0 0.0
    %614 = vmatpush1.xpose.msra.mxu0 0.0
    %615 = vmatprep.subr.mxu0 0.0
    %616 = vmatpush1.xpose.msra.mxu0 0.0
    %617 = vmatprep.subr.mxu0 0.0
    %618 = vmatpush1.xpose.msra.mxu0 0.0
    %619 = vmatprep.subr.mxu0 0.0
    %620 = vmatpush1.xpose.msra.mxu0 0.0
    %621 = vmatprep.subr.mxu0 0.0
    %622 = vmatpush1.xpose.msra.mxu0 0.0
    %623 = vmatprep.subr.mxu0 0.0
    %624 = vmatpush1.xpose.msra.mxu0 0.0
    %625 = vmatprep.subr.mxu0 0.0
    %626 = vmatpush1.xpose.msra.mxu0 0.0
    %627 = vmatprep.subr.mxu0 0.0
    %628 = vmatpush1.xpose.msra.mxu0 0.0
    %629 = vmatprep.subr.mxu0 0.0
    %630 = vmatpush1.xpose.msra.mxu0 0.0
    %631 = vmatprep.subr.mxu0 0.0
    %632 = vmatpush1.xpose.msra.mxu0 0.0
    %633 = vmatprep.subr.mxu0 0.0
    %634 = vmatpush1.xpose.msra.mxu0 0.0
    %635 = vmatprep.subr.mxu0 0.0
    %636 = vmatpush1.xpose.msra.mxu0 0.0
    %637 = vmatprep.subr.mxu0 0.0
    %638 = vmatpush1.xpose.msra.mxu0 0.0
    %639 = vmatprep.subr.mxu0 0.0
    %640 = vmatpush1.xpose.msra.mxu0 0.0
    %641 = vmatprep.subr.mxu0 0.0
    %642 = vmatpush1.xpose.msra.mxu0 0.0
    %643 = vmatprep.subr.mxu0 0.0
    %644 = vmatpush1.xpose.msra.mxu0 0.0
    %645 = vmatprep.subr.mxu0 0.0
    %646 = vmatpush1.xpose.msra.mxu0 0.0
    %647 = vmatprep.subr.mxu0 0.0
    %648 = vmatpush1.xpose.msra.mxu0 0.0
    %649 = vmatprep.subr.mxu0 0.0
    %650 = vmatpush1.xpose.msra.mxu0 0.0
    %651 = vmatprep.subr.mxu0 0.0
    %652 = vmatpush1.xpose.msra.mxu0 0.0
    %653 = vmatprep.mubr.f32.mxu0 0.0
    %654 = vmatmul.mubr.f32.gmra.mrb[0].mxu0 %v584
    %v655 = vpop.f32.mrb[0].mxu0
    %v656 = vadd.f32 0.0, %v655
    %v657 = vpop.f32.mrb[0].mxu0
    %658 = vdwg.mxu0
    %v660 = vsel %vm582, %v381, 0
    %v663 = vsel %vm582, %v475, 0
    %665 = vmatprep.subr.mxu0 0.0
    %666 = vmatpush1.xpose.msra.mxu0 %v663
    %667 = vmatprep.subr.mxu0 0.0
    %668 = vmatpush1.xpose.msra.mxu0 0.0
    %669 = vmatprep.subr.mxu0 0.0
    %670 = vmatpush1.xpose.msra.mxu0 0.0
    %671 = vmatprep.subr.mxu0 0.0
    %672 = vmatpush1.xpose.msra.mxu0 0.0
    %673 = vmatprep.subr.mxu0 0.0
    %674 = vmatpush1.xpose.msra.mxu0 0.0
    %675 = vmatprep.subr.mxu0 0.0
    %676 = vmatpush1.xpose.msra.mxu0 0.0
    %677 = vmatprep.subr.mxu0 0.0
    %678 = vmatpush1.xpose.msra.mxu0 0.0
    %679 = vmatprep.subr.mxu0 0.0
    %680 = vmatpush1.xpose.msra.mxu0 0.0
    %681 = vmatprep.subr.mxu0 0.0
    %682 = vmatpush1.xpose.msra.mxu0 0.0
    %683 = vmatprep.subr.mxu0 0.0
    %684 = vmatpush1.xpose.msra.mxu0 0.0
    %685 = vmatprep.subr.mxu0 0.0
    %686 = vmatpush1.xpose.msra.mxu0 0.0
    %687 = vmatprep.subr.mxu0 0.0
    %688 = vmatpush1.xpose.msra.mxu0 0.0
    %689 = vmatprep.subr.mxu0 0.0
    %690 = vmatpush1.xpose.msra.mxu0 0.0
    %691 = vmatprep.subr.mxu0 0.0
    %692 = vmatpush1.xpose.msra.mxu0 0.0
    %693 = vmatprep.subr.mxu0 0.0
    %694 = vmatpush1.xpose.msra.mxu0 0.0
    %695 = vmatprep.subr.mxu0 0.0
    %696 = vmatpush1.xpose.msra.mxu0 0.0
    %697 = vmatprep.subr.mxu0 0.0
    %698 = vmatpush1.xpose.msra.mxu0 0.0
    %699 = vmatprep.subr.mxu0 0.0
    %700 = vmatpush1.xpose.msra.mxu0 0.0
    %701 = vmatprep.subr.mxu0 0.0
    %702 = vmatpush1.xpose.msra.mxu0 0.0
    %703 = vmatprep.subr.mxu0 0.0
    %704 = vmatpush1.xpose.msra.mxu0 0.0
    %705 = vmatprep.subr.mxu0 0.0
    %706 = vmatpush1.xpose.msra.mxu0 0.0
    %707 = vmatprep.subr.mxu0 0.0
    %708 = vmatpush1.xpose.msra.mxu0 0.0
    %709 = vmatprep.subr.mxu0 0.0
    %710 = vmatpush1.xpose.msra.mxu0 0.0
    %711 = vmatprep.subr.mxu0 0.0
    %712 = vmatpush1.xpose.msra.mxu0 0.0
    %713 = vmatprep.subr.mxu0 0.0
    %714 = vmatpush1.xpose.msra.mxu0 0.0
    %715 = vmatprep.subr.mxu0 0.0
    %716 = vmatpush1.xpose.msra.mxu0 0.0
    %717 = vmatprep.subr.mxu0 0.0
    %718 = vmatpush1.xpose.msra.mxu0 0.0
    %719 = vmatprep.subr.mxu0 0.0
    %720 = vmatpush1.xpose.msra.mxu0 0.0
    %721 = vmatprep.subr.mxu0 0.0
    %722 = vmatpush1.xpose.msra.mxu0 0.0
    %723 = vmatprep.subr.mxu0 0.0
    %724 = vmatpush1.xpose.msra.mxu0 0.0
    %725 = vmatprep.subr.mxu0 0.0
    %726 = vmatpush1.xpose.msra.mxu0 0.0
    %727 = vmatprep.subr.mxu0 0.0
    %728 = vmatpush1.xpose.msra.mxu0 0.0
    %729 = vmatprep.mubr.f32.mxu0 0.0
    %730 = vmatmul.mubr.f32.gmra.mrb[0].mxu0 %v660
    %v731 = vpop.f32.mrb[0].mxu0
    %v732 = vadd.f32 0.0, %v731
    %v733 = vpop.f32.mrb[0].mxu0
    %734 = vdwg.mxu0
    %v736 = vsel %vm582, %v386, 0
    %v739 = vsel %vm582, %v480, 0
    %741 = vmatprep.subr.mxu0 0.0
    %742 = vmatpush1.xpose.msra.mxu0 %v739
    %743 = vmatprep.subr.mxu0 0.0
    %744 = vmatpush1.xpose.msra.mxu0 0.0
    %745 = vmatprep.subr.mxu0 0.0
    %746 = vmatpush1.xpose.msra.mxu0 0.0
    %747 = vmatprep.subr.mxu0 0.0
    %748 = vmatpush1.xpose.msra.mxu0 0.0
    %749 = vmatprep.subr.mxu0 0.0
    %750 = vmatpush1.xpose.msra.mxu0 0.0
    %751 = vmatprep.subr.mxu0 0.0
    %752 = vmatpush1.xpose.msra.mxu0 0.0
    %753 = vmatprep.subr.mxu0 0.0
    %754 = vmatpush1.xpose.msra.mxu0 0.0
    %755 = vmatprep.subr.mxu0 0.0
    %756 = vmatpush1.xpose.msra.mxu0 0.0
    %757 = vmatprep.subr.mxu0 0.0
    %758 = vmatpush1.xpose.msra.mxu0 0.0
    %759 = vmatprep.subr.mxu0 0.0
    %760 = vmatpush1.xpose.msra.mxu0 0.0
    %761 = vmatprep.subr.mxu0 0.0
    %762 = vmatpush1.xpose.msra.mxu0 0.0
    %763 = vmatprep.subr.mxu0 0.0
    %764 = vmatpush1.xpose.msra.mxu0 0.0
    %765 = vmatprep.subr.mxu0 0.0
    %766 = vmatpush1.xpose.msra.mxu0 0.0
    %767 = vmatprep.subr.mxu0 0.0
    %768 = vmatpush1.xpose.msra.mxu0 0.0
    %769 = vmatprep.subr.mxu0 0.0
    %770 = vmatpush1.xpose.msra.mxu0 0.0
    %771 = vmatprep.subr.mxu0 0.0
    %772 = vmatpush1.xpose.msra.mxu0 0.0
    %773 = vmatprep.subr.mxu0 0.0
    %774 = vmatpush1.xpose.msra.mxu0 0.0
    %775 = vmatprep.subr.mxu0 0.0
    %776 = vmatpush1.xpose.msra.mxu0 0.0
    %777 = vmatprep.subr.mxu0 0.0
    %778 = vmatpush1.xpose.msra.mxu0 0.0
    %779 = vmatprep.subr.mxu0 0.0
    %780 = vmatpush1.xpose.msra.mxu0 0.0
    %781 = vmatprep.subr.mxu0 0.0
    %782 = vmatpush1.xpose.msra.mxu0 0.0
    %783 = vmatprep.subr.mxu0 0.0
    %784 = vmatpush1.xpose.msra.mxu0 0.0
    %785 = vmatprep.subr.mxu0 0.0
    %786 = vmatpush1.xpose.msra.mxu0 0.0
    %787 = vmatprep.subr.mxu0 0.0
    %788 = vmatpush1.xpose.msra.mxu0 0.0
    %789 = vmatprep.subr.mxu0 0.0
    %790 = vmatpush1.xpose.msra.mxu0 0.0
    %791 = vmatprep.subr.mxu0 0.0
    %792 = vmatpush1.xpose.msra.mxu0 0.0
    %793 = vmatprep.subr.mxu0 0.0
    %794 = vmatpush1.xpose.msra.mxu0 0.0
    %795 = vmatprep.subr.mxu0 0.0
    %796 = vmatpush1.xpose.msra.mxu0 0.0
    %797 = vmatprep.subr.mxu0 0.0
    %798 = vmatpush1.xpose.msra.mxu0 0.0
    %799 = vmatprep.subr.mxu0 0.0
    %800 = vmatpush1.xpose.msra.mxu0 0.0
    %801 = vmatprep.subr.mxu0 0.0
    %802 = vmatpush1.xpose.msra.mxu0 0.0
    %803 = vmatprep.subr.mxu0 0.0
    %804 = vmatpush1.xpose.msra.mxu0 0.0
    %805 = vmatprep.mubr.f32.mxu0 0.0
    %806 = vmatmul.mubr.f32.gmra.mrb[0].mxu0 %v736
    %v807 = vpop.f32.mrb[0].mxu0
    %v808 = vadd.f32 0.0, %v807
    %v809 = vpop.f32.mrb[0].mxu0
    %810 = vdwg.mxu0
    %v812 = vsel %vm582, %v391, 0
    %v815 = vsel %vm582, %v485, 0
    %817 = vmatprep.subr.mxu0 0.0
    %818 = vmatpush1.xpose.msra.mxu0 %v815
    %819 = vmatprep.subr.mxu0 0.0
    %820 = vmatpush1.xpose.msra.mxu0 0.0
    %821 = vmatprep.subr.mxu0 0.0
    %822 = vmatpush1.xpose.msra.mxu0 0.0
    %823 = vmatprep.subr.mxu0 0.0
    %824 = vmatpush1.xpose.msra.mxu0 0.0
    %825 = vmatprep.subr.mxu0 0.0
    %826 = vmatpush1.xpose.msra.mxu0 0.0
    %827 = vmatprep.subr.mxu0 0.0
    %828 = vmatpush1.xpose.msra.mxu0 0.0
    %829 = vmatprep.subr.mxu0 0.0
    %830 = vmatpush1.xpose.msra.mxu0 0.0
    %831 = vmatprep.subr.mxu0 0.0
    %832 = vmatpush1.xpose.msra.mxu0 0.0
    %833 = vmatprep.subr.mxu0 0.0
    %834 = vmatpush1.xpose.msra.mxu0 0.0
    %835 = vmatprep.subr.mxu0 0.0
    %836 = vmatpush1.xpose.msra.mxu0 0.0
    %837 = vmatprep.subr.mxu0 0.0
    %838 = vmatpush1.xpose.msra.mxu0 0.0
    %839 = vmatprep.subr.mxu0 0.0
    %840 = vmatpush1.xpose.msra.mxu0 0.0
    %841 = vmatprep.subr.mxu0 0.0
    %842 = vmatpush1.xpose.msra.mxu0 0.0
    %843 = vmatprep.subr.mxu0 0.0
    %844 = vmatpush1.xpose.msra.mxu0 0.0
    %845 = vmatprep.subr.mxu0 0.0
    %846 = vmatpush1.xpose.msra.mxu0 0.0
    %847 = vmatprep.subr.mxu0 0.0
    %848 = vmatpush1.xpose.msra.mxu0 0.0
    %849 = vmatprep.subr.mxu0 0.0
    %850 = vmatpush1.xpose.msra.mxu0 0.0
    %851 = vmatprep.subr.mxu0 0.0
    %852 = vmatpush1.xpose.msra.mxu0 0.0
    %853 = vmatprep.subr.mxu0 0.0
    %854 = vmatpush1.xpose.msra.mxu0 0.0
    %855 = vmatprep.subr.mxu0 0.0
    %856 = vmatpush1.xpose.msra.mxu0 0.0
    %857 = vmatprep.subr.mxu0 0.0
    %858 = vmatpush1.xpose.msra.mxu0 0.0
    %859 = vmatprep.subr.mxu0 0.0
    %860 = vmatpush1.xpose.msra.mxu0 0.0
    %861 = vmatprep.subr.mxu0 0.0
    %862 = vmatpush1.xpose.msra.mxu0 0.0
    %863 = vmatprep.subr.mxu0 0.0
    %864 = vmatpush1.xpose.msra.mxu0 0.0
    %865 = vmatprep.subr.mxu0 0.0
    %866 = vmatpush1.xpose.msra.mxu0 0.0
    %867 = vmatprep.subr.mxu0 0.0
    %868 = vmatpush1.xpose.msra.mxu0 0.0
    %869 = vmatprep.subr.mxu0 0.0
    %870 = vmatpush1.xpose.msra.mxu0 0.0
    %871 = vmatprep.subr.mxu0 0.0
    %872 = vmatpush1.xpose.msra.mxu0 0.0
    %873 = vmatprep.subr.mxu0 0.0
    %874 = vmatpush1.xpose.msra.mxu0 0.0
    %875 = vmatprep.subr.mxu0 0.0
    %876 = vmatpush1.xpose.msra.mxu0 0.0
    %877 = vmatprep.subr.mxu0 0.0
    %878 = vmatpush1.xpose.msra.mxu0 0.0
    %879 = vmatprep.subr.mxu0 0.0
    %880 = vmatpush1.xpose.msra.mxu0 0.0
    %881 = vmatprep.mubr.f32.mxu0 0.0
    %882 = vmatmul.mubr.f32.gmra.mrb[0].mxu0 %v812
    %v883 = vpop.f32.mrb[0].mxu0
    %v884 = vadd.f32 0.0, %v883
    %v885 = vpop.f32.mrb[0].mxu0
    %886 = vdwg.mxu0
    %v887 = vmul.f32 %v656, 0.25
    %v888 = vmul.f32 %v732, 0.25
    %v889 = vmul.f32 %v808, 0.25
    %v890 = vmul.f32 %v884, 0.25
    %v891 = vlaneseq
    %v892 = vshrl.u32 %v891, 7
    %v893 = vsub.s32 0, %v892
    %v894 = vrot.slane %v278, %v893
    %v895 = vlaneseq
    %v896 = vshrl.u32 %v895, 7
    %v897 = vsub.s32 0, %v896
    %v898 = vrot.slane %v285, %v897
    %v899 = vlaneseq
    %v900 = vshrl.u32 %v899, 7
    %v901 = vsub.s32 0, %v900
    %v902 = vrot.slane %v286, %v901
    %v903 = vlaneseq
    %v904 = vshrl.u32 %v903, 7
    %v905 = vsub.s32 0, %v904
    %v906 = vrot.slane %v287, %v905
    %v911 = vadd.f32 %v887, %v894
    %v912 = vadd.f32 %v888, %v898
    %v913 = vadd.f32 %v889, %v902
    %v914 = vadd.f32 %v890, %v906
    %vm915 = vcmask 64512
    %v916 = vsel %vm915, %v911, -inf
    %917 = vmax.xlane.f32.xlu0 %v916
    %v918 = vpop.xlane.xlu0 %917
    %v919 = vsel %vm915, %v912, -inf
    %920 = vmax.xlane.f32.xlu0 %v919
    %v921 = vpop.xlane.xlu0 %920
    %v922 = vsel %vm915, %v913, -inf
    %923 = vmax.xlane.f32.xlu0 %v922
    %v924 = vpop.xlane.xlu0 %923
    %v925 = vsel %vm915, %v914, -inf
    %926 = vmax.xlane.f32.xlu0 %v925
    %v927 = vpop.xlane.xlu0 %926
    %v928 = vsub.f32 %v911, %v918
    %v929 = vsub.f32 %v912, %v921
    %v930 = vsub.f32 %v913, %v924
    %v931 = vsub.f32 %v914, %v927
    %v932 = vmul.f32 %v928, 1.442695
    %v933 = vpow.pop %v932
    %v934 = vmul.f32 %v929, 1.442695
    %v935 = vpow.pop %v934
    %v936 = vmul.f32 %v930, 1.442695
    %v937 = vpow.pop %v936
    %v938 = vmul.f32 %v931, 1.442695
    %v939 = vpow.pop %v938
    %v940 = vsel %vm915, %v933, 0.0
    %941 = vadd.xlane.f32.xlu0 %v940
    %v942 = vpop.xlane.xlu0 %941
    %v943 = vsel %vm915, %v935, 0.0
    %944 = vadd.xlane.f32.xlu0 %v943
    %v945 = vpop.xlane.xlu0 %944
    %v946 = vsel %vm915, %v937, 0.0
    %947 = vadd.xlane.f32.xlu0 %v946
    %v948 = vpop.xlane.xlu0 %947
    %v949 = vsel %vm915, %v939, 0.0
    %950 = vadd.xlane.f32.xlu0 %v949
    %v951 = vpop.xlane.xlu0 %950
    %v952 = vrcp.pop %v942
    %v953 = vrcp.pop %v945
    %v954 = vrcp.pop %v948
    %v955 = vrcp.pop %v951
    %v956 = vmul.f32 %v933, %v952
    %v957 = vmul.f32 %v935, %v953
    %v958 = vmul.f32 %v937, %v954
    %v959 = vmul.f32 %v939, %v955
    %v961 = vsel %vm915, %v956, 0
    %963 = vmatprep.subr.mxu0 0.0
    %964 = vmatpush1.msra.mxu0 %v564
    %965 = vmatprep.subr.mxu0 0.0
    %966 = vmatpush1.msra.mxu0 0.0
    %967 = vmatprep.subr.mxu0 0.0
    %968 = vmatpush1.msra.mxu0 0.0
    %969 = vmatprep.subr.mxu0 0.0
    %970 = vmatpush1.msra.mxu0 0.0
    %971 = vmatprep.subr.mxu0 0.0
    %972 = vmatpush1.msra.mxu0 0.0
    %973 = vmatprep.subr.mxu0 0.0
    %974 = vmatpush1.msra.mxu0 0.0
    %975 = vmatprep.subr.mxu0 0.0
    %976 = vmatpush1.msra.mxu0 0.0
    %977 = vmatprep.subr.mxu0 0.0
    %978 = vmatpush1.msra.mxu0 0.0
    %979 = vmatprep.subr.mxu0 0.0
    %980 = vmatpush1.msra.mxu0 0.0
    %981 = vmatprep.subr.mxu0 0.0
    %982 = vmatpush1.msra.mxu0 0.0
    %983 = vmatprep.subr.mxu0 0.0
    %984 = vmatpush1.msra.mxu0 0.0
    %985 = vmatprep.subr.mxu0 0.0
    %986 = vmatpush1.msra.mxu0 0.0
    %987 = vmatprep.subr.mxu0 0.0
    %988 = vmatpush1.msra.mxu0 0.0
    %989 = vmatprep.subr.mxu0 0.0
    %990 = vmatpush1.msra.mxu0 0.0
    %991 = vmatprep.subr.mxu0 0.0
    %992 = vmatpush1.msra.mxu0 0.0
    %993 = vmatprep.subr.mxu0 0.0
    %994 = vmatpush1.msra.mxu0 0.0
    %995 = vmatprep.subr.mxu0 0.0
    %996 = vmatpush1.msra.mxu0 0.0
    %997 = vmatprep.subr.mxu0 0.0
    %998 = vmatpush1.msra.mxu0 0.0
    %999 = vmatprep.subr.mxu0 0.0
    %1000 = vmatpush1.msra.mxu0 0.0
    %1001 = vmatprep.subr.mxu0 0.0
    %1002 = vmatpush1.msra.mxu0 0.0
    %1003 = vmatprep.subr.mxu0 0.0
    %1004 = vmatpush1.msra.mxu0 0.0
    %1005 = vmatprep.subr.mxu0 0.0
    %1006 = vmatpush1.msra.mxu0 0.0
    %1007 = vmatprep.subr.mxu0 0.0
    %1008 = vmatpush1.msra.mxu0 0.0
    %1009 = vmatprep.subr.mxu0 0.0
    %1010 = vmatpush1.msra.mxu0 0.0
    %1011 = vmatprep.subr.mxu0 0.0
    %1012 = vmatpush1.msra.mxu0 0.0
    %1013 = vmatprep.subr.mxu0 0.0
    %1014 = vmatpush1.msra.mxu0 0.0
    %1015 = vmatprep.subr.mxu0 0.0
    %1016 = vmatpush1.msra.mxu0 0.0
    %1017 = vmatprep.subr.mxu0 0.0
    %1018 = vmatpush1.msra.mxu0 0.0
    %1019 = vmatprep.subr.mxu0 0.0
    %1020 = vmatpush1.msra.mxu0 0.0
    %1021 = vmatprep.subr.mxu0 0.0
    %1022 = vmatpush1.msra.mxu0 0.0
    %1023 = vmatprep.subr.mxu0 0.0
    %1024 = vmatpush1.msra.mxu0 0.0
    %1025 = vmatprep.subr.mxu0 0.0
    %1026 = vmatpush1.msra.mxu0 0.0
    %1027 = vmatprep.mubr.f32.mxu0 0.0
    %1028 = vmatmul.mubr.f32.gmra.mrb[0].mxu0 %v961
    %v1029 = vpop.f32.mrb[0].mxu0
    %v1030 = vadd.f32 0.0, %v1029
    %v1031 = vpop.f32.mrb[0].mxu0
    %1032 = vdwg.mxu0
    %v1034 = vsel %vm915, %v957, 0
    %1036 = vmatprep.subr.mxu0 0.0
    %1037 = vmatpush1.msra.mxu0 %v569
    %1038 = vmatprep.subr.mxu0 0.0
    %1039 = vmatpush1.msra.mxu0 0.0
    %1040 = vmatprep.subr.mxu0 0.0
    %1041 = vmatpush1.msra.mxu0 0.0
    %1042 = vmatprep.subr.mxu0 0.0
    %1043 = vmatpush1.msra.mxu0 0.0
    %1044 = vmatprep.subr.mxu0 0.0
    %1045 = vmatpush1.msra.mxu0 0.0
    %1046 = vmatprep.subr.mxu0 0.0
    %1047 = vmatpush1.msra.mxu0 0.0
    %1048 = vmatprep.subr.mxu0 0.0
    %1049 = vmatpush1.msra.mxu0 0.0
    %1050 = vmatprep.subr.mxu0 0.0
    %1051 = vmatpush1.msra.mxu0 0.0
    %1052 = vmatprep.subr.mxu0 0.0
    %1053 = vmatpush1.msra.mxu0 0.0
    %1054 = vmatprep.subr.mxu0 0.0
    %1055 = vmatpush1.msra.mxu0 0.0
    %1056 = vmatprep.subr.mxu0 0.0
    %1057 = vmatpush1.msra.mxu0 0.0
    %1058 = vmatprep.subr.mxu0 0.0
    %1059 = vmatpush1.msra.mxu0 0.0
    %1060 = vmatprep.subr.mxu0 0.0
    %1061 = vmatpush1.msra.mxu0 0.0
    %1062 = vmatprep.subr.mxu0 0.0
    %1063 = vmatpush1.msra.mxu0 0.0
    %1064 = vmatprep.subr.mxu0 0.0
    %1065 = vmatpush1.msra.mxu0 0.0
    %1066 = vmatprep.subr.mxu0 0.0
    %1067 = vmatpush1.msra.mxu0 0.0
    %1068 = vmatprep.subr.mxu0 0.0
    %1069 = vmatpush1.msra.mxu0 0.0
    %1070 = vmatprep.subr.mxu0 0.0
    %1071 = vmatpush1.msra.mxu0 0.0
    %1072 = vmatprep.subr.mxu0 0.0
    %1073 = vmatpush1.msra.mxu0 0.0
    %1074 = vmatprep.subr.mxu0 0.0
    %1075 = vmatpush1.msra.mxu0 0.0
    %1076 = vmatprep.subr.mxu0 0.0
    %1077 = vmatpush1.msra.mxu0 0.0
    %1078 = vmatprep.subr.mxu0 0.0
    %1079 = vmatpush1.msra.mxu0 0.0
    %1080 = vmatprep.subr.mxu0 0.0
    %1081 = vmatpush1.msra.mxu0 0.0
    %1082 = vmatprep.subr.mxu0 0.0
    %1083 = vmatpush1.msra.mxu0 0.0
    %1084 = vmatprep.subr.mxu0 0.0
    %1085 = vmatpush1.msra.mxu0 0.0
    %1086 = vmatprep.subr.mxu0 0.0
    %1087 = vmatpush1.msra.mxu0 0.0
    %1088 = vmatprep.subr.mxu0 0.0
    %1089 = vmatpush1.msra.mxu0 0.0
    %1090 = vmatprep.subr.mxu0 0.0
    %1091 = vmatpush1.msra.mxu0 0.0
    %1092 = vmatprep.subr.mxu0 0.0
    %1093 = vmatpush1.msra.mxu0 0.0
    %1094 = vmatprep.subr.mxu0 0.0
    %1095 = vmatpush1.msra.mxu0 0.0
    %1096 = vmatprep.subr.mxu0 0.0
    %1097 = vmatpush1.msra.mxu0 0.0
    %1098 = vmatprep.subr.mxu0 0.0
    %1099 = vmatpush1.msra.mxu0 0.0
    %1100 = vmatprep.mubr.f32.mxu0 0.0
    %1101 = vmatmul.mubr.f32.gmra.mrb[0].mxu0 %v1034
    %v1102 = vpop.f32.mrb[0].mxu0
    %v1103 = vadd.f32 0.0, %v1102
    %v1104 = vpop.f32.mrb[0].mxu0
    %1105 = vdwg.mxu0
    %v1107 = vsel %vm915, %v958, 0
    %1109 = vmatprep.subr.mxu0 0.0
    %1110 = vmatpush1.msra.mxu0 %v574
    %1111 = vmatprep.subr.mxu0 0.0
    %1112 = vmatpush1.msra.mxu0 0.0
    %1113 = vmatprep.subr.mxu0 0.0
    %1114 = vmatpush1.msra.mxu0 0.0
    %1115 = vmatprep.subr.mxu0 0.0
    %1116 = vmatpush1.msra.mxu0 0.0
    %1117 = vmatprep.subr.mxu0 0.0
    %1118 = vmatpush1.msra.mxu0 0.0
    %1119 = vmatprep.subr.mxu0 0.0
    %1120 = vmatpush1.msra.mxu0 0.0
    %1121 = vmatprep.subr.mxu0 0.0
    %1122 = vmatpush1.msra.mxu0 0.0
    %1123 = vmatprep.subr.mxu0 0.0
    %1124 = vmatpush1.msra.mxu0 0.0
    %1125 = vmatprep.subr.mxu0 0.0
    %1126 = vmatpush1.msra.mxu0 0.0
    %1127 = vmatprep.subr.mxu0 0.0
    %1128 = vmatpush1.msra.mxu0 0.0
    %1129 = vmatprep.subr.mxu0 0.0
    %1130 = vmatpush1.msra.mxu0 0.0
    %1131 = vmatprep.subr.mxu0 0.0
    %1132 = vmatpush1.msra.mxu0 0.0
    %1133 = vmatprep.subr.mxu0 0.0
    %1134 = vmatpush1.msra.mxu0 0.0
    %1135 = vmatprep.subr.mxu0 0.0
    %1136 = vmatpush1.msra.mxu0 0.0
    %1137 = vmatprep.subr.mxu0 0.0
    %1138 = vmatpush1.msra.mxu0 0.0
    %1139 = vmatprep.subr.mxu0 0.0
    %1140 = vmatpush1.msra.mxu0 0.0
    %1141 = vmatprep.subr.mxu0 0.0
    %1142 = vmatpush1.msra.mxu0 0.0
    %1143 = vmatprep.subr.mxu0 0.0
    %1144 = vmatpush1.msra.mxu0 0.0
    %1145 = vmatprep.subr.mxu0 0.0
    %1146 = vmatpush1.msra.mxu0 0.0
    %1147 = vmatprep.subr.mxu0 0.0
    %1148 = vmatpush1.msra.mxu0 0.0
    %1149 = vmatprep.subr.mxu0 0.0
    %1150 = vmatpush1.msra.mxu0 0.0
    %1151 = vmatprep.subr.mxu0 0.0
    %1152 = vmatpush1.msra.mxu0 0.0
    %1153 = vmatprep.subr.mxu0 0.0
    %1154 = vmatpush1.msra.mxu0 0.0
    %1155 = vmatprep.subr.mxu0 0.0
    %1156 = vmatpush1.msra.mxu0 0.0
    %1157 = vmatprep.subr.mxu0 0.0
    %1158 = vmatpush1.msra.mxu0 0.0
    %1159 = vmatprep.subr.mxu0 0.0
    %1160 = vmatpush1.msra.mxu0 0.0
    %1161 = vmatprep.subr.mxu0 0.0
    %1162 = vmatpush1.msra.mxu0 0.0
    %1163 = vmatprep.subr.mxu0 0.0
    %1164 = vmatpush1.msra.mxu0 0.0
    %1165 = vmatprep.subr.mxu0 0.0
    %1166 = vmatpush1.msra.mxu0 0.0
    %1167 = vmatprep.subr.mxu0 0.0
    %1168 = vmatpush1.msra.mxu0 0.0
    %1169 = vmatprep.subr.mxu0 0.0
    %1170 = vmatpush1.msra.mxu0 0.0
    %1171 = vmatprep.subr.mxu0 0.0
    %1172 = vmatpush1.msra.mxu0 0.0
    %1173 = vmatprep.mubr.f32.mxu0 0.0
    %1174 = vmatmul.mubr.f32.gmra.mrb[0].mxu0 %v1107
    %v1175 = vpop.f32.mrb[0].mxu0
    %v1176 = vadd.f32 0.0, %v1175
    %v1177 = vpop.f32.mrb[0].mxu0
    %1178 = vdwg.mxu0
    %v1180 = vsel %vm915, %v959, 0
    %1182 = vmatprep.subr.mxu0 0.0
    %1183 = vmatpush1.msra.mxu0 %v579
    %1184 = vmatprep.subr.mxu0 0.0
    %1185 = vmatpush1.msra.mxu0 0.0
    %1186 = vmatprep.subr.mxu0 0.0
    %1187 = vmatpush1.msra.mxu0 0.0
    %1188 = vmatprep.subr.mxu0 0.0
    %1189 = vmatpush1.msra.mxu0 0.0
    %1190 = vmatprep.subr.mxu0 0.0
    %1191 = vmatpush1.msra.mxu0 0.0
    %1192 = vmatprep.subr.mxu0 0.0
    %1193 = vmatpush1.msra.mxu0 0.0
    %1194 = vmatprep.subr.mxu0 0.0
    %1195 = vmatpush1.msra.mxu0 0.0
    %1196 = vmatprep.subr.mxu0 0.0
    %1197 = vmatpush1.msra.mxu0 0.0
    %1198 = vmatprep.subr.mxu0 0.0
    %1199 = vmatpush1.msra.mxu0 0.0
    %1200 = vmatprep.subr.mxu0 0.0
    %1201 = vmatpush1.msra.mxu0 0.0
    %1202 = vmatprep.subr.mxu0 0.0
    %1203 = vmatpush1.msra.mxu0 0.0
    %1204 = vmatprep.subr.mxu0 0.0
    %1205 = vmatpush1.msra.mxu0 0.0
    %1206 = vmatprep.subr.mxu0 0.0
    %1207 = vmatpush1.msra.mxu0 0.0
    %1208 = vmatprep.subr.mxu0 0.0
    %1209 = vmatpush1.msra.mxu0 0.0
    %1210 = vmatprep.subr.mxu0 0.0
    %1211 = vmatpush1.msra.mxu0 0.0
    %1212 = vmatprep.subr.mxu0 0.0
    %1213 = vmatpush1.msra.mxu0 0.0
    %1214 = vmatprep.subr.mxu0 0.0
    %1215 = vmatpush1.msra.mxu0 0.0
    %1216 = vmatprep.subr.mxu0 0.0
    %1217 = vmatpush1.msra.mxu0 0.0
    %1218 = vmatprep.subr.mxu0 0.0
    %1219 = vmatpush1.msra.mxu0 0.0
    %1220 = vmatprep.subr.mxu0 0.0
    %1221 = vmatpush1.msra.mxu0 0.0
    %1222 = vmatprep.subr.mxu0 0.0
    %1223 = vmatpush1.msra.mxu0 0.0
    %1224 = vmatprep.subr.mxu0 0.0
    %1225 = vmatpush1.msra.mxu0 0.0
    %1226 = vmatprep.subr.mxu0 0.0
    %1227 = vmatpush1.msra.mxu0 0.0
    %1228 = vmatprep.subr.mxu0 0.0
    %1229 = vmatpush1.msra.mxu0 0.0
    %1230 = vmatprep.subr.mxu0 0.0
    %1231 = vmatpush1.msra.mxu0 0.0
    %1232 = vmatprep.subr.mxu0 0.0
    %1233 = vmatpush1.msra.mxu0 0.0
    %1234 = vmatprep.subr.mxu0 0.0
    %1235 = vmatpush1.msra.mxu0 0.0
    %1236 = vmatprep.subr.mxu0 0.0
    %1237 = vmatpush1.msra.mxu0 0.0
    %1238 = vmatprep.subr.mxu0 0.0
    %1239 = vmatpush1.msra.mxu0 0.0
    %1240 = vmatprep.subr.mxu0 0.0
    %1241 = vmatpush1.msra.mxu0 0.0
    %1242 = vmatprep.subr.mxu0 0.0
    %1243 = vmatpush1.msra.mxu0 0.0
    %1244 = vmatprep.subr.mxu0 0.0
    %1245 = vmatpush1.msra.mxu0 0.0
    %1246 = vmatprep.mubr.f32.mxu0 0.0
    %1247 = vmatmul.mubr.f32.gmra.mrb[0].mxu0 %v1180
    %v1248 = vpop.f32.mrb[0].mxu0
    %v1249 = vadd.f32 0.0, %v1248
    %v1250 = vpop.f32.mrb[0].mxu0
    %1251 = vdwg.mxu0
    %v1252 = vld [vmem:[#allocation6 + $0x160] sm:$0xff]
    %v1253 = vld [vmem:[#allocation6 + $0x168] sm:$0xff]
    %v1254 = vld [vmem:[#allocation6 + $0xc0] sm:$0xff]
    %v1255 = vld [vmem:[#allocation6 + $0xc8] sm:$0xff]
    %v1256 = vld [vmem:[#allocation6 + $0xd0] sm:$0xff]
    %v1257 = vld [vmem:[#allocation6 + $0xd8] sm:$0xff]
    %v1258 = vld [vmem:[#allocation6 + $0x1ea] sm:$0x1]
    %v1259 = vlaneseq
    %v1260 = vshrl.u32 %v1259, 7
    %v1261 = vsub.s32 0, %v1260
    %v1262 = vrot.slane %v1258, %v1261
    %1263 = vmatprep.subr.mxu0 0.0
    %1264 = vmatpush1.msra.mxu0 %v1254
    %1265 = vmatprep.subr.mxu0 0.0
    %1266 = vmatpush1.msra.mxu0 %v1255
    %1267 = vmatprep.subr.mxu0 0.0
    %1268 = vmatpush1.msra.mxu0 %v1256
    %1269 = vmatprep.subr.mxu0 0.0
    %1270 = vmatpush1.msra.mxu0 %v1257
    %1271 = vmatprep.subr.mxu0 0.0
    %1272 = vmatpush1.msra.mxu0 0.0
    %1273 = vmatprep.subr.mxu0 0.0
    %1274 = vmatpush1.msra.mxu0 0.0
    %1275 = vmatprep.subr.mxu0 0.0
    %1276 = vmatpush1.msra.mxu0 0.0
    %1277 = vmatprep.subr.mxu0 0.0
    %1278 = vmatpush1.msra.mxu0 0.0
    %1279 = vmatprep.subr.mxu0 0.0
    %1280 = vmatpush1.msra.mxu0 0.0
    %1281 = vmatprep.subr.mxu0 0.0
    %1282 = vmatpush1.msra.mxu0 0.0
    %1283 = vmatprep.subr.mxu0 0.0
    %1284 = vmatpush1.msra.mxu0 0.0
    %1285 = vmatprep.subr.mxu0 0.0
    %1286 = vmatpush1.msra.mxu0 0.0
    %1287 = vmatprep.subr.mxu0 0.0
    %1288 = vmatpush1.msra.mxu0 0.0
    %1289 = vmatprep.subr.mxu0 0.0
    %1290 = vmatpush1.msra.mxu0 0.0
    %1291 = vmatprep.subr.mxu0 0.0
    %1292 = vmatpush1.msra.mxu0 0.0
    %1293 = vmatprep.subr.mxu0 0.0
    %1294 = vmatpush1.msra.mxu0 0.0
    %1295 = vmatprep.subr.mxu0 0.0
    %1296 = vmatpush1.msra.mxu0 0.0
    %1297 = vmatprep.subr.mxu0 0.0
    %1298 = vmatpush1.msra.mxu0 0.0
    %1299 = vmatprep.subr.mxu0 0.0
    %1300 = vmatpush1.msra.mxu0 0.0
    %1301 = vmatprep.subr.mxu0 0.0
    %1302 = vmatpush1.msra.mxu0 0.0
    %1303 = vmatprep.subr.mxu0 0.0
    %1304 = vmatpush1.msra.mxu0 0.0
    %1305 = vmatprep.subr.mxu0 0.0
    %1306 = vmatpush1.msra.mxu0 0.0
    %1307 = vmatprep.subr.mxu0 0.0
    %1308 = vmatpush1.msra.mxu0 0.0
    %1309 = vmatprep.subr.mxu0 0.0
    %1310 = vmatpush1.msra.mxu0 0.0
    %1311 = vmatprep.subr.mxu0 0.0
    %1312 = vmatpush1.msra.mxu0 0.0
    %1313 = vmatprep.subr.mxu0 0.0
    %1314 = vmatpush1.msra.mxu0 0.0
    %1315 = vmatprep.subr.mxu0 0.0
    %1316 = vmatpush1.msra.mxu0 0.0
    %1317 = vmatprep.subr.mxu0 0.0
    %1318 = vmatpush1.msra.mxu0 0.0
    %1319 = vmatprep.subr.mxu0 0.0
    %1320 = vmatpush1.msra.mxu0 0.0
    %1321 = vmatprep.subr.mxu0 0.0
    %1322 = vmatpush1.msra.mxu0 0.0
    %1323 = vmatprep.subr.mxu0 0.0
    %1324 = vmatpush1.msra.mxu0 0.0
    %1325 = vmatprep.subr.mxu0 0.0
    %1326 = vmatpush1.msra.mxu0 0.0
    %1327 = vmatprep.mubr.f32.mxu0 0.0
    %1328 = vmatmul.mubr.f32.gmra.mrb[0].mxu0 %v298
    %v1329 = vpop.f32.mrb[0].mxu0
    %v1330 = vadd.f32 %v1262, %v1329
    %v1331 = vpop.f32.mrb[0].mxu0
    %1332 = vmatprep.mubr.f32.mxu0 0.0
    %1333 = vmatmul.mubr.f32.gmra.mrb[0].mxu0 %v301
    %v1334 = vpop.f32.mrb[0].mxu0
    %v1335 = vadd.f32 %v1262, %v1334
    %v1336 = vpop.f32.mrb[0].mxu0
    %1337 = vmatprep.mubr.f32.mxu0 0.0
    %1338 = vmatmul.mubr.f32.gmra.mrb[0].mxu0 %v304
    %v1339 = vpop.f32.mrb[0].mxu0
    %v1340 = vadd.f32 %v1262, %v1339
    %v1341 = vpop.f32.mrb[0].mxu0
    %1342 = vmatprep.mubr.f32.mxu0 0.0
    %1343 = vmatmul.mubr.f32.gmra.mrb[0].mxu0 %v307
    %v1344 = vpop.f32.mrb[0].mxu0
    %v1345 = vadd.f32 %v1262, %v1344
    %v1346 = vpop.f32.mrb[0].mxu0
    %1347 = vdwg.mxu0
    %v1348 = vld [vmem:[#allocation6 + $0x100] sm:$0xff]
    %v1349 = vld [vmem:[#allocation6 + $0x108] sm:$0xff]
    %v1350 = vld [vmem:[#allocation6 + $0x110] sm:$0xff]
    %v1351 = vld [vmem:[#allocation6 + $0x118] sm:$0xff]
    %v1352 = vld [vmem:[#allocation6 + $0x1ec] sm:$0x1]
    %v1353 = vlaneseq
    %v1354 = vshrl.u32 %v1353, 7
    %v1355 = vsub.s32 0, %v1354
    %v1356 = vrot.slane %v1352, %v1355
    %1357 = vmatprep.subr.mxu0 0.0
    %1358 = vmatpush1.msra.mxu0 %v1348
    %1359 = vmatprep.subr.mxu0 0.0
    %1360 = vmatpush1.msra.mxu0 %v1349
    %1361 = vmatprep.subr.mxu0 0.0
    %1362 = vmatpush1.msra.mxu0 %v1350
    %1363 = vmatprep.subr.mxu0 0.0
    %1364 = vmatpush1.msra.mxu0 %v1351
    %1365 = vmatprep.subr.mxu0 0.0
    %1366 = vmatpush1.msra.mxu0 0.0
    %1367 = vmatprep.subr.mxu0 0.0
    %1368 = vmatpush1.msra.mxu0 0.0
    %1369 = vmatprep.subr.mxu0 0.0
    %1370 = vmatpush1.msra.mxu0 0.0
    %1371 = vmatprep.subr.mxu0 0.0
    %1372 = vmatpush1.msra.mxu0 0.0
    %1373 = vmatprep.subr.mxu0 0.0
    %1374 = vmatpush1.msra.mxu0 0.0
    %1375 = vmatprep.subr.mxu0 0.0
    %1376 = vmatpush1.msra.mxu0 0.0
    %1377 = vmatprep.subr.mxu0 0.0
    %1378 = vmatpush1.msra.mxu0 0.0
    %1379 = vmatprep.subr.mxu0 0.0
    %1380 = vmatpush1.msra.mxu0 0.0
    %1381 = vmatprep.subr.mxu0 0.0
    %1382 = vmatpush1.msra.mxu0 0.0
    %1383 = vmatprep.subr.mxu0 0.0
    %1384 = vmatpush1.msra.mxu0 0.0
    %1385 = vmatprep.subr.mxu0 0.0
    %1386 = vmatpush1.msra.mxu0 0.0
    %1387 = vmatprep.subr.mxu0 0.0
    %1388 = vmatpush1.msra.mxu0 0.0
    %1389 = vmatprep.subr.mxu0 0.0
    %1390 = vmatpush1.msra.mxu0 0.0
    %1391 = vmatprep.subr.mxu0 0.0
    %1392 = vmatpush1.msra.mxu0 0.0
    %1393 = vmatprep.subr.mxu0 0.0
    %1394 = vmatpush1.msra.mxu0 0.0
    %1395 = vmatprep.subr.mxu0 0.0
    %1396 = vmatpush1.msra.mxu0 0.0
    %1397 = vmatprep.subr.mxu0 0.0
    %1398 = vmatpush1.msra.mxu0 0.0
    %1399 = vmatprep.subr.mxu0 0.0
    %1400 = vmatpush1.msra.mxu0 0.0
    %1401 = vmatprep.subr.mxu0 0.0
    %1402 = vmatpush1.msra.mxu0 0.0
    %1403 = vmatprep.subr.mxu0 0.0
    %1404 = vmatpush1.msra.mxu0 0.0
    %1405 = vmatprep.subr.mxu0 0.0
    %1406 = vmatpush1.msra.mxu0 0.0
    %1407 = vmatprep.subr.mxu0 0.0
    %1408 = vmatpush1.msra.mxu0 0.0
    %1409 = vmatprep.subr.mxu0 0.0
    %1410 = vmatpush1.msra.mxu0 0.0
    %1411 = vmatprep.subr.mxu0 0.0
    %1412 = vmatpush1.msra.mxu0 0.0
    %1413 = vmatprep.subr.mxu0 0.0
    %1414 = vmatpush1.msra.mxu0 0.0
    %1415 = vmatprep.subr.mxu0 0.0
    %1416 = vmatpush1.msra.mxu0 0.0
    %1417 = vmatprep.subr.mxu0 0.0
    %1418 = vmatpush1.msra.mxu0 0.0
    %1419 = vmatprep.subr.mxu0 0.0
    %1420 = vmatpush1.msra.mxu0 0.0
    %1421 = vmatprep.mubr.f32.mxu0 0.0
    %1422 = vmatmul.mubr.f32.gmra.mrb[0].mxu0 %v298
    %v1423 = vpop.f32.mrb[0].mxu0
    %v1424 = vadd.f32 %v1356, %v1423
    %v1425 = vpop.f32.mrb[0].mxu0
    %1426 = vmatprep.mubr.f32.mxu0 0.0
    %1427 = vmatmul.mubr.f32.gmra.mrb[0].mxu0 %v301
    %v1428 = vpop.f32.mrb[0].mxu0
    %v1429 = vadd.f32 %v1356, %v1428
    %v1430 = vpop.f32.mrb[0].mxu0
    %1431 = vmatprep.mubr.f32.mxu0 0.0
    %1432 = vmatmul.mubr.f32.gmra.mrb[0].mxu0 %v304
    %v1433 = vpop.f32.mrb[0].mxu0
    %v1434 = vadd.f32 %v1356, %v1433
    %v1435 = vpop.f32.mrb[0].mxu0
    %1436 = vmatprep.mubr.f32.mxu0 0.0
    %1437 = vmatmul.mubr.f32.gmra.mrb[0].mxu0 %v307
    %v1438 = vpop.f32.mrb[0].mxu0
    %v1439 = vadd.f32 %v1356, %v1438
    %v1440 = vpop.f32.mrb[0].mxu0
    %1441 = vdwg.mxu0
    %v1442 = vld [vmem:[#allocation6 + $0x140] sm:$0xff]
    %v1443 = vld [vmem:[#allocation6 + $0x148] sm:$0xff]
    %v1444 = vld [vmem:[#allocation6 + $0x150] sm:$0xff]
    %v1445 = vld [vmem:[#allocation6 + $0x158] sm:$0xff]
    %v1446 = vld [vmem:[#allocation6 + $0x1ee] sm:$0x1]
    %v1447 = vlaneseq
    %v1448 = vshrl.u32 %v1447, 7
    %v1449 = vsub.s32 0, %v1448
    %v1450 = vrot.slane %v1446, %v1449
    %1451 = vmatprep.subr.mxu0 0.0
    %1452 = vmatpush1.msra.mxu0 %v1442
    %1453 = vmatprep.subr.mxu0 0.0
    %1454 = vmatpush1.msra.mxu0 %v1443
    %1455 = vmatprep.subr.mxu0 0.0
    %1456 = vmatpush1.msra.mxu0 %v1444
    %1457 = vmatprep.subr.mxu0 0.0
    %1458 = vmatpush1.msra.mxu0 %v1445
    %1459 = vmatprep.subr.mxu0 0.0
    %1460 = vmatpush1.msra.mxu0 0.0
    %1461 = vmatprep.subr.mxu0 0.0
    %1462 = vmatpush1.msra.mxu0 0.0
    %1463 = vmatprep.subr.mxu0 0.0
    %1464 = vmatpush1.msra.mxu0 0.0
    %1465 = vmatprep.subr.mxu0 0.0
    %1466 = vmatpush1.msra.mxu0 0.0
    %1467 = vmatprep.subr.mxu0 0.0
    %1468 = vmatpush1.msra.mxu0 0.0
    %1469 = vmatprep.subr.mxu0 0.0
    %1470 = vmatpush1.msra.mxu0 0.0
    %1471 = vmatprep.subr.mxu0 0.0
    %1472 = vmatpush1.msra.mxu0 0.0
    %1473 = vmatprep.subr.mxu0 0.0
    %1474 = vmatpush1.msra.mxu0 0.0
    %1475 = vmatprep.subr.mxu0 0.0
    %1476 = vmatpush1.msra.mxu0 0.0
    %1477 = vmatprep.subr.mxu0 0.0
    %1478 = vmatpush1.msra.mxu0 0.0
    %1479 = vmatprep.subr.mxu0 0.0
    %1480 = vmatpush1.msra.mxu0 0.0
    %1481 = vmatprep.subr.mxu0 0.0
    %1482 = vmatpush1.msra.mxu0 0.0
    %1483 = vmatprep.subr.mxu0 0.0
    %1484 = vmatpush1.msra.mxu0 0.0
    %1485 = vmatprep.subr.mxu0 0.0
    %1486 = vmatpush1.msra.mxu0 0.0
    %1487 = vmatprep.subr.mxu0 0.0
    %1488 = vmatpush1.msra.mxu0 0.0
    %1489 = vmatprep.subr.mxu0 0.0
    %1490 = vmatpush1.msra.mxu0 0.0
    %1491 = vmatprep.subr.mxu0 0.0
    %1492 = vmatpush1.msra.mxu0 0.0
    %1493 = vmatprep.subr.mxu0 0.0
    %1494 = vmatpush1.msra.mxu0 0.0
    %1495 = vmatprep.subr.mxu0 0.0
    %1496 = vmatpush1.msra.mxu0 0.0
    %1497 = vmatprep.subr.mxu0 0.0
    %1498 = vmatpush1.msra.mxu0 0.0
    %1499 = vmatprep.subr.mxu0 0.0
    %1500 = vmatpush1.msra.mxu0 0.0
    %1501 = vmatprep.subr.mxu0 0.0
    %1502 = vmatpush1.msra.mxu0 0.0
    %1503 = vmatprep.subr.mxu0 0.0
    %1504 = vmatpush1.msra.mxu0 0.0
    %1505 = vmatprep.subr.mxu0 0.0
    %1506 = vmatpush1.msra.mxu0 0.0
    %1507 = vmatprep.subr.mxu0 0.0
    %1508 = vmatpush1.msra.mxu0 0.0
    %1509 = vmatprep.subr.mxu0 0.0
    %1510 = vmatpush1.msra.mxu0 0.0
    %1511 = vmatprep.subr.mxu0 0.0
    %1512 = vmatpush1.msra.mxu0 0.0
    %1513 = vmatprep.subr.mxu0 0.0
    %1514 = vmatpush1.msra.mxu0 0.0
    %1515 = vmatprep.mubr.f32.mxu0 0.0
    %1516 = vmatmul.mubr.f32.gmra.mrb[0].mxu0 %v298
    %v1517 = vpop.f32.mrb[0].mxu0
    %v1518 = vadd.f32 %v1450, %v1517
    %v1519 = vpop.f32.mrb[0].mxu0
    %1520 = vmatprep.mubr.f32.mxu0 0.0
    %1521 = vmatmul.mubr.f32.gmra.mrb[0].mxu0 %v301
    %v1522 = vpop.f32.mrb[0].mxu0
    %v1523 = vadd.f32 %v1450, %v1522
    %v1524 = vpop.f32.mrb[0].mxu0
    %1525 = vmatprep.mubr.f32.mxu0 0.0
    %1526 = vmatmul.mubr.f32.gmra.mrb[0].mxu0 %v304
    %v1527 = vpop.f32.mrb[0].mxu0
    %v1528 = vadd.f32 %v1450, %v1527
    %v1529 = vpop.f32.mrb[0].mxu0
    %1530 = vmatprep.mubr.f32.mxu0 0.0
    %1531 = vmatmul.mubr.f32.gmra.mrb[0].mxu0 %v307
    %v1532 = vpop.f32.mrb[0].mxu0
    %v1533 = vadd.f32 %v1450, %v1532
    %v1534 = vpop.f32.mrb[0].mxu0
    %1535 = vdwg.mxu0
    %v1537 = vsel %vm582, %v1330, 0
    %v1540 = vsel %vm582, %v1424, 0
    %1542 = vmatprep.subr.mxu0 0.0
    %1543 = vmatpush1.xpose.msra.mxu0 %v1540
    %1544 = vmatprep.subr.mxu0 0.0
    %1545 = vmatpush1.xpose.msra.mxu0 0.0
    %1546 = vmatprep.subr.mxu0 0.0
    %1547 = vmatpush1.xpose.msra.mxu0 0.0
    %1548 = vmatprep.subr.mxu0 0.0
    %1549 = vmatpush1.xpose.msra.mxu0 0.0
    %1550 = vmatprep.subr.mxu0 0.0
    %1551 = vmatpush1.xpose.msra.mxu0 0.0
    %1552 = vmatprep.subr.mxu0 0.0
    %1553 = vmatpush1.xpose.msra.mxu0 0.0
    %1554 = vmatprep.subr.mxu0 0.0
    %1555 = vmatpush1.xpose.msra.mxu0 0.0
    %1556 = vmatprep.subr.mxu0 0.0
    %1557 = vmatpush1.xpose.msra.mxu0 0.0
    %1558 = vmatprep.subr.mxu0 0.0
    %1559 = vmatpush1.xpose.msra.mxu0 0.0
    %1560 = vmatprep.subr.mxu0 0.0
    %1561 = vmatpush1.xpose.msra.mxu0 0.0
    %1562 = vmatprep.subr.mxu0 0.0
    %1563 = vmatpush1.xpose.msra.mxu0 0.0
    %1564 = vmatprep.subr.mxu0 0.0
    %1565 = vmatpush1.xpose.msra.mxu0 0.0
    %1566 = vmatprep.subr.mxu0 0.0
    %1567 = vmatpush1.xpose.msra.mxu0 0.0
    %1568 = vmatprep.subr.mxu0 0.0
    %1569 = vmatpush1.xpose.msra.mxu0 0.0
    %1570 = vmatprep.subr.mxu0 0.0
    %1571 = vmatpush1.xpose.msra.mxu0 0.0
    %1572 = vmatprep.subr.mxu0 0.0
    %1573 = vmatpush1.xpose.msra.mxu0 0.0
    %1574 = vmatprep.subr.mxu0 0.0
    %1575 = vmatpush1.xpose.msra.mxu0 0.0
    %1576 = vmatprep.subr.mxu0 0.0
    %1577 = vmatpush1.xpose.msra.mxu0 0.0
    %1578 = vmatprep.subr.mxu0 0.0
    %1579 = vmatpush1.xpose.msra.mxu0 0.0
    %1580 = vmatprep.subr.mxu0 0.0
    %1581 = vmatpush1.xpose.msra.mxu0 0.0
    %1582 = vmatprep.subr.mxu0 0.0
    %1583 = vmatpush1.xpose.msra.mxu0 0.0
    %1584 = vmatprep.subr.mxu0 0.0
    %1585 = vmatpush1.xpose.msra.mxu0 0.0
    %1586 = vmatprep.subr.mxu0 0.0
    %1587 = vmatpush1.xpose.msra.mxu0 0.0
    %1588 = vmatprep.subr.mxu0 0.0
    %1589 = vmatpush1.xpose.msra.mxu0 0.0
    %1590 = vmatprep.subr.mxu0 0.0
    %1591 = vmatpush1.xpose.msra.mxu0 0.0
    %1592 = vmatprep.subr.mxu0 0.0
    %1593 = vmatpush1.xpose.msra.mxu0 0.0
    %1594 = vmatprep.subr.mxu0 0.0
    %1595 = vmatpush1.xpose.msra.mxu0 0.0
    %1596 = vmatprep.subr.mxu0 0.0
    %1597 = vmatpush1.xpose.msra.mxu0 0.0
    %1598 = vmatprep.subr.mxu0 0.0
    %1599 = vmatpush1.xpose.msra.mxu0 0.0
    %1600 = vmatprep.subr.mxu0 0.0
    %1601 = vmatpush1.xpose.msra.mxu0 0.0
    %1602 = vmatprep.subr.mxu0 0.0
    %1603 = vmatpush1.xpose.msra.mxu0 0.0
    %1604 = vmatprep.subr.mxu0 0.0
    %1605 = vmatpush1.xpose.msra.mxu0 0.0
    %1606 = vmatprep.mubr.f32.mxu0 0.0
    %1607 = vmatmul.mubr.f32.gmra.mrb[0].mxu0 %v1537
    %v1608 = vpop.f32.mrb[0].mxu0
    %v1609 = vadd.f32 0.0, %v1608
    %v1610 = vpop.f32.mrb[0].mxu0
    %1611 = vdwg.mxu0
    %v1613 = vsel %vm582, %v1335, 0
    %v1616 = vsel %vm582, %v1429, 0
    %1618 = vmatprep.subr.mxu0 0.0
    %1619 = vmatpush1.xpose.msra.mxu0 %v1616
    %1620 = vmatprep.subr.mxu0 0.0
    %1621 = vmatpush1.xpose.msra.mxu0 0.0
    %1622 = vmatprep.subr.mxu0 0.0
    %1623 = vmatpush1.xpose.msra.mxu0 0.0
    %1624 = vmatprep.subr.mxu0 0.0
    %1625 = vmatpush1.xpose.msra.mxu0 0.0
    %1626 = vmatprep.subr.mxu0 0.0
    %1627 = vmatpush1.xpose.msra.mxu0 0.0
    %1628 = vmatprep.subr.mxu0 0.0
    %1629 = vmatpush1.xpose.msra.mxu0 0.0
    %1630 = vmatprep.subr.mxu0 0.0
    %1631 = vmatpush1.xpose.msra.mxu0 0.0
    %1632 = vmatprep.subr.mxu0 0.0
    %1633 = vmatpush1.xpose.msra.mxu0 0.0
    %1634 = vmatprep.subr.mxu0 0.0
    %1635 = vmatpush1.xpose.msra.mxu0 0.0
    %1636 = vmatprep.subr.mxu0 0.0
    %1637 = vmatpush1.xpose.msra.mxu0 0.0
    %1638 = vmatprep.subr.mxu0 0.0
    %1639 = vmatpush1.xpose.msra.mxu0 0.0
    %1640 = vmatprep.subr.mxu0 0.0
    %1641 = vmatpush1.xpose.msra.mxu0 0.0
    %1642 = vmatprep.subr.mxu0 0.0
    %1643 = vmatpush1.xpose.msra.mxu0 0.0
    %1644 = vmatprep.subr.mxu0 0.0
    %1645 = vmatpush1.xpose.msra.mxu0 0.0
    %1646 = vmatprep.subr.mxu0 0.0
    %1647 = vmatpush1.xpose.msra.mxu0 0.0
    %1648 = vmatprep.subr.mxu0 0.0
    %1649 = vmatpush1.xpose.msra.mxu0 0.0
    %1650 = vmatprep.subr.mxu0 0.0
    %1651 = vmatpush1.xpose.msra.mxu0 0.0
    %1652 = vmatprep.subr.mxu0 0.0
    %1653 = vmatpush1.xpose.msra.mxu0 0.0
    %1654 = vmatprep.subr.mxu0 0.0
    %1655 = vmatpush1.xpose.msra.mxu0 0.0
    %1656 = vmatprep.subr.mxu0 0.0
    %1657 = vmatpush1.xpose.msra.mxu0 0.0
    %1658 = vmatprep.subr.mxu0 0.0
    %1659 = vmatpush1.xpose.msra.mxu0 0.0
    %1660 = vmatprep.subr.mxu0 0.0
    %1661 = vmatpush1.xpose.msra.mxu0 0.0
    %1662 = vmatprep.subr.mxu0 0.0
    %1663 = vmatpush1.xpose.msra.mxu0 0.0
    %1664 = vmatprep.subr.mxu0 0.0
    %1665 = vmatpush1.xpose.msra.mxu0 0.0
    %1666 = vmatprep.subr.mxu0 0.0
    %1667 = vmatpush1.xpose.msra.mxu0 0.0
    %1668 = vmatprep.subr.mxu0 0.0
    %1669 = vmatpush1.xpose.msra.mxu0 0.0
    %1670 = vmatprep.subr.mxu0 0.0
    %1671 = vmatpush1.xpose.msra.mxu0 0.0
    %1672 = vmatprep.subr.mxu0 0.0
    %1673 = vmatpush1.xpose.msra.mxu0 0.0
    %1674 = vmatprep.subr.mxu0 0.0
    %1675 = vmatpush1.xpose.msra.mxu0 0.0
    %1676 = vmatprep.subr.mxu0 0.0
    %1677 = vmatpush1.xpose.msra.mxu0 0.0
    %1678 = vmatprep.subr.mxu0 0.0
    %1679 = vmatpush1.xpose.msra.mxu0 0.0
    %1680 = vmatprep.subr.mxu0 0.0
    %1681 = vmatpush1.xpose.msra.mxu0 0.0
    %1682 = vmatprep.mubr.f32.mxu0 0.0
    %1683 = vmatmul.mubr.f32.gmra.mrb[0].mxu0 %v1613
    %v1684 = vpop.f32.mrb[0].mxu0
    %v1685 = vadd.f32 0.0, %v1684
    %v1686 = vpop.f32.mrb[0].mxu0
    %1687 = vdwg.mxu0
    %v1689 = vsel %vm582, %v1340, 0
    %v1692 = vsel %vm582, %v1434, 0
    %1694 = vmatprep.subr.mxu0 0.0
    %1695 = vmatpush1.xpose.msra.mxu0 %v1692
    %1696 = vmatprep.subr.mxu0 0.0
    %1697 = vmatpush1.xpose.msra.mxu0 0.0
    %1698 = vmatprep.subr.mxu0 0.0
    %1699 = vmatpush1.xpose.msra.mxu0 0.0
    %1700 = vmatprep.subr.mxu0 0.0
    %1701 = vmatpush1.xpose.msra.mxu0 0.0
    %1702 = vmatprep.subr.mxu0 0.0
    %1703 = vmatpush1.xpose.msra.mxu0 0.0
    %1704 = vmatprep.subr.mxu0 0.0
    %1705 = vmatpush1.xpose.msra.mxu0 0.0
    %1706 = vmatprep.subr.mxu0 0.0
    %1707 = vmatpush1.xpose.msra.mxu0 0.0
    %1708 = vmatprep.subr.mxu0 0.0
    %1709 = vmatpush1.xpose.msra.mxu0 0.0
    %1710 = vmatprep.subr.mxu0 0.0
    %1711 = vmatpush1.xpose.msra.mxu0 0.0
    %1712 = vmatprep.subr.mxu0 0.0
    %1713 = vmatpush1.xpose.msra.mxu0 0.0
    %1714 = vmatprep.subr.mxu0 0.0
    %1715 = vmatpush1.xpose.msra.mxu0 0.0
    %1716 = vmatprep.subr.mxu0 0.0
    %1717 = vmatpush1.xpose.msra.mxu0 0.0
    %1718 = vmatprep.subr.mxu0 0.0
    %1719 = vmatpush1.xpose.msra.mxu0 0.0
    %1720 = vmatprep.subr.mxu0 0.0
    %1721 = vmatpush1.xpose.msra.mxu0 0.0
    %1722 = vmatprep.subr.mxu0 0.0
    %1723 = vmatpush1.xpose.msra.mxu0 0.0
    %1724 = vmatprep.subr.mxu0 0.0
    %1725 = vmatpush1.xpose.msra.mxu0 0.0
    %1726 = vmatprep.subr.mxu0 0.0
    %1727 = vmatpush1.xpose.msra.mxu0 0.0
    %1728 = vmatprep.subr.mxu0 0.0
    %1729 = vmatpush1.xpose.msra.mxu0 0.0
    %1730 = vmatprep.subr.mxu0 0.0
    %1731 = vmatpush1.xpose.msra.mxu0 0.0
    %1732 = vmatprep.subr.mxu0 0.0
    %1733 = vmatpush1.xpose.msra.mxu0 0.0
    %1734 = vmatprep.subr.mxu0 0.0
    %1735 = vmatpush1.xpose.msra.mxu0 0.0
    %1736 = vmatprep.subr.mxu0 0.0
    %1737 = vmatpush1.xpose.msra.mxu0 0.0
    %1738 = vmatprep.subr.mxu0 0.0
    %1739 = vmatpush1.xpose.msra.mxu0 0.0
    %1740 = vmatprep.subr.mxu0 0.0
    %1741 = vmatpush1.xpose.msra.mxu0 0.0
    %1742 = vmatprep.subr.mxu0 0.0
    %1743 = vmatpush1.xpose.msra.mxu0 0.0
    %1744 = vmatprep.subr.mxu0 0.0
    %1745 = vmatpush1.xpose.msra.mxu0 0.0
    %1746 = vmatprep.subr.mxu0 0.0
    %1747 = vmatpush1.xpose.msra.mxu0 0.0
    %1748 = vmatprep.subr.mxu0 0.0
    %1749 = vmatpush1.xpose.msra.mxu0 0.0
    %1750 = vmatprep.subr.mxu0 0.0
    %1751 = vmatpush1.xpose.msra.mxu0 0.0
    %1752 = vmatprep.subr.mxu0 0.0
    %1753 = vmatpush1.xpose.msra.mxu0 0.0
    %1754 = vmatprep.subr.mxu0 0.0
    %1755 = vmatpush1.xpose.msra.mxu0 0.0
    %1756 = vmatprep.subr.mxu0 0.0
    %1757 = vmatpush1.xpose.msra.mxu0 0.0
    %1758 = vmatprep.mubr.f32.mxu0 0.0
    %1759 = vmatmul.mubr.f32.gmra.mrb[0].mxu0 %v1689
    %v1760 = vpop.f32.mrb[0].mxu0
    %v1761 = vadd.f32 0.0, %v1760
    %v1762 = vpop.f32.mrb[0].mxu0
    %1763 = vdwg.mxu0
    %v1765 = vsel %vm582, %v1345, 0
    %v1768 = vsel %vm582, %v1439, 0
    %1770 = vmatprep.subr.mxu0 0.0
    %1771 = vmatpush1.xpose.msra.mxu0 %v1768
    %1772 = vmatprep.subr.mxu0 0.0
    %1773 = vmatpush1.xpose.msra.mxu0 0.0
    %1774 = vmatprep.subr.mxu0 0.0
    %1775 = vmatpush1.xpose.msra.mxu0 0.0
    %1776 = vmatprep.subr.mxu0 0.0
    %1777 = vmatpush1.xpose.msra.mxu0 0.0
    %1778 = vmatprep.subr.mxu0 0.0
    %1779 = vmatpush1.xpose.msra.mxu0 0.0
    %1780 = vmatprep.subr.mxu0 0.0
    %1781 = vmatpush1.xpose.msra.mxu0 0.0
    %1782 = vmatprep.subr.mxu0 0.0
    %1783 = vmatpush1.xpose.msra.mxu0 0.0
    %1784 = vmatprep.subr.mxu0 0.0
    %1785 = vmatpush1.xpose.msra.mxu0 0.0
    %1786 = vmatprep.subr.mxu0 0.0
    %1787 = vmatpush1.xpose.msra.mxu0 0.0
    %1788 = vmatprep.subr.mxu0 0.0
    %1789 = vmatpush1.xpose.msra.mxu0 0.0
    %1790 = vmatprep.subr.mxu0 0.0
    %1791 = vmatpush1.xpose.msra.mxu0 0.0
    %1792 = vmatprep.subr.mxu0 0.0
    %1793 = vmatpush1.xpose.msra.mxu0 0.0
    %1794 = vmatprep.subr.mxu0 0.0
    %1795 = vmatpush1.xpose.msra.mxu0 0.0
    %1796 = vmatprep.subr.mxu0 0.0
    %1797 = vmatpush1.xpose.msra.mxu0 0.0
    %1798 = vmatprep.subr.mxu0 0.0
    %1799 = vmatpush1.xpose.msra.mxu0 0.0
    %1800 = vmatprep.subr.mxu0 0.0
    %1801 = vmatpush1.xpose.msra.mxu0 0.0
    %1802 = vmatprep.subr.mxu0 0.0
    %1803 = vmatpush1.xpose.msra.mxu0 0.0
    %1804 = vmatprep.subr.mxu0 0.0
    %1805 = vmatpush1.xpose.msra.mxu0 0.0
    %1806 = vmatprep.subr.mxu0 0.0
    %1807 = vmatpush1.xpose.msra.mxu0 0.0
    %1808 = vmatprep.subr.mxu0 0.0
    %1809 = vmatpush1.xpose.msra.mxu0 0.0
    %1810 = vmatprep.subr.mxu0 0.0
    %1811 = vmatpush1.xpose.msra.mxu0 0.0
    %1812 = vmatprep.subr.mxu0 0.0
    %1813 = vmatpush1.xpose.msra.mxu0 0.0
    %1814 = vmatprep.subr.mxu0 0.0
    %1815 = vmatpush1.xpose.msra.mxu0 0.0
    %1816 = vmatprep.subr.mxu0 0.0
    %1817 = vmatpush1.xpose.msra.mxu0 0.0
    %1818 = vmatprep.subr.mxu0 0.0
    %1819 = vmatpush1.xpose.msra.mxu0 0.0
    %1820 = vmatprep.subr.mxu0 0.0
    %1821 = vmatpush1.xpose.msra.mxu0 0.0
    %1822 = vmatprep.subr.mxu0 0.0
    %1823 = vmatpush1.xpose.msra.mxu0 0.0
    %1824 = vmatprep.subr.mxu0 0.0
    %1825 = vmatpush1.xpose.msra.mxu0 0.0
    %1826 = vmatprep.subr.mxu0 0.0
    %1827 = vmatpush1.xpose.msra.mxu0 0.0
    %1828 = vmatprep.subr.mxu0 0.0
    %1829 = vmatpush1.xpose.msra.mxu0 0.0
    %1830 = vmatprep.subr.mxu0 0.0
    %1831 = vmatpush1.xpose.msra.mxu0 0.0
    %1832 = vmatprep.subr.mxu0 0.0
    %1833 = vmatpush1.xpose.msra.mxu0 0.0
    %1834 = vmatprep.mubr.f32.mxu0 0.0
    %1835 = vmatmul.mubr.f32.gmra.mrb[0].mxu0 %v1765
    %v1836 = vpop.f32.mrb[0].mxu0
    %v1837 = vadd.f32 0.0, %v1836
    %v1838 = vpop.f32.mrb[0].mxu0
    %1839 = vdwg.mxu0
    %v1840 = vmul.f32 %v1609, 0.25
    %v1841 = vmul.f32 %v1685, 0.25
    %v1842 = vmul.f32 %v1761, 0.25
    %v1843 = vmul.f32 %v1837, 0.25
    %v1844 = vadd.f32 %v1840, %v894
    %v1845 = vadd.f32 %v1841, %v898
    %v1846 = vadd.f32 %v1842, %v902
    %v1847 = vadd.f32 %v1843, %v906
    %v1848 = vsel %vm915, %v1844, -inf
    %1849 = vmax.xlane.f32.xlu0 %v1848
    %v1850 = vpop.xlane.xlu0 %1849
    %v1851 = vsel %vm915, %v1845, -inf
    %1852 = vmax.xlane.f32.xlu0 %v1851
    %v1853 = vpop.xlane.xlu0 %1852
    %v1854 = vsel %vm915, %v1846, -inf
    %1855 = vmax.xlane.f32.xlu0 %v1854
    %v1856 = vpop.xlane.xlu0 %1855
    %v1857 = vsel %vm915, %v1847, -inf
    %1858 = vmax.xlane.f32.xlu0 %v1857
    %v1859 = vpop.xlane.xlu0 %1858
    %v1860 = vsub.f32 %v1844, %v1850
    %v1861 = vsub.f32 %v1845, %v1853
    %v1862 = vsub.f32 %v1846, %v1856
    %v1863 = vsub.f32 %v1847, %v1859
    %v1864 = vmul.f32 %v1860, 1.442695
    %v1865 = vpow.pop %v1864
    %v1866 = vmul.f32 %v1861, 1.442695
    %v1867 = vpow.pop %v1866
    %v1868 = vmul.f32 %v1862, 1.442695
    %v1869 = vpow.pop %v1868
    %v1870 = vmul.f32 %v1863, 1.442695
    %v1871 = vpow.pop %v1870
    %v1872 = vsel %vm915, %v1865, 0.0
    %1873 = vadd.xlane.f32.xlu0 %v1872
    %v1874 = vpop.xlane.xlu0 %1873
    %v1875 = vsel %vm915, %v1867, 0.0
    %1876 = vadd.xlane.f32.xlu0 %v1875
    %v1877 = vpop.xlane.xlu0 %1876
    %v1878 = vsel %vm915, %v1869, 0.0
    %1879 = vadd.xlane.f32.xlu0 %v1878
    %v1880 = vpop.xlane.xlu0 %1879
    %v1881 = vsel %vm915, %v1871, 0.0
    %1882 = vadd.xlane.f32.xlu0 %v1881
    %v1883 = vpop.xlane.xlu0 %1882
    %v1884 = vrcp.pop %v1874
    %v1885 = vrcp.pop %v1877
    %v1886 = vrcp.pop %v1880
    %v1887 = vrcp.pop %v1883
    %v1888 = vmul.f32 %v1865, %v1884
    %v1889 = vmul.f32 %v1867, %v1885
    %v1890 = vmul.f32 %v1869, %v1886
    %v1891 = vmul.f32 %v1871, %v1887
    %v1893 = vsel %vm915, %v1888, 0
    %1895 = vmatprep.subr.mxu0 0.0
    %1896 = vmatpush1.msra.mxu0 %v1518
    %1897 = vmatprep.subr.mxu0 0.0
    %1898 = vmatpush1.msra.mxu0 0.0
    %1899 = vmatprep.subr.mxu0 0.0
    %1900 = vmatpush1.msra.mxu0 0.0
    %1901 = vmatprep.subr.mxu0 0.0
    %1902 = vmatpush1.msra.mxu0 0.0
    %1903 = vmatprep.subr.mxu0 0.0
    %1904 = vmatpush1.msra.mxu0 0.0
    %1905 = vmatprep.subr.mxu0 0.0
    %1906 = vmatpush1.msra.mxu0 0.0
    %1907 = vmatprep.subr.mxu0 0.0
    %1908 = vmatpush1.msra.mxu0 0.0
    %1909 = vmatprep.subr.mxu0 0.0
    %1910 = vmatpush1.msra.mxu0 0.0
    %1911 = vmatprep.subr.mxu0 0.0
    %1912 = vmatpush1.msra.mxu0 0.0
    %1913 = vmatprep.subr.mxu0 0.0
    %1914 = vmatpush1.msra.mxu0 0.0
    %1915 = vmatprep.subr.mxu0 0.0
    %1916 = vmatpush1.msra.mxu0 0.0
    %1917 = vmatprep.subr.mxu0 0.0
    %1918 = vmatpush1.msra.mxu0 0.0
    %1919 = vmatprep.subr.mxu0 0.0
    %1920 = vmatpush1.msra.mxu0 0.0
    %1921 = vmatprep.subr.mxu0 0.0
    %1922 = vmatpush1.msra.mxu0 0.0
    %1923 = vmatprep.subr.mxu0 0.0
    %1924 = vmatpush1.msra.mxu0 0.0
    %1925 = vmatprep.subr.mxu0 0.0
    %1926 = vmatpush1.msra.mxu0 0.0
    %1927 = vmatprep.subr.mxu0 0.0
    %1928 = vmatpush1.msra.mxu0 0.0
    %1929 = vmatprep.subr.mxu0 0.0
    %1930 = vmatpush1.msra.mxu0 0.0
    %1931 = vmatprep.subr.mxu0 0.0
    %1932 = vmatpush1.msra.mxu0 0.0
    %1933 = vmatprep.subr.mxu0 0.0
    %1934 = vmatpush1.msra.mxu0 0.0
    %1935 = vmatprep.subr.mxu0 0.0
    %1936 = vmatpush1.msra.mxu0 0.0
    %1937 = vmatprep.subr.mxu0 0.0
    %1938 = vmatpush1.msra.mxu0 0.0
    %1939 = vmatprep.subr.mxu0 0.0
    %1940 = vmatpush1.msra.mxu0 0.0
    %1941 = vmatprep.subr.mxu0 0.0
    %1942 = vmatpush1.msra.mxu0 0.0
    %1943 = vmatprep.subr.mxu0 0.0
    %1944 = vmatpush1.msra.mxu0 0.0
    %1945 = vmatprep.subr.mxu0 0.0
    %1946 = vmatpush1.msra.mxu0 0.0
    %1947 = vmatprep.subr.mxu0 0.0
    %1948 = vmatpush1.msra.mxu0 0.0
    %1949 = vmatprep.subr.mxu0 0.0
    %1950 = vmatpush1.msra.mxu0 0.0
    %1951 = vmatprep.subr.mxu0 0.0
    %1952 = vmatpush1.msra.mxu0 0.0
    %1953 = vmatprep.subr.mxu0 0.0
    %1954 = vmatpush1.msra.mxu0 0.0
    %1955 = vmatprep.subr.mxu0 0.0
    %1956 = vmatpush1.msra.mxu0 0.0
    %1957 = vmatprep.subr.mxu0 0.0
    %1958 = vmatpush1.msra.mxu0 0.0
    %1959 = vmatprep.mubr.f32.mxu0 0.0
    %1960 = vmatmul.mubr.f32.gmra.mrb[0].mxu0 %v1893
    %v1961 = vpop.f32.mrb[0].mxu0
    %v1962 = vadd.f32 0.0, %v1961
    %v1963 = vpop.f32.mrb[0].mxu0
    %1964 = vdwg.mxu0
    %v1966 = vsel %vm915, %v1889, 0
    %1968 = vmatprep.subr.mxu0 0.0
    %1969 = vmatpush1.msra.mxu0 %v1523
    %1970 = vmatprep.subr.mxu0 0.0
    %1971 = vmatpush1.msra.mxu0 0.0
    %1972 = vmatprep.subr.mxu0 0.0
    %1973 = vmatpush1.msra.mxu0 0.0
    %1974 = vmatprep.subr.mxu0 0.0
    %1975 = vmatpush1.msra.mxu0 0.0
    %1976 = vmatprep.subr.mxu0 0.0
    %1977 = vmatpush1.msra.mxu0 0.0
    %1978 = vmatprep.subr.mxu0 0.0
    %1979 = vmatpush1.msra.mxu0 0.0
    %1980 = vmatprep.subr.mxu0 0.0
    %1981 = vmatpush1.msra.mxu0 0.0
    %1982 = vmatprep.subr.mxu0 0.0
    %1983 = vmatpush1.msra.mxu0 0.0
    %1984 = vmatprep.subr.mxu0 0.0
    %1985 = vmatpush1.msra.mxu0 0.0
    %1986 = vmatprep.subr.mxu0 0.0
    %1987 = vmatpush1.msra.mxu0 0.0
    %1988 = vmatprep.subr.mxu0 0.0
    %1989 = vmatpush1.msra.mxu0 0.0
    %1990 = vmatprep.subr.mxu0 0.0
    %1991 = vmatpush1.msra.mxu0 0.0
    %1992 = vmatprep.subr.mxu0 0.0
    %1993 = vmatpush1.msra.mxu0 0.0
    %1994 = vmatprep.subr.mxu0 0.0
    %1995 = vmatpush1.msra.mxu0 0.0
    %1996 = vmatprep.subr.mxu0 0.0
    %1997 = vmatpush1.msra.mxu0 0.0
    %1998 = vmatprep.subr.mxu0 0.0
    %1999 = vmatpush1.msra.mxu0 0.0
    %2000 = vmatprep.subr.mxu0 0.0
    %2001 = vmatpush1.msra.mxu0 0.0
    %2002 = vmatprep.subr.mxu0 0.0
    %2003 = vmatpush1.msra.mxu0 0.0
    %2004 = vmatprep.subr.mxu0 0.0
    %2005 = vmatpush1.msra.mxu0 0.0
    %2006 = vmatprep.subr.mxu0 0.0
    %2007 = vmatpush1.msra.mxu0 0.0
    %2008 = vmatprep.subr.mxu0 0.0
    %2009 = vmatpush1.msra.mxu0 0.0
    %2010 = vmatprep.subr.mxu0 0.0
    %2011 = vmatpush1.msra.mxu0 0.0
    %2012 = vmatprep.subr.mxu0 0.0
    %2013 = vmatpush1.msra.mxu0 0.0
    %2014 = vmatprep.subr.mxu0 0.0
    %2015 = vmatpush1.msra.mxu0 0.0
    %2016 = vmatprep.subr.mxu0 0.0
    %2017 = vmatpush1.msra.mxu0 0.0
    %2018 = vmatprep.subr.mxu0 0.0
    %2019 = vmatpush1.msra.mxu0 0.0
    %2020 = vmatprep.subr.mxu0 0.0
    %2021 = vmatpush1.msra.mxu0 0.0
    %2022 = vmatprep.subr.mxu0 0.0
    %2023 = vmatpush1.msra.mxu0 0.0
    %2024 = vmatprep.subr.mxu0 0.0
    %2025 = vmatpush1.msra.mxu0 0.0
    %2026 = vmatprep.subr.mxu0 0.0
    %2027 = vmatpush1.msra.mxu0 0.0
    %2028 = vmatprep.subr.mxu0 0.0
    %2029 = vmatpush1.msra.mxu0 0.0
    %2030 = vmatprep.subr.mxu0 0.0
    %2031 = vmatpush1.msra.mxu0 0.0
    %2032 = vmatprep.mubr.f32.mxu0 0.0
    %2033 = vmatmul.mubr.f32.gmra.mrb[0].mxu0 %v1966
    %v2034 = vpop.f32.mrb[0].mxu0
    %v2035 = vadd.f32 0.0, %v2034
    %v2036 = vpop.f32.mrb[0].mxu0
    %2037 = vdwg.mxu0
    %v2039 = vsel %vm915, %v1890, 0
    %2041 = vmatprep.subr.mxu0 0.0
    %2042 = vmatpush1.msra.mxu0 %v1528
    %2043 = vmatprep.subr.mxu0 0.0
    %2044 = vmatpush1.msra.mxu0 0.0
    %2045 = vmatprep.subr.mxu0 0.0
    %2046 = vmatpush1.msra.mxu0 0.0
    %2047 = vmatprep.subr.mxu0 0.0
    %2048 = vmatpush1.msra.mxu0 0.0
    %2049 = vmatprep.subr.mxu0 0.0
    %2050 = vmatpush1.msra.mxu0 0.0
    %2051 = vmatprep.subr.mxu0 0.0
    %2052 = vmatpush1.msra.mxu0 0.0
    %2053 = vmatprep.subr.mxu0 0.0
    %2054 = vmatpush1.msra.mxu0 0.0
    %2055 = vmatprep.subr.mxu0 0.0
    %2056 = vmatpush1.msra.mxu0 0.0
    %2057 = vmatprep.subr.mxu0 0.0
    %2058 = vmatpush1.msra.mxu0 0.0
    %2059 = vmatprep.subr.mxu0 0.0
    %2060 = vmatpush1.msra.mxu0 0.0
    %2061 = vmatprep.subr.mxu0 0.0
    %2062 = vmatpush1.msra.mxu0 0.0
    %2063 = vmatprep.subr.mxu0 0.0
    %2064 = vmatpush1.msra.mxu0 0.0
    %2065 = vmatprep.subr.mxu0 0.0
    %2066 = vmatpush1.msra.mxu0 0.0
    %2067 = vmatprep.subr.mxu0 0.0
    %2068 = vmatpush1.msra.mxu0 0.0
    %2069 = vmatprep.subr.mxu0 0.0
    %2070 = vmatpush1.msra.mxu0 0.0
    %2071 = vmatprep.subr.mxu0 0.0
    %2072 = vmatpush1.msra.mxu0 0.0
    %2073 = vmatprep.subr.mxu0 0.0
    %2074 = vmatpush1.msra.mxu0 0.0
    %2075 = vmatprep.subr.mxu0 0.0
    %2076 = vmatpush1.msra.mxu0 0.0
    %2077 = vmatprep.subr.mxu0 0.0
    %2078 = vmatpush1.msra.mxu0 0.0
    %2079 = vmatprep.subr.mxu0 0.0
    %2080 = vmatpush1.msra.mxu0 0.0
    %2081 = vmatprep.subr.mxu0 0.0
    %2082 = vmatpush1.msra.mxu0 0.0
    %2083 = vmatprep.subr.mxu0 0.0
    %2084 = vmatpush1.msra.mxu0 0.0
    %2085 = vmatprep.subr.mxu0 0.0
    %2086 = vmatpush1.msra.mxu0 0.0
    %2087 = vmatprep.subr.mxu0 0.0
    %2088 = vmatpush1.msra.mxu0 0.0
    %2089 = vmatprep.subr.mxu0 0.0
    %2090 = vmatpush1.msra.mxu0 0.0
    %2091 = vmatprep.subr.mxu0 0.0
    %2092 = vmatpush1.msra.mxu0 0.0
    %2093 = vmatprep.subr.mxu0 0.0
    %2094 = vmatpush1.msra.mxu0 0.0
    %2095 = vmatprep.subr.mxu0 0.0
    %2096 = vmatpush1.msra.mxu0 0.0
    %2097 = vmatprep.subr.mxu0 0.0
    %2098 = vmatpush1.msra.mxu0 0.0
    %2099 = vmatprep.subr.mxu0 0.0
    %2100 = vmatpush1.msra.mxu0 0.0
    %2101 = vmatprep.subr.mxu0 0.0
    %2102 = vmatpush1.msra.mxu0 0.0
    %2103 = vmatprep.subr.mxu0 0.0
    %2104 = vmatpush1.msra.mxu0 0.0
    %2105 = vmatprep.mubr.f32.mxu0 0.0
    %2106 = vmatmul.mubr.f32.gmra.mrb[0].mxu0 %v2039
    %v2107 = vpop.f32.mrb[0].mxu0
    %v2108 = vadd.f32 0.0, %v2107
    %v2109 = vpop.f32.mrb[0].mxu0
    %2110 = vdwg.mxu0
    %v2112 = vsel %vm915, %v1891, 0
    %2114 = vmatprep.subr.mxu0 0.0
    %2115 = vmatpush1.msra.mxu0 %v1533
    %2116 = vmatprep.subr.mxu0 0.0
    %2117 = vmatpush1.msra.mxu0 0.0
    %2118 = vmatprep.subr.mxu0 0.0
    %2119 = vmatpush1.msra.mxu0 0.0
    %2120 = vmatprep.subr.mxu0 0.0
    %2121 = vmatpush1.msra.mxu0 0.0
    %2122 = vmatprep.subr.mxu0 0.0
    %2123 = vmatpush1.msra.mxu0 0.0
    %2124 = vmatprep.subr.mxu0 0.0
    %2125 = vmatpush1.msra.mxu0 0.0
    %2126 = vmatprep.subr.mxu0 0.0
    %2127 = vmatpush1.msra.mxu0 0.0
    %2128 = vmatprep.subr.mxu0 0.0
    %2129 = vmatpush1.msra.mxu0 0.0
    %2130 = vmatprep.subr.mxu0 0.0
    %2131 = vmatpush1.msra.mxu0 0.0
    %2132 = vmatprep.subr.mxu0 0.0
    %2133 = vmatpush1.msra.mxu0 0.0
    %2134 = vmatprep.subr.mxu0 0.0
    %2135 = vmatpush1.msra.mxu0 0.0
    %2136 = vmatprep.subr.mxu0 0.0
    %2137 = vmatpush1.msra.mxu0 0.0
    %2138 = vmatprep.subr.mxu0 0.0
    %2139 = vmatpush1.msra.mxu0 0.0
    %2140 = vmatprep.subr.mxu0 0.0
    %2141 = vmatpush1.msra.mxu0 0.0
    %2142 = vmatprep.subr.mxu0 0.0
    %2143 = vmatpush1.msra.mxu0 0.0
    %2144 = vmatprep.subr.mxu0 0.0
    %2145 = vmatpush1.msra.mxu0 0.0
    %2146 = vmatprep.subr.mxu0 0.0
    %2147 = vmatpush1.msra.mxu0 0.0
    %2148 = vmatprep.subr.mxu0 0.0
    %2149 = vmatpush1.msra.mxu0 0.0
    %2150 = vmatprep.subr.mxu0 0.0
    %2151 = vmatpush1.msra.mxu0 0.0
    %2152 = vmatprep.subr.mxu0 0.0
    %2153 = vmatpush1.msra.mxu0 0.0
    %2154 = vmatprep.subr.mxu0 0.0
    %2155 = vmatpush1.msra.mxu0 0.0
    %2156 = vmatprep.subr.mxu0 0.0
    %2157 = vmatpush1.msra.mxu0 0.0
    %2158 = vmatprep.subr.mxu0 0.0
    %2159 = vmatpush1.msra.mxu0 0.0
    %2160 = vmatprep.subr.mxu0 0.0
    %2161 = vmatpush1.msra.mxu0 0.0
    %2162 = vmatprep.subr.mxu0 0.0
    %2163 = vmatpush1.msra.mxu0 0.0
    %2164 = vmatprep.subr.mxu0 0.0
    %2165 = vmatpush1.msra.mxu0 0.0
    %2166 = vmatprep.subr.mxu0 0.0
    %2167 = vmatpush1.msra.mxu0 0.0
    %2168 = vmatprep.subr.mxu0 0.0
    %2169 = vmatpush1.msra.mxu0 0.0
    %2170 = vmatprep.subr.mxu0 0.0
    %2171 = vmatpush1.msra.mxu0 0.0
    %2172 = vmatprep.subr.mxu0 0.0
    %2173 = vmatpush1.msra.mxu0 0.0
    %2174 = vmatprep.subr.mxu0 0.0
    %2175 = vmatpush1.msra.mxu0 0.0
    %2176 = vmatprep.subr.mxu0 0.0
    %2177 = vmatpush1.msra.mxu0 0.0
    %2178 = vmatprep.mubr.f32.mxu0 0.0
    %2179 = vmatmul.mubr.f32.gmra.mrb[0].mxu0 %v2112
    %v2180 = vpop.f32.mrb[0].mxu0
    %v2181 = vadd.f32 0.0, %v2180
    %v2182 = vpop.f32.mrb[0].mxu0
    %2183 = vdwg.mxu0
    %v2184 = vld [vmem:[#allocation6 + $0x170] sm:$0xff]
    %v2185 = vld [vmem:[#allocation6 + $0x178] sm:$0xff]
    %v2187 = vsel %vm582, %v1962, 0
    %v2190 = vsel %vm582, %v2035, 0
    %v2193 = vsel %vm582, %v2108, 0
    %v2196 = vsel %vm582, %v2181, 0
    %2198 = vmatprep.subr.mxu0 0.0
    %2199 = vmatpush1.msra.mxu0 %v2184
    %2200 = vmatprep.subr.mxu0 0.0
    %2201 = vmatpush1.msra.mxu0 %v2185
    %2202 = vmatprep.subr.mxu0 0.0
    %2203 = vmatpush1.msra.mxu0 0.0
    %2204 = vmatprep.subr.mxu0 0.0
    %2205 = vmatpush1.msra.mxu0 0.0
    %2206 = vmatprep.subr.mxu0 0.0
    %2207 = vmatpush1.msra.mxu0 0.0
    %2208 = vmatprep.subr.mxu0 0.0
    %2209 = vmatpush1.msra.mxu0 0.0
    %2210 = vmatprep.subr.mxu0 0.0
    %2211 = vmatpush1.msra.mxu0 0.0
    %2212 = vmatprep.subr.mxu0 0.0
    %2213 = vmatpush1.msra.mxu0 0.0
    %2214 = vmatprep.subr.mxu0 0.0
    %2215 = vmatpush1.msra.mxu0 0.0
    %2216 = vmatprep.subr.mxu0 0.0
    %2217 = vmatpush1.msra.mxu0 0.0
    %2218 = vmatprep.subr.mxu0 0.0
    %2219 = vmatpush1.msra.mxu0 0.0
    %2220 = vmatprep.subr.mxu0 0.0
    %2221 = vmatpush1.msra.mxu0 0.0
    %2222 = vmatprep.subr.mxu0 0.0
    %2223 = vmatpush1.msra.mxu0 0.0
    %2224 = vmatprep.subr.mxu0 0.0
    %2225 = vmatpush1.msra.mxu0 0.0
    %2226 = vmatprep.subr.mxu0 0.0
    %2227 = vmatpush1.msra.mxu0 0.0
    %2228 = vmatprep.subr.mxu0 0.0
    %2229 = vmatpush1.msra.mxu0 0.0
    %2230 = vmatprep.subr.mxu0 0.0
    %2231 = vmatpush1.msra.mxu0 0.0
    %2232 = vmatprep.subr.mxu0 0.0
    %2233 = vmatpush1.msra.mxu0 0.0
    %2234 = vmatprep.subr.mxu0 0.0
    %2235 = vmatpush1.msra.mxu0 0.0
    %2236 = vmatprep.subr.mxu0 0.0
    %2237 = vmatpush1.msra.mxu0 0.0
    %2238 = vmatprep.subr.mxu0 0.0
    %2239 = vmatpush1.msra.mxu0 0.0
    %2240 = vmatprep.subr.mxu0 0.0
    %2241 = vmatpush1.msra.mxu0 0.0
    %2242 = vmatprep.subr.mxu0 0.0
    %2243 = vmatpush1.msra.mxu0 0.0
    %2244 = vmatprep.subr.mxu0 0.0
    %2245 = vmatpush1.msra.mxu0 0.0
    %2246 = vmatprep.subr.mxu0 0.0
    %2247 = vmatpush1.msra.mxu0 0.0
    %2248 = vmatprep.subr.mxu0 0.0
    %2249 = vmatpush1.msra.mxu0 0.0
    %2250 = vmatprep.subr.mxu0 0.0
    %2251 = vmatpush1.msra.mxu0 0.0
    %2252 = vmatprep.subr.mxu0 0.0
    %2253 = vmatpush1.msra.mxu0 0.0
    %2254 = vmatprep.subr.mxu0 0.0
    %2255 = vmatpush1.msra.mxu0 0.0
    %2256 = vmatprep.subr.mxu0 0.0
    %2257 = vmatpush1.msra.mxu0 0.0
    %2258 = vmatprep.subr.mxu0 0.0
    %2259 = vmatpush1.msra.mxu0 0.0
    %2260 = vmatprep.subr.mxu0 0.0
    %2261 = vmatpush1.msra.mxu0 0.0
    %2262 = vmatprep.mubr.f32.mxu0 0.0
    %2263 = vmatmul.mubr.f32.gmra.mrb[0].mxu0 %v2187
    %v2264 = vpop.f32.mrb[0].mxu0
    %v2265 = vadd.f32 0.0, %v2264
    %v2266 = vpop.f32.mrb[0].mxu0
    %2267 = vmatprep.mubr.f32.mxu0 0.0
    %2268 = vmatmul.mubr.f32.gmra.mrb[0].mxu0 %v2190
    %v2269 = vpop.f32.mrb[0].mxu0
    %v2270 = vadd.f32 0.0, %v2269
    %v2271 = vpop.f32.mrb[0].mxu0
    %2272 = vmatprep.mubr.f32.mxu0 0.0
    %2273 = vmatmul.mubr.f32.gmra.mrb[0].mxu0 %v2193
    %v2274 = vpop.f32.mrb[0].mxu0
    %v2275 = vadd.f32 0.0, %v2274
    %v2276 = vpop.f32.mrb[0].mxu0
    %2277 = vmatprep.mubr.f32.mxu0 0.0
    %2278 = vmatmul.mubr.f32.gmra.mrb[0].mxu0 %v2196
    %v2279 = vpop.f32.mrb[0].mxu0
    %v2280 = vadd.f32 0.0, %v2279
    %v2281 = vpop.f32.mrb[0].mxu0
    %2282 = vdwg.mxu0
    %v2284 = vsel %vm582, %v1030, 0
    %v2287 = vsel %vm582, %v1103, 0
    %v2290 = vsel %vm582, %v1176, 0
    %v2293 = vsel %vm582, %v1249, 0
    %2295 = vmatprep.subr.mxu0 0.0
    %2296 = vmatpush1.msra.mxu0 %v1252
    %2297 = vmatprep.subr.mxu0 0.0
    %2298 = vmatpush1.msra.mxu0 %v1253
    %2299 = vmatprep.subr.mxu0 0.0
    %2300 = vmatpush1.msra.mxu0 0.0
    %2301 = vmatprep.subr.mxu0 0.0
    %2302 = vmatpush1.msra.mxu0 0.0
    %2303 = vmatprep.subr.mxu0 0.0
    %2304 = vmatpush1.msra.mxu0 0.0
    %2305 = vmatprep.subr.mxu0 0.0
    %2306 = vmatpush1.msra.mxu0 0.0
    %2307 = vmatprep.subr.mxu0 0.0
    %2308 = vmatpush1.msra.mxu0 0.0
    %2309 = vmatprep.subr.mxu0 0.0
    %2310 = vmatpush1.msra.mxu0 0.0
    %2311 = vmatprep.subr.mxu0 0.0
    %2312 = vmatpush1.msra.mxu0 0.0
    %2313 = vmatprep.subr.mxu0 0.0
    %2314 = vmatpush1.msra.mxu0 0.0
    %2315 = vmatprep.subr.mxu0 0.0
    %2316 = vmatpush1.msra.mxu0 0.0
    %2317 = vmatprep.subr.mxu0 0.0
    %2318 = vmatpush1.msra.mxu0 0.0
    %2319 = vmatprep.subr.mxu0 0.0
    %2320 = vmatpush1.msra.mxu0 0.0
    %2321 = vmatprep.subr.mxu0 0.0
    %2322 = vmatpush1.msra.mxu0 0.0
    %2323 = vmatprep.subr.mxu0 0.0
    %2324 = vmatpush1.msra.mxu0 0.0
    %2325 = vmatprep.subr.mxu0 0.0
    %2326 = vmatpush1.msra.mxu0 0.0
    %2327 = vmatprep.subr.mxu0 0.0
    %2328 = vmatpush1.msra.mxu0 0.0
    %2329 = vmatprep.subr.mxu0 0.0
    %2330 = vmatpush1.msra.mxu0 0.0
    %2331 = vmatprep.subr.mxu0 0.0
    %2332 = vmatpush1.msra.mxu0 0.0
    %2333 = vmatprep.subr.mxu0 0.0
    %2334 = vmatpush1.msra.mxu0 0.0
    %2335 = vmatprep.subr.mxu0 0.0
    %2336 = vmatpush1.msra.mxu0 0.0
    %2337 = vmatprep.subr.mxu0 0.0
    %2338 = vmatpush1.msra.mxu0 0.0
    %2339 = vmatprep.subr.mxu0 0.0
    %2340 = vmatpush1.msra.mxu0 0.0
    %2341 = vmatprep.subr.mxu0 0.0
    %2342 = vmatpush1.msra.mxu0 0.0
    %2343 = vmatprep.subr.mxu0 0.0
    %2344 = vmatpush1.msra.mxu0 0.0
    %2345 = vmatprep.subr.mxu0 0.0
    %2346 = vmatpush1.msra.mxu0 0.0
    %2347 = vmatprep.subr.mxu0 0.0
    %2348 = vmatpush1.msra.mxu0 0.0
    %2349 = vmatprep.subr.mxu0 0.0
    %2350 = vmatpush1.msra.mxu0 0.0
    %2351 = vmatprep.subr.mxu0 0.0
    %2352 = vmatpush1.msra.mxu0 0.0
    %2353 = vmatprep.subr.mxu0 0.0
    %2354 = vmatpush1.msra.mxu0 0.0
    %2355 = vmatprep.subr.mxu0 0.0
    %2356 = vmatpush1.msra.mxu0 0.0
    %2357 = vmatprep.subr.mxu0 0.0
    %2358 = vmatpush1.msra.mxu0 0.0
    %2359 = vmatprep.mubr.f32.mxu0 0.0
    %2360 = vmatmul.mubr.f32.gmra.mrb[0].mxu0 %v2284
    %v2361 = vpop.f32.mrb[0].mxu0
    %v2362 = vadd.f32 %v2265, %v2361
    %v2363 = vpop.f32.mrb[0].mxu0
    %2364 = vmatprep.mubr.f32.mxu0 0.0
    %2365 = vmatmul.mubr.f32.gmra.mrb[0].mxu0 %v2287
    %v2366 = vpop.f32.mrb[0].mxu0
    %v2367 = vadd.f32 %v2270, %v2366
    %v2368 = vpop.f32.mrb[0].mxu0
    %2369 = vmatprep.mubr.f32.mxu0 0.0
    %2370 = vmatmul.mubr.f32.gmra.mrb[0].mxu0 %v2290
    %v2371 = vpop.f32.mrb[0].mxu0
    %v2372 = vadd.f32 %v2275, %v2371
    %v2373 = vpop.f32.mrb[0].mxu0
    %2374 = vmatprep.mubr.f32.mxu0 0.0
    %2375 = vmatmul.mubr.f32.gmra.mrb[0].mxu0 %v2293
    %v2376 = vpop.f32.mrb[0].mxu0
    %v2377 = vadd.f32 %v2280, %v2376
    %v2378 = vpop.f32.mrb[0].mxu0
    %2379 = vdwg.mxu0
    %v2380 = vld [vmem:[#allocation6 + $0x1e6] sm:$0x1]
    %v2381 = vlaneseq
    %v2382 = vshrl.u32 %v2381, 7
    %v2383 = vsub.s32 0, %v2382
    %v2384 = vrot.slane %v2380, %v2383
    %v2385 = vadd.f32 %v2362, %v2384
    %v2386 = vadd.f32 %v2367, %v2384
    %v2387 = vadd.f32 %v2372, %v2384
    %v2388 = vadd.f32 %v2377, %v2384
    %v2389 = vadd.f32 %v256, %v2385
    %v2390 = vadd.f32 %v257, %v2386
    %v2391 = vadd.f32 %v258, %v2387
    %v2392 = vadd.f32 %v259, %v2388
    %v2393 = vld [vmem:[#allocation6 + $0x1e2] sm:$0x1]
    %v2394 = vld [vmem:[#allocation6 + $0x1e3] sm:$0x1]
    %v2395 = vsel %vm178, %v2389, 0.0
    %2396 = vadd.xlane.f32.xlu0 %v2395
    %v2397 = vpop.xlane.xlu0 %2396
    %v2398 = vsel %vm178, %v2390, 0.0
    %2399 = vadd.xlane.f32.xlu0 %v2398
    %v2400 = vpop.xlane.xlu0 %2399
    %v2401 = vsel %vm178, %v2391, 0.0
    %2402 = vadd.xlane.f32.xlu0 %v2401
    %v2403 = vpop.xlane.xlu0 %2402
    %v2404 = vsel %vm178, %v2392, 0.0
    %2405 = vadd.xlane.f32.xlu0 %v2404
    %v2406 = vpop.xlane.xlu0 %2405
    %v2407 = vmul.f32 %v2397, %v191
    %v2408 = vmul.f32 %v2400, %v191
    %v2409 = vmul.f32 %v2403, %v191
    %v2410 = vmul.f32 %v2406, %v191
    %v2411 = vmul.f32 %v2389, %v2389
    %v2412 = vmul.f32 %v2390, %v2390
    %v2413 = vmul.f32 %v2391, %v2391
    %v2414 = vmul.f32 %v2392, %v2392
    %v2415 = vsel %vm178, %v2411, 0.0
    %2416 = vadd.xlane.f32.xlu0 %v2415
    %v2417 = vpop.xlane.xlu0 %2416
    %v2418 = vsel %vm178, %v2412, 0.0
    %2419 = vadd.xlane.f32.xlu0 %v2418
    %v2420 = vpop.xlane.xlu0 %2419
    %v2421 = vsel %vm178, %v2413, 0.0
    %2422 = vadd.xlane.f32.xlu0 %v2421
    %v2423 = vpop.xlane.xlu0 %2422
    %v2424 = vsel %vm178, %v2414, 0.0
    %2425 = vadd.xlane.f32.xlu0 %v2424
    %v2426 = vpop.xlane.xlu0 %2425
    %v2427 = vmul.f32 %v2417, %v191
    %v2428 = vmul.f32 %v2420, %v191
    %v2429 = vmul.f32 %v2423, %v191
    %v2430 = vmul.f32 %v2426, %v191
    %v2431 = vmul.f32 %v2407, %v2407
    %v2432 = vmul.f32 %v2408, %v2408
    %v2433 = vmul.f32 %v2409, %v2409
    %v2434 = vmul.f32 %v2410, %v2410
    %v2435 = vsub.f32 %v2427, %v2431
    %v2436 = vsub.f32 %v2428, %v2432
    %v2437 = vsub.f32 %v2429, %v2433
    %v2438 = vsub.f32 %v2430, %v2434
    %v2439 = vmax.f32 %v2435, 0.0
    %v2440 = vmax.f32 %v2436, 0.0
    %v2441 = vmax.f32 %v2437, 0.0
    %v2442 = vmax.f32 %v2438, 0.0
    %v2443 = vsub.f32 %v2389, %v2407
    %v2444 = vsub.f32 %v2390, %v2408
    %v2445 = vsub.f32 %v2391, %v2409
    %v2446 = vsub.f32 %v2392, %v2410
    %v2447 = vadd.f32 %v2439, 1e-12
    %v2448 = vadd.f32 %v2440, 1e-12
    %v2449 = vadd.f32 %v2441, 1e-12
    %v2450 = vadd.f32 %v2442, 1e-12
    %v2451 = vrsqrt.pop %v2447
    %v2452 = vrsqrt.pop %v2448
    %v2453 = vrsqrt.pop %v2449
    %v2454 = vrsqrt.pop %v2450
    %v2455 = vmul.f32 %v2443, %v2451
    %v2456 = vmul.f32 %v2444, %v2452
    %v2457 = vmul.f32 %v2445, %v2453
    %v2458 = vmul.f32 %v2446, %v2454
    %v2459 = vlaneseq
    %v2460 = vshrl.u32 %v2459, 7
    %v2461 = vsub.s32 0, %v2460
    %v2462 = vrot.slane %v2393, %v2461
    %v2463 = vmul.f32 %v2455, %v2462
    %v2464 = vmul.f32 %v2456, %v2462
    %v2465 = vmul.f32 %v2457, %v2462
    %v2466 = vmul.f32 %v2458, %v2462
    %v2467 = vlaneseq
    %v2468 = vshrl.u32 %v2467, 7
    %v2469 = vsub.s32 0, %v2468
    %v2470 = vrot.slane %v2394, %v2469
    %v2471 = vadd.f32 %v2463, %v2470
    %v2472 = vadd.f32 %v2464, %v2470
    %v2473 = vadd.f32 %v2465, %v2470
    %v2474 = vadd.f32 %v2466, %v2470
    %v2475 = vld [vmem:[#allocation6 + $0x180] sm:$0xff]
    %v2476 = vld [vmem:[#allocation6 + $0x188] sm:$0xff]
    %v2477 = vld [vmem:[#allocation6 + $0x190] sm:$0xff]
    %v2478 = vld [vmem:[#allocation6 + $0x198] sm:$0xff]
    %v2479 = vld [vmem:[#allocation6 + $0x1e8] sm:$0x1]
    %v2480 = vlaneseq
    %v2481 = vshrl.u32 %v2480, 7
    %v2482 = vsub.s32 0, %v2481
    %v2483 = vrot.slane %v2479, %v2482
    %v2485 = vsel %vm178, %v2471, 0
    %v2488 = vsel %vm178, %v2472, 0
    %v2491 = vsel %vm178, %v2473, 0
    %v2494 = vsel %vm178, %v2474, 0
    %2496 = vmatprep.subr.mxu0 0.0
    %2497 = vmatpush1.msra.mxu0 %v2475
    %2498 = vmatprep.subr.mxu0 0.0
    %2499 = vmatpush1.msra.mxu0 %v2476
    %2500 = vmatprep.subr.mxu0 0.0
    %2501 = vmatpush1.msra.mxu0 %v2477
    %2502 = vmatprep.subr.mxu0 0.0
    %2503 = vmatpush1.msra.mxu0 %v2478
    %2504 = vmatprep.subr.mxu0 0.0
    %2505 = vmatpush1.msra.mxu0 0.0
    %2506 = vmatprep.subr.mxu0 0.0
    %2507 = vmatpush1.msra.mxu0 0.0
    %2508 = vmatprep.subr.mxu0 0.0
    %2509 = vmatpush1.msra.mxu0 0.0
    %2510 = vmatprep.subr.mxu0 0.0
    %2511 = vmatpush1.msra.mxu0 0.0
    %2512 = vmatprep.subr.mxu0 0.0
    %2513 = vmatpush1.msra.mxu0 0.0
    %2514 = vmatprep.subr.mxu0 0.0
    %2515 = vmatpush1.msra.mxu0 0.0
    %2516 = vmatprep.subr.mxu0 0.0
    %2517 = vmatpush1.msra.mxu0 0.0
    %2518 = vmatprep.subr.mxu0 0.0
    %2519 = vmatpush1.msra.mxu0 0.0
    %2520 = vmatprep.subr.mxu0 0.0
    %2521 = vmatpush1.msra.mxu0 0.0
    %2522 = vmatprep.subr.mxu0 0.0
    %2523 = vmatpush1.msra.mxu0 0.0
    %2524 = vmatprep.subr.mxu0 0.0
    %2525 = vmatpush1.msra.mxu0 0.0
    %2526 = vmatprep.subr.mxu0 0.0
    %2527 = vmatpush1.msra.mxu0 0.0
    %2528 = vmatprep.subr.mxu0 0.0
    %2529 = vmatpush1.msra.mxu0 0.0
    %2530 = vmatprep.subr.mxu0 0.0
    %2531 = vmatpush1.msra.mxu0 0.0
    %2532 = vmatprep.subr.mxu0 0.0
    %2533 = vmatpush1.msra.mxu0 0.0
    %2534 = vmatprep.subr.mxu0 0.0
    %2535 = vmatpush1.msra.mxu0 0.0
    %2536 = vmatprep.subr.mxu0 0.0
    %2537 = vmatpush1.msra.mxu0 0.0
    %2538 = vmatprep.subr.mxu0 0.0
    %2539 = vmatpush1.msra.mxu0 0.0
    %2540 = vmatprep.subr.mxu0 0.0
    %2541 = vmatpush1.msra.mxu0 0.0
    %2542 = vmatprep.subr.mxu0 0.0
    %2543 = vmatpush1.msra.mxu0 0.0
    %2544 = vmatprep.subr.mxu0 0.0
    %2545 = vmatpush1.msra.mxu0 0.0
    %2546 = vmatprep.subr.mxu0 0.0
    %2547 = vmatpush1.msra.mxu0 0.0
    %2548 = vmatprep.subr.mxu0 0.0
    %2549 = vmatpush1.msra.mxu0 0.0
    %2550 = vmatprep.subr.mxu0 0.0
    %2551 = vmatpush1.msra.mxu0 0.0
    %2552 = vmatprep.subr.mxu0 0.0
    %2553 = vmatpush1.msra.mxu0 0.0
    %2554 = vmatprep.subr.mxu0 0.0
    %2555 = vmatpush1.msra.mxu0 0.0
    %2556 = vmatprep.subr.mxu0 0.0
    %2557 = vmatpush1.msra.mxu0 0.0
    %2558 = vmatprep.subr.mxu0 0.0
    %2559 = vmatpush1.msra.mxu0 0.0
    %2560 = vmatprep.mubr.f32.mxu0 0.0
    %2561 = vmatmul.mubr.f32.gmra.mrb[0].mxu0 %v2485
    %v2562 = vpop.f32.mrb[0].mxu0
    %v2563 = vadd.f32 %v2483, %v2562
    %v2564 = vpop.f32.mrb[0].mxu0
    %2565 = vmatprep.mubr.f32.mxu0 0.0
    %2566 = vmatmul.mubr.f32.gmra.mrb[0].mxu0 %v2488
    %v2567 = vpop.f32.mrb[0].mxu0
    %v2568 = vadd.f32 %v2483, %v2567
    %v2569 = vpop.f32.mrb[0].mxu0
    %2570 = vmatprep.mubr.f32.mxu0 0.0
    %2571 = vmatmul.mubr.f32.gmra.mrb[0].mxu0 %v2491
    %v2572 = vpop.f32.mrb[0].mxu0
    %v2573 = vadd.f32 %v2483, %v2572
    %v2574 = vpop.f32.mrb[0].mxu0
    %2575 = vmatprep.mubr.f32.mxu0 0.0
    %2576 = vmatmul.mubr.f32.gmra.mrb[0].mxu0 %v2494
    %v2577 = vpop.f32.mrb[0].mxu0
    %v2578 = vadd.f32 %v2483, %v2577
    %v2579 = vpop.f32.mrb[0].mxu0
    %2580 = vdwg.mxu0
    %v2581 = vmul.f32 %v2563, %v2563
    %v2582 = vmul.f32 %v2568, %v2568
    %v2583 = vmul.f32 %v2573, %v2573
    %v2584 = vmul.f32 %v2578, %v2578
    %v2585 = vmul.f32 %v2563, %v2581
    %v2586 = vmul.f32 %v2568, %v2582
    %v2587 = vmul.f32 %v2573, %v2583
    %v2588 = vmul.f32 %v2578, %v2584
    %v2589 = vmul.f32 %v2585, 0.044715
    %v2590 = vmul.f32 %v2586, 0.044715
    %v2591 = vmul.f32 %v2587, 0.044715
    %v2592 = vmul.f32 %v2588, 0.044715
    %v2593 = vadd.f32 %v2563, %v2589
    %v2594 = vadd.f32 %v2568, %v2590
    %v2595 = vadd.f32 %v2573, %v2591
    %v2596 = vadd.f32 %v2578, %v2592
    %v2597 = vmul.f32 %v2593, 0.7978846
    %v2598 = vmul.f32 %v2594, 0.7978846
    %v2599 = vmul.f32 %v2595, 0.7978846
    %v2600 = vmul.f32 %v2596, 0.7978846
    %v2601 = vtanh.pop %v2597
    %v2602 = vtanh.pop %v2598
    %v2603 = vtanh.pop %v2599
    %v2604 = vtanh.pop %v2600
    %v2605 = vadd.f32 %v2601, 1.0
    %v2606 = vadd.f32 %v2602, 1.0
    %v2607 = vadd.f32 %v2603, 1.0
    %v2608 = vadd.f32 %v2604, 1.0
    %v2609 = vmul.f32 %v2605, 0.5
    %v2610 = vmul.f32 %v2606, 0.5
    %v2611 = vmul.f32 %v2607, 0.5
    %v2612 = vmul.f32 %v2608, 0.5
    %v2613 = vmul.f32 %v2563, %v2609
    %v2614 = vmul.f32 %v2568, %v2610
    %v2615 = vmul.f32 %v2573, %v2611
    %v2616 = vmul.f32 %v2578, %v2612
    %v2617 = vld [vmem:[#allocation6 + $0x1a0] sm:$0xff]
    %v2618 = vld [vmem:[#allocation6 + $0x1a8] sm:$0xff]
    %v2619 = vld [vmem:[#allocation6 + $0x1b0] sm:$0xff]
    %v2620 = vld [vmem:[#allocation6 + $0x1b8] sm:$0xff]
    %v2621 = vld [vmem:[#allocation6 + $0x1c0] sm:$0xff]
    %v2622 = vld [vmem:[#allocation6 + $0x1c8] sm:$0xff]
    %v2623 = vld [vmem:[#allocation6 + $0x1d0] sm:$0xff]
    %v2624 = vld [vmem:[#allocation6 + $0x1d8] sm:$0xff]
    %v2625 = vld [vmem:[#allocation6 + $0x1e7] sm:$0x1]
    %v2626 = vlaneseq
    %v2627 = vshrl.u32 %v2626, 7
    %v2628 = vsub.s32 0, %v2627
    %v2629 = vrot.slane %v2625, %v2628
    %vm2630 = vcmask 523264
    %v2632 = vsel %vm2630, %v2613, 0
    %v2635 = vsel %vm2630, %v2614, 0
    %v2638 = vsel %vm2630, %v2615, 0
    %v2641 = vsel %vm2630, %v2616, 0
    %2643 = vmatprep.subr.mxu0 0.0
    %2644 = vmatpush1.msra.mxu0 %v2617
    %2645 = vmatprep.subr.mxu0 0.0
    %2646 = vmatpush1.msra.mxu0 %v2618
    %2647 = vmatprep.subr.mxu0 0.0
    %2648 = vmatpush1.msra.mxu0 %v2619
    %2649 = vmatprep.subr.mxu0 0.0
    %2650 = vmatpush1.msra.mxu0 %v2620
    %2651 = vmatprep.subr.mxu0 0.0
    %2652 = vmatpush1.msra.mxu0 %v2621
    %2653 = vmatprep.subr.mxu0 0.0
    %2654 = vmatpush1.msra.mxu0 %v2622
    %2655 = vmatprep.subr.mxu0 0.0
    %2656 = vmatpush1.msra.mxu0 %v2623
    %2657 = vmatprep.subr.mxu0 0.0
    %2658 = vmatpush1.msra.mxu0 %v2624
    %2659 = vmatprep.subr.mxu0 0.0
    %2660 = vmatpush1.msra.mxu0 0.0
    %2661 = vmatprep.subr.mxu0 0.0
    %2662 = vmatpush1.msra.mxu0 0.0
    %2663 = vmatprep.subr.mxu0 0.0
    %2664 = vmatpush1.msra.mxu0 0.0
    %2665 = vmatprep.subr.mxu0 0.0
    %2666 = vmatpush1.msra.mxu0 0.0
    %2667 = vmatprep.subr.mxu0 0.0
    %2668 = vmatpush1.msra.mxu0 0.0
    %2669 = vmatprep.subr.mxu0 0.0
    %2670 = vmatpush1.msra.mxu0 0.0
    %2671 = vmatprep.subr.mxu0 0.0
    %2672 = vmatpush1.msra.mxu0 0.0
    %2673 = vmatprep.subr.mxu0 0.0
    %2674 = vmatpush1.msra.mxu0 0.0
    %2675 = vmatprep.subr.mxu0 0.0
    %2676 = vmatpush1.msra.mxu0 0.0
    %2677 = vmatprep.subr.mxu0 0.0
    %2678 = vmatpush1.msra.mxu0 0.0
    %2679 = vmatprep.subr.mxu0 0.0
    %2680 = vmatpush1.msra.mxu0 0.0
    %2681 = vmatprep.subr.mxu0 0.0
    %2682 = vmatpush1.msra.mxu0 0.0
    %2683 = vmatprep.subr.mxu0 0.0
    %2684 = vmatpush1.msra.mxu0 0.0
    %2685 = vmatprep.subr.mxu0 0.0
    %2686 = vmatpush1.msra.mxu0 0.0
    %2687 = vmatprep.subr.mxu0 0.0
    %2688 = vmatpush1.msra.mxu0 0.0
    %2689 = vmatprep.subr.mxu0 0.0
    %2690 = vmatpush1.msra.mxu0 0.0
    %2691 = vmatprep.subr.mxu0 0.0
    %2692 = vmatpush1.msra.mxu0 0.0
    %2693 = vmatprep.subr.mxu0 0.0
    %2694 = vmatpush1.msra.mxu0 0.0
    %2695 = vmatprep.subr.mxu0 0.0
    %2696 = vmatpush1.msra.mxu0 0.0
    %2697 = vmatprep.subr.mxu0 0.0
    %2698 = vmatpush1.msra.mxu0 0.0
    %2699 = vmatprep.subr.mxu0 0.0
    %2700 = vmatpush1.msra.mxu0 0.0
    %2701 = vmatprep.subr.mxu0 0.0
    %2702 = vmatpush1.msra.mxu0 0.0
    %2703 = vmatprep.subr.mxu0 0.0
    %2704 = vmatpush1.msra.mxu0 0.0
    %2705 = vmatprep.subr.mxu0 0.0
    %2706 = vmatpush1.msra.mxu0 0.0
    %2707 = vmatprep.mubr.f32.mxu0 0.0
    %2708 = vmatmul.mubr.f32.gmra.mrb[0].mxu0 %v2632
    %v2709 = vpop.f32.mrb[0].mxu0
    %v2710 = vadd.f32 %v2629, %v2709
    %v2711 = vpop.f32.mrb[0].mxu0
    %2712 = vmatprep.mubr.f32.mxu0 0.0
    %2713 = vmatmul.mubr.f32.gmra.mrb[0].mxu0 %v2635
    %v2714 = vpop.f32.mrb[0].mxu0
    %v2715 = vadd.f32 %v2629, %v2714
    %v2716 = vpop.f32.mrb[0].mxu0
    %2717 = vmatprep.mubr.f32.mxu0 0.0
    %2718 = vmatmul.mubr.f32.gmra.mrb[0].mxu0 %v2638
    %v2719 = vpop.f32.mrb[0].mxu0
    %v2720 = vadd.f32 %v2629, %v2719
    %v2721 = vpop.f32.mrb[0].mxu0
    %2722 = vmatprep.mubr.f32.mxu0 0.0
    %2723 = vmatmul.mubr.f32.gmra.mrb[0].mxu0 %v2641
    %v2724 = vpop.f32.mrb[0].mxu0
    %v2725 = vadd.f32 %v2629, %v2724
    %v2726 = vpop.f32.mrb[0].mxu0
    %2727 = vdwg.mxu0
    %v2728 = vadd.f32 %v2471, %v2710
    %v2729 = vadd.f32 %v2472, %v2715
    %v2730 = vadd.f32 %v2473, %v2720
    %v2731 = vadd.f32 %v2474, %v2725
    %v2732 = vld [vmem:[#allocation6 + $0x1e4] sm:$0x1]
    %v2733 = vld [vmem:[#allocation6 + $0x1e5] sm:$0x1]
    %v2734 = vsel %vm178, %v2728, 0.0
    %2735 = vadd.xlane.f32.xlu0 %v2734
    %v2736 = vpop.xlane.xlu0 %2735
    %v2737 = vsel %vm178, %v2729, 0.0
    %2738 = vadd.xlane.f32.xlu0 %v2737
    %v2739 = vpop.xlane.xlu0 %2738
    %v2740 = vsel %vm178, %v2730, 0.0
    %2741 = vadd.xlane.f32.xlu0 %v2740
    %v2742 = vpop.xlane.xlu0 %2741
    %v2743 = vsel %vm178, %v2731, 0.0
    %2744 = vadd.xlane.f32.xlu0 %v2743
    %v2745 = vpop.xlane.xlu0 %2744
    %v2746 = vmul.f32 %v2736, %v191
    %v2747 = vmul.f32 %v2739, %v191
    %v2748 = vmul.f32 %v2742, %v191
    %v2749 = vmul.f32 %v2745, %v191
    %v2750 = vmul.f32 %v2728, %v2728
    %v2751 = vmul.f32 %v2729, %v2729
    %v2752 = vmul.f32 %v2730, %v2730
    %v2753 = vmul.f32 %v2731, %v2731
    %v2754 = vsel %vm178, %v2750, 0.0
    %2755 = vadd.xlane.f32.xlu0 %v2754
    %v2756 = vpop.xlane.xlu0 %2755
    %v2757 = vsel %vm178, %v2751, 0.0
    %2758 = vadd.xlane.f32.xlu0 %v2757
    %v2759 = vpop.xlane.xlu0 %2758
    %v2760 = vsel %vm178, %v2752, 0.0
    %2761 = vadd.xlane.f32.xlu0 %v2760
    %v2762 = vpop.xlane.xlu0 %2761
    %v2763 = vsel %vm178, %v2753, 0.0
    %2764 = vadd.xlane.f32.xlu0 %v2763
    %v2765 = vpop.xlane.xlu0 %2764
    %v2766 = vmul.f32 %v2756, %v191
    %v2767 = vmul.f32 %v2759, %v191
    %v2768 = vmul.f32 %v2762, %v191
    %v2769 = vmul.f32 %v2765, %v191
    %v2770 = vmul.f32 %v2746, %v2746
    %v2771 = vmul.f32 %v2747, %v2747
    %v2772 = vmul.f32 %v2748, %v2748
    %v2773 = vmul.f32 %v2749, %v2749
    %v2774 = vsub.f32 %v2766, %v2770
    %v2775 = vsub.f32 %v2767, %v2771
    %v2776 = vsub.f32 %v2768, %v2772
    %v2777 = vsub.f32 %v2769, %v2773
    %v2778 = vmax.f32 %v2774, 0.0
    %v2779 = vmax.f32 %v2775, 0.0
    %v2780 = vmax.f32 %v2776, 0.0
    %v2781 = vmax.f32 %v2777, 0.0
    %v2782 = vsub.f32 %v2728, %v2746
    %v2783 = vsub.f32 %v2729, %v2747
    %v2784 = vsub.f32 %v2730, %v2748
    %v2785 = vsub.f32 %v2731, %v2749
    %v2786 = vadd.f32 %v2778, 1e-12
    %v2787 = vadd.f32 %v2779, 1e-12
    %v2788 = vadd.f32 %v2780, 1e-12
    %v2789 = vadd.f32 %v2781, 1e-12
    %v2790 = vrsqrt.pop %v2786
    %v2791 = vrsqrt.pop %v2787
    %v2792 = vrsqrt.pop %v2788
    %v2793 = vrsqrt.pop %v2789
    %v2794 = vmul.f32 %v2782, %v2790
    %v2795 = vmul.f32 %v2783, %v2791
    %v2796 = vmul.f32 %v2784, %v2792
    %v2797 = vmul.f32 %v2785, %v2793
    %v2798 = vlaneseq
    %v2799 = vshrl.u32 %v2798, 7
    %v2800 = vsub.s32 0, %v2799
    %v2801 = vrot.slane %v2732, %v2800
    %v2802 = vmul.f32 %v2794, %v2801
    %v2803 = vmul.f32 %v2795, %v2801
    %v2804 = vmul.f32 %v2796, %v2801
    %v2805 = vmul.f32 %v2797, %v2801
    %v2806 = vlaneseq
    %v2807 = vshrl.u32 %v2806, 7
    %v2808 = vsub.s32 0, %v2807
    %v2809 = vrot.slane %v2733, %v2808
    %v2810 = vadd.f32 %v2802, %v2809
    %v2811 = vadd.f32 %v2803, %v2809
    %v2812 = vadd.f32 %v2804, %v2809
    %v2813 = vadd.f32 %v2805, %v2809
    %v2814 = vsel %vm178, %v2810, 0.0
    %v2815 = vrot.slane %v2814, 4
    %v2816 = vadd.f32 %v2814, %v2815
    %v2817 = vrot.slane %v2816, 2
    %v2818 = vadd.f32 %v2816, %v2817
    %v2819 = vrot.slane %v2818, 1
    %v2820 = vadd.f32 %v2818, %v2819
    %v2821 = vsel %vm178, %v2811, 0.0
    %v2822 = vrot.slane %v2821, 4
    %v2823 = vadd.f32 %v2821, %v2822
    %v2824 = vrot.slane %v2823, 2
    %v2825 = vadd.f32 %v2823, %v2824
    %v2826 = vrot.slane %v2825, 1
    %v2827 = vadd.f32 %v2825, %v2826
    %v2828 = vsel %vm178, %v2812, 0.0
    %v2829 = vrot.slane %v2828, 4
    %v2830 = vadd.f32 %v2828, %v2829
    %v2831 = vrot.slane %v2830, 2
    %v2832 = vadd.f32 %v2830, %v2831
    %v2833 = vrot.slane %v2832, 1
    %v2834 = vadd.f32 %v2832, %v2833
    %v2835 = vsel %vm178, %v2813, 0.0
    %v2836 = vrot.slane %v2835, 4
    %v2837 = vadd.f32 %v2835, %v2836
    %v2838 = vrot.slane %v2837, 2
    %v2839 = vadd.f32 %v2837, %v2838
    %v2840 = vrot.slane %v2839, 1
    %v2841 = vadd.f32 %v2839, %v2840
    %v2842 = vrcp.pop 8.0
    %v2843 = vmul.f32 %v2820, %v2842
    %v2844 = vmul.f32 %v2827, %v2842
    %v2845 = vmul.f32 %v2834, %v2842
    %v2846 = vmul.f32 %v2841, %v2842
    %v2847 = vmul.f32 %v2845, %v2843
    %v2848 = vmul.f32 %v2846, %v2844
    %vm2851 = vcmask 1041409
    %v2852 = vsel %vm2851, %v2848, %v2847
    %vm2854 = vcmask 254976
    %v2855 = vsel %vm2854, %v2852, 0.0
    %2856 = vadd.xlane.f32.xlu0 %v2855
    %v2857 = vpop.xlane.xlu0 %2856
    %v2858 = vmul.f32 %v2843, %v2843
    %v2859 = vmul.f32 %v2844, %v2844
    %v2862 = vsel %vm2851, %v2859, %v2858
    %v2864 = vsel %vm2854, %v2862, 0.0
    %2865 = vadd.xlane.f32.xlu0 %v2864
    %v2866 = vpop.xlane.xlu0 %2865
    %v2867 = vrsqrt.pop %v2866
    %v2868 = vmul.f32 %v2866, %v2867
    %vm2869 = vcmp.eq.f32.partialorder %v2866, inf
    %v2870 = vsel %vm2869, %v2866, %v2868
    %vm2871 = vcmp.eq.f32.partialorder %v2866, 0.0
    %v2872 = vand.u32 %v2866, 2147483648
    %v2873 = vsel %vm2871, %v2872, %v2870
    %v2874 = vmul.f32 %v2845, %v2845
    %v2875 = vmul.f32 %v2846, %v2846
    %v2878 = vsel %vm2851, %v2875, %v2874
    %v2880 = vsel %vm2854, %v2878, 0.0
    %2881 = vadd.xlane.f32.xlu0 %v2880
    %v2882 = vpop.xlane.xlu0 %2881
    %v2883 = vrsqrt.pop %v2882
    %v2884 = vmul.f32 %v2882, %v2883
    %vm2885 = vcmp.eq.f32.partialorder %v2882, inf
    %v2886 = vsel %vm2885, %v2882, %v2884
    %vm2887 = vcmp.eq.f32.partialorder %v2882, 0.0
    %v2888 = vand.u32 %v2882, 2147483648
    %v2889 = vsel %vm2887, %v2888, %v2886
    %v2890 = vmul.f32 %v2873, %v2889
    %v2891 = vmax.f32 %v2890, 1e-08
    %v2892 = vrcp.pop %v2891
    %v2893 = vmul.f32 %v2857, %v2892
    %v2894 = vlaneseq
    %v2895 = vshrl.u32 %v2894, 7
    %s2896 = sld [smem:[#allocation2]]
    %p2897 = scmp.ne.s32.totalorder %s2896, 0
    %s2898 = scalar_select %p2897, %s2896, 4294967295
    %vm2899 = vcmp.eq.s32.totalorder %v2895, 0
    %v2900 = vstv %s2898
    %v2901 = vsel %vm2899, %v2900, 4294967295
    %s2902 = sld [smem:[#allocation2 + $0x1]]
    %p2903 = scmp.ne.s32.totalorder %s2902, 0
    %s2904 = scalar_select %p2903, %s2902, 4294967295
    %vm2905 = vcmp.eq.s32.totalorder %v2895, 1
    %v2906 = vstv %s2904
    %v2907 = vsel %vm2905, %v2906, %v2901
    %vm2908 = vcmp.eq.s32.totalorder %v2907, 1
    %v2909 = vsub.f32 1.0, %v2893
    %v2910 = vsub.f32 %v2893, 0.5
    %v2911 = vmax.f32 %v2910, 0.0
    %v2912 = vsel %vm2908, %v2909, %v2911
    %vm2913 = vcmask 1024
    %v2914 = vsel %vm2913, %v2912, 0.0
    %2915 = vadd.xlane.f32.xlu0 %v2914
    %v2916 = vpop.xlane.xlu0 %2915
    %v2917 = vrot.slane %v2916, 4
    %v2918 = vadd.f32 %v2916, %v2917
    %v2919 = vrot.slane %v2918, 2
    %v2920 = vadd.f32 %v2918, %v2919
    %v2921 = vrot.slane %v2920, 1
    %v2922 = vadd.f32 %v2920, %v2921
    %s2923 = vtos %v2922
    %v2924 = vstv %s2923
    %v2925 = vrcp.pop 2.0
    %v2926 = vmul.f32 %v2924, %v2925
    %vm2927 = vcmask 1041408
    %v2928 = vsel %vm2927, %v2857, %v2926
    %vm2929 = vcmask 1042432
    %v2930 = vsel %vm2929, %v2928, 0.0
    %2932 = vset.pattern.permute.xlu0 0
    %2933 = vperm.xlu0 %2932, %v2930
    %v2934 = vpop.permute.xlu0 %2933
    %2936 = vst [vmem:[#allocation7] sm:$0xff] %v2934
    // Predicated region
    $region26: #{tpu_custom_call.1} parent=1 // pred_check
      _
    $region27: #{tpu_custom_call.1} parent=1 // pred_check_branch
      %2938 = sbr.rel (0) target = $region29
    $region28: #{tpu_custom_call.1} parent=1 // pred_region
      %s2940 = ssub.s32 128, 128
      %2941 = vsyncadd [#allocation4], %s2940
      %s2943 = sshll.u32 [#allocation7], 4
      %s2944 = int_to_ptr.vmem [resolvable:$true] %s2943
      %2946 = dma.vmem_to_hbm [thread:$0]  %s2944, 128, %s4, [#allocation4]
    $region29: #{tpu_custom_call.1} parent=1 // pred_fallthru
      _
    // Predicated region
    $region30: #{tpu_custom_call.1} parent=1 // pred_check
      _
    $region31: #{tpu_custom_call.1} parent=1 // pred_check_branch
      %2948 = sbr.rel (0) target = $region33
    $region32: #{tpu_custom_call.1} parent=1 // pred_region
      %2949 = dma.done [#allocation4], 128
    $region33: #{tpu_custom_call.1} parent=1 // pred_fallthru
      _
    %2950 = vsyncpa [#allocation3], 1
    %2951 = vsyncpa [#allocation4], 1
    %2952 = vsyncpa [#allocation5], 1

</llo_original>
